<compile_context>
chip_gen: v7x
topology: tpu7x:2x2x1
jax: 0.10.0
libtpu: 0.0.40
codegen_flags: <defaults>
</compile_context>

<pallas_src>
import jax
import jax.numpy as jnp
from jax import lax
from jax.experimental import pallas as pl
from jax.experimental.pallas import tpu as pltpu

H = 64             # LSTM hidden size
IN1 = 16           # lstm1 input size
IN2 = 2 * H        # lstm2 input size (= 128, bidirectional concat)
NUM_CLASSES = 12   # dataset='pamap'
OUT_PAD = 128      # classes padded to a full lane group for a dense output store


# --------------------------------------------------------------------------
# Cell helpers.  Gate columns are packed host-side so every sigmoid block is
# contiguous: wide EUP issues, 128-lane-aligned slices where possible.
# --------------------------------------------------------------------------
def _bidir_cell(gates, c):
    """Both directions at once. gates: (B, 8H) = [i|f|o|g], each 2H wide with
    [fwd|bwd] halves; c: (B, 2H) = [c_f|c_b]."""
    sig = jax.nn.sigmoid(gates[:, 0:6 * H])       # 1 wide EUP issue (i,f,o)
    g = jnp.tanh(gates[:, 6 * H:8 * H])           # 1 wide EUP issue
    i = sig[:, 0:2 * H]
    f = sig[:, 2 * H:4 * H]
    o = sig[:, 4 * H:6 * H]
    c_new = f * c + i * g
    h_new = o * jnp.tanh(c_new)                   # 1 wide EUP issue
    return h_new, c_new


def _ifog_cell(gates, c):
    """Single direction. gates: (B, 4H) = [i|f|o|g]; c: (B, H)."""
    sig = jax.nn.sigmoid(gates[:, 0:3 * H])
    g = jnp.tanh(gates[:, 3 * H:4 * H])
    i = sig[:, 0:H]
    f = sig[:, H:2 * H]
    o = sig[:, 2 * H:3 * H]
    c_new = f * c + i * g
    h_new = o * jnp.tanh(c_new)
    return h_new, c_new


# --------------------------------------------------------------------------
# Kernel: whole forward pass for one batch block (both bi-LSTM layers + Linear).
# --------------------------------------------------------------------------
def activity_classifier_kernel(
    xcat_ref,                              # (T, TB, 32) f32: [x_t | x_{T-1-t}] features
    w1_ih_ref,                             # (32, 512) f32  fused layer-1 input weights
    w1_hh_ref,                             # (128, 512) bf16 block-diag recurrent weights
    b1_ref,                                # (1, 512) f32   fused layer-1 biases
    w2f_ih_ref,                            # (128, 256) bf16
    w2f_hh_ref,                            # (64, 256) bf16
    b2f_ref,                               # (1, 256) f32
    w2b_ih_ref,                            # (128, 256) bf16 (W_hh not needed: h0 = 0)
    b2b_ref,                               # (1, 256) f32
    wo_ref,                                # (128, 128) f32 (classes zero-padded)
    bo_ref,                                # (1, 128) f32
    out_ref,                               # (TB, 128) f32
    h1_ref,                                # scratch (T*TB, 128) f32: [h1f | h1b] by time
    gx1_ref,                               # scratch (T*TB, 512) f32
    gx2_ref,                               # scratch (T*TB, 256) f32
):
    f32, bf16 = jnp.float32, jnp.bfloat16
    T, TB, _ = xcat_ref.shape

    # ---- (1) bulk layer-1 gate projection for BOTH directions: one matmul ----
    xcat = xcat_ref[...].reshape(T * TB, 2 * IN1)
    gx1_ref[...] = (jnp.dot(xcat, w1_ih_ref[...], preferred_element_type=f32)
                    + b1_ref[...])

    # ---- (2) layer-1 recurrence: fwd & bwd fused in ONE block-diag matmul/step ----
    w1_hh = w1_hh_ref[...]
    h = jnp.zeros((TB, 2 * H), f32)                     # [h_f | h_b]
    c = jnp.zeros((TB, 2 * H), f32)                     # [c_f | c_b]
    for s in range(T):                                  # T is compile-time: static unroll
        gates = gx1_ref[s * TB:(s + 1) * TB, :] + jnp.dot(
            h.astype(bf16), w1_hh, preferred_element_type=f32)
        h, c = _bidir_cell(gates, c)
        # store into the time-ordered h1 scratch (bounds live ranges at any batch size)
        h1_ref[s * TB:(s + 1) * TB, 0:H] = h[:, 0:H]                    # fwd @ time s
        h1_ref[(T - 1 - s) * TB:(T - s) * TB, H:2 * H] = h[:, H:2 * H]  # bwd @ time T-1-s

    # ---- (3) bulk layer-2-forward gate projection: single K=128 matmul ----
    h1_all = h1_ref[...].astype(bf16)
    gx2_ref[...] = (jnp.dot(h1_all, w2f_ih_ref[...], preferred_element_type=f32)
                    + b2f_ref[...])

    # ---- (4) layer-2 reverse: only t=T-1 is read, which is its FIRST reverse step
    #      from zero state -> one cell.  Hoisted (with its output contribution)
    #      before the forward chain so it overlaps the chain head. ----
    h1_last = h1_ref[(T - 1) * TB:T * TB, :].astype(bf16)
    gates_b = (jnp.dot(h1_last, w2b_ih_ref[...], preferred_element_type=f32)
               + b2b_ref[...])
    h2b, _ = _ifog_cell(gates_b, jnp.zeros((TB, H), f32))
    wo = wo_ref[...]
    out_acc = jnp.dot(h2b, wo[H:2 * H], preferred_element_type=f32) + bo_ref[...]

    # ---- (5) layer-2 forward recurrence: only the final carry is needed ----
    w2f_hh = w2f_hh_ref[...]
    h2 = jnp.zeros((TB, H), f32)
    c2 = jnp.zeros((TB, H), f32)
    for s in range(T):
        gates = gx2_ref[s * TB:(s + 1) * TB, :] + jnp.dot(
            h2.astype(bf16), w2f_hh, preferred_element_type=f32)
        h2, c2 = _ifog_cell(gates, c2)

    # ---- x = x[-1]; x = out(x)   (f32, lane-dense 128-wide store) ----
    out_ref[...] = out_acc + jnp.dot(h2, wo[0:H], preferred_element_type=f32)


# --------------------------------------------------------------------------
# Host-side parameter packing (gate reordering / fusion, done once).
# Raw per-direction params are stored transposed: w_ih (in,4H), w_hh (H,4H),
# bias (1,4H), all with PyTorch column order [i, f, g, o].
# --------------------------------------------------------------------------
def _split_ifgo(w):
    return w[:, 0:H], w[:, H:2 * H], w[:, 2 * H:3 * H], w[:, 3 * H:4 * H]


def _scatter_gate_major(w, d):
    """(K,4H) [i,f,g,o] -> (K,8H) gate-major bidir layout, direction d in {0,1}."""
    i, f, g, o = _split_ifgo(w)
    out = jnp.zeros((w.shape[0], 8 * H), w.dtype)
    off = d * H
    out = out.at[:, 0 * 2 * H + off:0 * 2 * H + off + H].set(i)
    out = out.at[:, 1 * 2 * H + off:1 * 2 * H + off + H].set(f)
    out = out.at[:, 2 * 2 * H + off:2 * 2 * H + off + H].set(o)
    out = out.at[:, 3 * 2 * H + off:3 * 2 * H + off + H].set(g)
    return out


def _reorder_ifog(w):
    i, f, g, o = _split_ifgo(w)
    return jnp.concatenate([i, f, o, g], axis=1)


def pack_params(p):
    bf16 = jnp.bfloat16
    return {
        "w1_ih": jnp.concatenate([_scatter_gate_major(p["w1f_ih"], 0),
                                  _scatter_gate_major(p["w1b_ih"], 1)], axis=0),  # (32,512)
        "w1_hh": jnp.concatenate([_scatter_gate_major(p["w1f_hh"], 0),
                                  _scatter_gate_major(p["w1b_hh"], 1)],
                                 axis=0).astype(bf16),                            # (128,512)
        "b1": _scatter_gate_major(p["b1f"], 0) + _scatter_gate_major(p["b1b"], 1),
        "w2f_ih": _reorder_ifog(p["w2f_ih"]).astype(bf16),                        # (128,256)
        "w2f_hh": _reorder_ifog(p["w2f_hh"]).astype(bf16),                        # (64,256)
        "b2f": _reorder_ifog(p["b2f"]),
        "w2b_ih": _reorder_ifog(p["w2b_ih"]).astype(bf16),                        # (128,256)
        "b2b": _reorder_ifog(p["b2b"]),
        "wo": jnp.pad(p["wo"], ((0, 0), (0, OUT_PAD - NUM_CLASSES))),             # (128,128)
        "bo": jnp.pad(p["bo"], ((0, 0), (0, OUT_PAD - NUM_CLASSES))),             # (1,128)
    }


# --------------------------------------------------------------------------
# Wrapper
# --------------------------------------------------------------------------
def activity_classifier_forward(x_btf, params, *, batch_block=256):
    """x_btf: (B, T, 16) exactly like the PyTorch module's input."""
    B, T, feat = x_btf.shape
    assert feat == IN1

    # Pad batch to a full sublane group; block it for the batch grid axis.
    B_pad = max(8, ((B + 7) // 8) * 8)
    TB = min(B_pad, batch_block)
    B_pad = ((B_pad + TB - 1) // TB) * TB
    nb = B_pad // TB

    x = jnp.transpose(x_btf, (1, 0, 2)).astype(jnp.float32)          # permute(1,0,2)
    if B_pad != B:
        x = jnp.pad(x, ((0, 0), (0, B_pad - B), (0, 0)))
    # fwd direction reads x[t]; bwd reads x[T-1-t] -> stack on the feature axis so a
    # single bulk matmul yields both directions' input gate projections.
    xcat = jnp.concatenate([x, x[::-1]], axis=-1)                    # (T, B_pad, 32) f32

    pk = pack_params(params)
    args = (xcat, pk["w1_ih"], pk["w1_hh"], pk["b1"],
            pk["w2f_ih"], pk["w2f_hh"], pk["b2f"],
            pk["w2b_ih"], pk["b2b"], pk["wo"], pk["bo"])

    def _full(shape):
        return pl.BlockSpec(shape, lambda i: (0,) * len(shape))

    in_specs = [pl.BlockSpec((T, TB, 2 * IN1), lambda i: (0, i, 0))]
    in_specs += [_full(a.shape) for a in args[1:]]

    out = pl.pallas_call(
        activity_classifier_kernel,
        out_shape=jax.ShapeDtypeStruct((B_pad, OUT_PAD), jnp.float32),
        grid_spec=pltpu.PrefetchScalarGridSpec(
            num_scalar_prefetch=0,
            grid=(nb,),
            in_specs=in_specs,
            out_specs=pl.BlockSpec((TB, OUT_PAD), lambda i: (i, 0)),
            scratch_shapes=[
                pltpu.VMEM((T * TB, 2 * H), jnp.float32),   # h1 = [h1f | h1b] by time
                pltpu.VMEM((T * TB, 8 * H), jnp.float32),   # layer-1 bulk gate projection
                pltpu.VMEM((T * TB, 4 * H), jnp.float32),   # layer-2 fwd bulk gate proj
            ]),
        compiler_params=pltpu.CompilerParams(
            dimension_semantics=("parallel",)),              # v7x: 2 TCs share the batch
    )(*args)
    return out[:B, :NUM_CLASSES]


# --------------------------------------------------------------------------
# Deterministic parameter init (PyTorch-style U(-1/sqrt(H), 1/sqrt(H))).
# Weights stored pre-transposed ([i,f,g,o] column order); biases pre-summed.
# --------------------------------------------------------------------------
def init_params(key):
    ks = iter(jax.random.split(key, 32))
    k_lstm = 1.0 / jnp.sqrt(H)
    k_out = 1.0 / jnp.sqrt(IN2)

    def u(k, shape, scale):
        return jax.random.uniform(k, shape, jnp.float32, -scale, scale)

    def lstm_dir(in_dim):
        w_ih_t = u(next(ks), (in_dim, 4 * H), k_lstm)
        w_hh_t = u(next(ks), (H, 4 * H), k_lstm)
        b = u(next(ks), (1, 4 * H), k_lstm) + u(next(ks), (1, 4 * H), k_lstm)
        return w_ih_t, w_hh_t, b

    p = {}
    p["w1f_ih"], p["w1f_hh"], p["b1f"] = lstm_dir(IN1)
    p["w1b_ih"], p["w1b_hh"], p["b1b"] = lstm_dir(IN1)
    p["w2f_ih"], p["w2f_hh"], p["b2f"] = lstm_dir(IN2)
    p["w2b_ih"], p["w2b_hh"], p["b2b"] = lstm_dir(IN2)   # w2b_hh used by reference only
    p["wo"] = u(next(ks), (IN2, NUM_CLASSES), k_out)
    p["bo"] = u(next(ks), (1, NUM_CLASSES), k_out)
    return p


# --------------------------------------------------------------------------
# Pure-JAX f32 reference (same math as the PyTorch module) for a sanity check.
# --------------------------------------------------------------------------
def _ref_lstm_dir(x, w_ih_t, w_hh_t, b, reverse):
    xs = x[::-1] if reverse else x

    def step(carry, xt):
        h, c = carry
        gates = xt @ w_ih_t + h @ w_hh_t + b
        i_g = jax.nn.sigmoid(gates[:, 0 * H:1 * H])
        f_g = jax.nn.sigmoid(gates[:, 1 * H:2 * H])
        g_g = jnp.tanh(gates[:, 2 * H:3 * H])
        o_g = jax.nn.sigmoid(gates[:, 3 * H:4 * H])
        c_n = f_g * c + i_g * g_g
        h_n = o_g * jnp.tanh(c_n)
        return (h_n, c_n), h_n

    B = x.shape[1]
    z = jnp.zeros((B, H), jnp.float32)
    _, hs = lax.scan(step, (z, z), xs)
    return hs[::-1] if reverse else hs


def reference_forward(x_btf, p):
    x = jnp.transpose(x_btf, (1, 0, 2)).astype(jnp.float32)
    h1 = jnp.concatenate(
        [_ref_lstm_dir(x, p["w1f_ih"], p["w1f_hh"], p["b1f"], False),
         _ref_lstm_dir(x, p["w1b_ih"], p["w1b_hh"], p["b1b"], True)], axis=-1)
    h2 = jnp.concatenate(
        [_ref_lstm_dir(h1, p["w2f_ih"], p["w2f_hh"], p["b2f"], False),
         _ref_lstm_dir(h1, p["w2b_ih"], p["w2b_hh"], p["b2b"], True)], axis=-1)
    return h2[-1] @ p["wo"] + p["bo"]


if __name__ == "__main__":
    key = jax.random.PRNGKey(0)
    k_x, k_p = jax.random.split(key)

    B, T = 2, 8
    x = jax.random.normal(k_x, (B, T, IN1), jnp.float32)   # (batch, seq, 16)
    params = init_params(k_p)

    out = activity_classifier_forward(x, params)
    out = jax.block_until_ready(out)

    ref = reference_forward(x, params)
    assert out.shape == (B, NUM_CLASSES), out.shape
    assert jnp.all(jnp.isfinite(out))
    # Kernel uses bf16 MXU operands for the recurrent matmuls (f32 accumulation);
    # the reference is pure f32, hence the slightly relaxed tolerance.
    assert jnp.allclose(out, ref, atol=3e-2, rtol=3e-2), (
        float(jnp.max(jnp.abs(out - ref))))

    print("KERNEL_OK")
</pallas_src>

<mosaic_0001>
module attributes {stable_mosaic.version = 11 : i64} {
  func.func @activity_classifier_kernel(%arg0: i32, %arg1: memref<8x8x32xf32, #tpu.memory_space<vmem>>, %arg2: memref<32x512xf32, #tpu.memory_space<vmem>>, %arg3: memref<128x512xbf16, #tpu.memory_space<vmem>>, %arg4: memref<1x512xf32, #tpu.memory_space<vmem>>, %arg5: memref<128x256xbf16, #tpu.memory_space<vmem>>, %arg6: memref<64x256xbf16, #tpu.memory_space<vmem>>, %arg7: memref<1x256xf32, #tpu.memory_space<vmem>>, %arg8: memref<128x256xbf16, #tpu.memory_space<vmem>>, %arg9: memref<1x256xf32, #tpu.memory_space<vmem>>, %arg10: memref<128x128xf32, #tpu.memory_space<vmem>>, %arg11: memref<1x128xf32, #tpu.memory_space<vmem>>, %arg12: memref<8x128xf32, #tpu.memory_space<vmem>>, %arg13: memref<64x128xf32, #tpu.memory_space<vmem>>, %arg14: memref<64x512xf32, #tpu.memory_space<vmem>>, %arg15: memref<64x256xf32, #tpu.memory_space<vmem>>) attributes {dimension_semantics = [#tpu.dimension_semantics<parallel>], iteration_bounds = array<i64: 1>, scalar_prefetch = 0 : i64, scratch_operands = 3 : i64, tpu.core_type = #tpu.core_type<tc>, window_params = [{transform_indices = @transform_0, window_bounds = array<i64: 8, 8, 32>}, {pipeline_mode = #tpu.pipeline_mode<synchronous>, transform_indices = @transform_1, window_bounds = array<i64: 32, 512>}, {pipeline_mode = #tpu.pipeline_mode<synchronous>, transform_indices = @transform_2, window_bounds = array<i64: 128, 512>}, {pipeline_mode = #tpu.pipeline_mode<synchronous>, transform_indices = @transform_3, window_bounds = array<i64: 1, 512>}, {pipeline_mode = #tpu.pipeline_mode<synchronous>, transform_indices = @transform_4, window_bounds = array<i64: 128, 256>}, {pipeline_mode = #tpu.pipeline_mode<synchronous>, transform_indices = @transform_5, window_bounds = array<i64: 64, 256>}, {pipeline_mode = #tpu.pipeline_mode<synchronous>, transform_indices = @transform_6, window_bounds = array<i64: 1, 256>}, {pipeline_mode = #tpu.pipeline_mode<synchronous>, transform_indices = @transform_7, window_bounds = array<i64: 128, 256>}, {pipeline_mode = #tpu.pipeline_mode<synchronous>, transform_indices = @transform_8, window_bounds = array<i64: 1, 256>}, {pipeline_mode = #tpu.pipeline_mode<synchronous>, transform_indices = @transform_9, window_bounds = array<i64: 128, 128>}, {pipeline_mode = #tpu.pipeline_mode<synchronous>, transform_indices = @transform_10, window_bounds = array<i64: 1, 128>}, {transform_indices = @transform_11, window_bounds = array<i64: 8, 128>}]} {
    %c0 = arith.constant 0 : index
    %c0_0 = arith.constant 0 : index
    %c0_1 = arith.constant 0 : index
    %0 = vector.load %arg1[%c0, %c0_0, %c0_1] : memref<8x8x32xf32, #tpu.memory_space<vmem>>, vector<8x8x32xf32>
    %1 = vector.shape_cast %0 : vector<8x8x32xf32> to vector<64x32xf32>
    %c0_2 = arith.constant 0 : index
    %c0_3 = arith.constant 0 : index
    %2 = vector.load %arg2[%c0_2, %c0_3] : memref<32x512xf32, #tpu.memory_space<vmem>>, vector<32x512xf32>
    %cst = arith.constant dense<0.000000e+00> : vector<64x512xf32>
    %3 = tpu.matmul %1, %2, %cst {dimension_numbers = #tpu.dot_dimension_numbers<[1], [0], [0], [1], [0, 0, 1, 1], [], []>} : vector<64x32xf32>, vector<32x512xf32>, vector<64x512xf32> -> vector<64x512xf32>
    %c0_4 = arith.constant 0 : index
    %c0_5 = arith.constant 0 : index
    %4 = vector.load %arg4[%c0_4, %c0_5] : memref<1x512xf32, #tpu.memory_space<vmem>>, vector<1x512xf32>
    %5 = vector.broadcast %4 : vector<1x512xf32> to vector<64x512xf32>
    %6 = arith.addf %3, %5 : vector<64x512xf32>
    %c0_6 = arith.constant 0 : index
    %c0_7 = arith.constant 0 : index
    %7 = vector.load %arg14[%c0_6, %c0_7] : memref<64x512xf32, #tpu.memory_space<vmem>>, vector<64x512xf32>
    tpu.vector_store %arg14[%c0_6, %c0_7], %6 {strides = array<i32>} : memref<64x512xf32, #tpu.memory_space<vmem>>, vector<64x512xf32>,
    %c0_8 = arith.constant 0 : index
    %c0_9 = arith.constant 0 : index
    %8 = vector.load %arg3[%c0_8, %c0_9] : memref<128x512xbf16, #tpu.memory_space<vmem>>, vector<128x512xbf16>
    %cst_10 = arith.constant 0.000000e+00 : f32
    %9 = vector.broadcast %cst_10 : f32 to vector<8x128xf32>
    %cst_11 = arith.constant 0.000000e+00 : f32
    %10 = vector.broadcast %cst_11 : f32 to vector<8x128xf32>
    %c0_12 = arith.constant 0 : index
    %c0_13 = arith.constant 0 : index
    %11 = vector.load %arg14[%c0_12, %c0_13] : memref<64x512xf32, #tpu.memory_space<vmem>>, vector<8x512xf32>
    %12 = arith.truncf %9 : vector<8x128xf32> to vector<8x128xbf16>
    %cst_14 = arith.constant dense<0.000000e+00> : vector<8x512xf32>
    %13 = tpu.matmul %12, %8, %cst_14 {dimension_numbers = #tpu.dot_dimension_numbers<[1], [0], [0], [1], [0, 0, 1, 1], [], []>} : vector<8x128xbf16>, vector<128x512xbf16>, vector<8x512xf32> -> vector<8x512xf32>
    %14 = arith.addf %11, %13 : vector<8x512xf32>
    %15 = vector.extract_strided_slice %14 {offsets = [0, 0], sizes = [8, 384], strides = [1, 1]} : vector<8x512xf32> to vector<8x384xf32>
    %16 = arith.negf %15 : vector<8x384xf32>
    %17 = math.exp %16 : vector<8x384xf32>
    %cst_15 = arith.constant 1.000000e+00 : f32
    %18 = vector.broadcast %cst_15 : f32 to vector<8x384xf32>
    %19 = arith.addf %18, %17 : vector<8x384xf32>
    %20 = arith.divf %18, %19 : vector<8x384xf32>
    %21 = vector.extract_strided_slice %14 {offsets = [0, 384], sizes = [8, 128], strides = [1, 1]} : vector<8x512xf32> to vector<8x128xf32>
    %22 = math.tanh %21 : vector<8x128xf32>
    %23 = vector.extract_strided_slice %20 {offsets = [0, 0], sizes = [8, 128], strides = [1, 1]} : vector<8x384xf32> to vector<8x128xf32>
    %24 = vector.extract_strided_slice %20 {offsets = [0, 128], sizes = [8, 128], strides = [1, 1]} : vector<8x384xf32> to vector<8x128xf32>
    %25 = vector.extract_strided_slice %20 {offsets = [0, 256], sizes = [8, 128], strides = [1, 1]} : vector<8x384xf32> to vector<8x128xf32>
    %26 = arith.mulf %24, %10 : vector<8x128xf32>
    %27 = arith.mulf %23, %22 : vector<8x128xf32>
    %28 = arith.addf %26, %27 : vector<8x128xf32>
    %29 = math.tanh %28 : vector<8x128xf32>
    %30 = arith.mulf %25, %29 : vector<8x128xf32>
    %31 = vector.extract_strided_slice %30 {offsets = [0, 0], sizes = [8, 64], strides = [1, 1]} : vector<8x128xf32> to vector<8x64xf32>
    %c0_16 = arith.constant 0 : index
    %c0_17 = arith.constant 0 : index
    %32 = vector.load %arg13[%c0_16, %c0_17] : memref<64x128xf32, #tpu.memory_space<vmem>>, vector<8x64xf32>
    tpu.vector_store %arg13[%c0_16, %c0_17], %31 {strides = array<i32>} : memref<64x128xf32, #tpu.memory_space<vmem>>, vector<8x64xf32>,
    %33 = vector.extract_strided_slice %30 {offsets = [0, 64], sizes = [8, 64], strides = [1, 1]} : vector<8x128xf32> to vector<8x64xf32>
    %c56 = arith.constant 56 : index
    %c64 = arith.constant 64 : index
    %34 = vector.load %arg13[%c56, %c64] : memref<64x128xf32, #tpu.memory_space<vmem>>, vector<8x64xf32>
    tpu.vector_store %arg13[%c56, %c64], %33 {strides = array<i32>} : memref<64x128xf32, #tpu.memory_space<vmem>>, vector<8x64xf32>,
    %c8 = arith.constant 8 : index
    %c0_18 = arith.constant 0 : index
    %35 = vector.load %arg14[%c8, %c0_18] : memref<64x512xf32, #tpu.memory_space<vmem>>, vector<8x512xf32>
    %36 = arith.truncf %30 : vector<8x128xf32> to vector<8x128xbf16>
    %cst_19 = arith.constant dense<0.000000e+00> : vector<8x512xf32>
    %37 = tpu.matmul %36, %8, %cst_19 {dimension_numbers = #tpu.dot_dimension_numbers<[1], [0], [0], [1], [0, 0, 1, 1], [], []>} : vector<8x128xbf16>, vector<128x512xbf16>, vector<8x512xf32> -> vector<8x512xf32>
    %38 = arith.addf %35, %37 : vector<8x512xf32>
    %39 = vector.extract_strided_slice %38 {offsets = [0, 0], sizes = [8, 384], strides = [1, 1]} : vector<8x512xf32> to vector<8x384xf32>
    %40 = arith.negf %39 : vector<8x384xf32>
    %41 = math.exp %40 : vector<8x384xf32>
    %cst_20 = arith.constant 1.000000e+00 : f32
    %42 = vector.broadcast %cst_20 : f32 to vector<8x384xf32>
    %43 = arith.addf %42, %41 : vector<8x384xf32>
    %44 = arith.divf %42, %43 : vector<8x384xf32>
    %45 = vector.extract_strided_slice %38 {offsets = [0, 384], sizes = [8, 128], strides = [1, 1]} : vector<8x512xf32> to vector<8x128xf32>
    %46 = math.tanh %45 : vector<8x128xf32>
    %47 = vector.extract_strided_slice %44 {offsets = [0, 0], sizes = [8, 128], strides = [1, 1]} : vector<8x384xf32> to vector<8x128xf32>
    %48 = vector.extract_strided_slice %44 {offsets = [0, 128], sizes = [8, 128], strides = [1, 1]} : vector<8x384xf32> to vector<8x128xf32>
    %49 = vector.extract_strided_slice %44 {offsets = [0, 256], sizes = [8, 128], strides = [1, 1]} : vector<8x384xf32> to vector<8x128xf32>
    %50 = arith.mulf %48, %28 : vector<8x128xf32>
    %51 = arith.mulf %47, %46 : vector<8x128xf32>
    %52 = arith.addf %50, %51 : vector<8x128xf32>
    %53 = math.tanh %52 : vector<8x128xf32>
    %54 = arith.mulf %49, %53 : vector<8x128xf32>
    %55 = vector.extract_strided_slice %54 {offsets = [0, 0], sizes = [8, 64], strides = [1, 1]} : vector<8x128xf32> to vector<8x64xf32>
    %c8_21 = arith.constant 8 : index
    %c0_22 = arith.constant 0 : index
    %56 = vector.load %arg13[%c8_21, %c0_22] : memref<64x128xf32, #tpu.memory_space<vmem>>, vector<8x64xf32>
    tpu.vector_store %arg13[%c8_21, %c0_22], %55 {strides = array<i32>} : memref<64x128xf32, #tpu.memory_space<vmem>>, vector<8x64xf32>,
    %57 = vector.extract_strided_slice %54 {offsets = [0, 64], sizes = [8, 64], strides = [1, 1]} : vector<8x128xf32> to vector<8x64xf32>
    %c48 = arith.constant 48 : index
    %c64_23 = arith.constant 64 : index
    %58 = vector.load %arg13[%c48, %c64_23] : memref<64x128xf32, #tpu.memory_space<vmem>>, vector<8x64xf32>
    tpu.vector_store %arg13[%c48, %c64_23], %57 {strides = array<i32>} : memref<64x128xf32, #tpu.memory_space<vmem>>, vector<8x64xf32>,
    %c16 = arith.constant 16 : index
    %c0_24 = arith.constant 0 : index
    %59 = vector.load %arg14[%c16, %c0_24] : memref<64x512xf32, #tpu.memory_space<vmem>>, vector<8x512xf32>
    %60 = arith.truncf %54 : vector<8x128xf32> to vector<8x128xbf16>
    %cst_25 = arith.constant dense<0.000000e+00> : vector<8x512xf32>
    %61 = tpu.matmul %60, %8, %cst_25 {dimension_numbers = #tpu.dot_dimension_numbers<[1], [0], [0], [1], [0, 0, 1, 1], [], []>} : vector<8x128xbf16>, vector<128x512xbf16>, vector<8x512xf32> -> vector<8x512xf32>
    %62 = arith.addf %59, %61 : vector<8x512xf32>
    %63 = vector.extract_strided_slice %62 {offsets = [0, 0], sizes = [8, 384], strides = [1, 1]} : vector<8x512xf32> to vector<8x384xf32>
    %64 = arith.negf %63 : vector<8x384xf32>
    %65 = math.exp %64 : vector<8x384xf32>
    %cst_26 = arith.constant 1.000000e+00 : f32
    %66 = vector.broadcast %cst_26 : f32 to vector<8x384xf32>
    %67 = arith.addf %66, %65 : vector<8x384xf32>
    %68 = arith.divf %66, %67 : vector<8x384xf32>
    %69 = vector.extract_strided_slice %62 {offsets = [0, 384], sizes = [8, 128], strides = [1, 1]} : vector<8x512xf32> to vector<8x128xf32>
    %70 = math.tanh %69 : vector<8x128xf32>
    %71 = vector.extract_strided_slice %68 {offsets = [0, 0], sizes = [8, 128], strides = [1, 1]} : vector<8x384xf32> to vector<8x128xf32>
    %72 = vector.extract_strided_slice %68 {offsets = [0, 128], sizes = [8, 128], strides = [1, 1]} : vector<8x384xf32> to vector<8x128xf32>
    %73 = vector.extract_strided_slice %68 {offsets = [0, 256], sizes = [8, 128], strides = [1, 1]} : vector<8x384xf32> to vector<8x128xf32>
    %74 = arith.mulf %72, %52 : vector<8x128xf32>
    %75 = arith.mulf %71, %70 : vector<8x128xf32>
    %76 = arith.addf %74, %75 : vector<8x128xf32>
    %77 = math.tanh %76 : vector<8x128xf32>
    %78 = arith.mulf %73, %77 : vector<8x128xf32>
    %79 = vector.extract_strided_slice %78 {offsets = [0, 0], sizes = [8, 64], strides = [1, 1]} : vector<8x128xf32> to vector<8x64xf32>
    %c16_27 = arith.constant 16 : index
    %c0_28 = arith.constant 0 : index
    %80 = vector.load %arg13[%c16_27, %c0_28] : memref<64x128xf32, #tpu.memory_space<vmem>>, vector<8x64xf32>
    tpu.vector_store %arg13[%c16_27, %c0_28], %79 {strides = array<i32>} : memref<64x128xf32, #tpu.memory_space<vmem>>, vector<8x64xf32>,
    %81 = vector.extract_strided_slice %78 {offsets = [0, 64], sizes = [8, 64], strides = [1, 1]} : vector<8x128xf32> to vector<8x64xf32>
    %c40 = arith.constant 40 : index
    %c64_29 = arith.constant 64 : index
    %82 = vector.load %arg13[%c40, %c64_29] : memref<64x128xf32, #tpu.memory_space<vmem>>, vector<8x64xf32>
    tpu.vector_store %arg13[%c40, %c64_29], %81 {strides = array<i32>} : memref<64x128xf32, #tpu.memory_space<vmem>>, vector<8x64xf32>,
    %c24 = arith.constant 24 : index
    %c0_30 = arith.constant 0 : index
    %83 = vector.load %arg14[%c24, %c0_30] : memref<64x512xf32, #tpu.memory_space<vmem>>, vector<8x512xf32>
    %84 = arith.truncf %78 : vector<8x128xf32> to vector<8x128xbf16>
    %cst_31 = arith.constant dense<0.000000e+00> : vector<8x512xf32>
    %85 = tpu.matmul %84, %8, %cst_31 {dimension_numbers = #tpu.dot_dimension_numbers<[1], [0], [0], [1], [0, 0, 1, 1], [], []>} : vector<8x128xbf16>, vector<128x512xbf16>, vector<8x512xf32> -> vector<8x512xf32>
    %86 = arith.addf %83, %85 : vector<8x512xf32>
    %87 = vector.extract_strided_slice %86 {offsets = [0, 0], sizes = [8, 384], strides = [1, 1]} : vector<8x512xf32> to vector<8x384xf32>
    %88 = arith.negf %87 : vector<8x384xf32>
    %89 = math.exp %88 : vector<8x384xf32>
    %cst_32 = arith.constant 1.000000e+00 : f32
    %90 = vector.broadcast %cst_32 : f32 to vector<8x384xf32>
    %91 = arith.addf %90, %89 : vector<8x384xf32>
    %92 = arith.divf %90, %91 : vector<8x384xf32>
    %93 = vector.extract_strided_slice %86 {offsets = [0, 384], sizes = [8, 128], strides = [1, 1]} : vector<8x512xf32> to vector<8x128xf32>
    %94 = math.tanh %93 : vector<8x128xf32>
    %95 = vector.extract_strided_slice %92 {offsets = [0, 0], sizes = [8, 128], strides = [1, 1]} : vector<8x384xf32> to vector<8x128xf32>
    %96 = vector.extract_strided_slice %92 {offsets = [0, 128], sizes = [8, 128], strides = [1, 1]} : vector<8x384xf32> to vector<8x128xf32>
    %97 = vector.extract_strided_slice %92 {offsets = [0, 256], sizes = [8, 128], strides = [1, 1]} : vector<8x384xf32> to vector<8x128xf32>
    %98 = arith.mulf %96, %76 : vector<8x128xf32>
    %99 = arith.mulf %95, %94 : vector<8x128xf32>
    %100 = arith.addf %98, %99 : vector<8x128xf32>
    %101 = math.tanh %100 : vector<8x128xf32>
    %102 = arith.mulf %97, %101 : vector<8x128xf32>
    %103 = vector.extract_strided_slice %102 {offsets = [0, 0], sizes = [8, 64], strides = [1, 1]} : vector<8x128xf32> to vector<8x64xf32>
    %c24_33 = arith.constant 24 : index
    %c0_34 = arith.constant 0 : index
    %104 = vector.load %arg13[%c24_33, %c0_34] : memref<64x128xf32, #tpu.memory_space<vmem>>, vector<8x64xf32>
    tpu.vector_store %arg13[%c24_33, %c0_34], %103 {strides = array<i32>} : memref<64x128xf32, #tpu.memory_space<vmem>>, vector<8x64xf32>,
    %105 = vector.extract_strided_slice %102 {offsets = [0, 64], sizes = [8, 64], strides = [1, 1]} : vector<8x128xf32> to vector<8x64xf32>
    %c32 = arith.constant 32 : index
    %c64_35 = arith.constant 64 : index
    %106 = vector.load %arg13[%c32, %c64_35] : memref<64x128xf32, #tpu.memory_space<vmem>>, vector<8x64xf32>
    tpu.vector_store %arg13[%c32, %c64_35], %105 {strides = array<i32>} : memref<64x128xf32, #tpu.memory_space<vmem>>, vector<8x64xf32>,
    %c32_36 = arith.constant 32 : index
    %c0_37 = arith.constant 0 : index
    %107 = vector.load %arg14[%c32_36, %c0_37] : memref<64x512xf32, #tpu.memory_space<vmem>>, vector<8x512xf32>
    %108 = arith.truncf %102 : vector<8x128xf32> to vector<8x128xbf16>
    %cst_38 = arith.constant dense<0.000000e+00> : vector<8x512xf32>
    %109 = tpu.matmul %108, %8, %cst_38 {dimension_numbers = #tpu.dot_dimension_numbers<[1], [0], [0], [1], [0, 0, 1, 1], [], []>} : vector<8x128xbf16>, vector<128x512xbf16>, vector<8x512xf32> -> vector<8x512xf32>
    %110 = arith.addf %107, %109 : vector<8x512xf32>
    %111 = vector.extract_strided_slice %110 {offsets = [0, 0], sizes = [8, 384], strides = [1, 1]} : vector<8x512xf32> to vector<8x384xf32>
    %112 = arith.negf %111 : vector<8x384xf32>
    %113 = math.exp %112 : vector<8x384xf32>
    %cst_39 = arith.constant 1.000000e+00 : f32
    %114 = vector.broadcast %cst_39 : f32 to vector<8x384xf32>
    %115 = arith.addf %114, %113 : vector<8x384xf32>
    %116 = arith.divf %114, %115 : vector<8x384xf32>
    %117 = vector.extract_strided_slice %110 {offsets = [0, 384], sizes = [8, 128], strides = [1, 1]} : vector<8x512xf32> to vector<8x128xf32>
    %118 = math.tanh %117 : vector<8x128xf32>
    %119 = vector.extract_strided_slice %116 {offsets = [0, 0], sizes = [8, 128], strides = [1, 1]} : vector<8x384xf32> to vector<8x128xf32>
    %120 = vector.extract_strided_slice %116 {offsets = [0, 128], sizes = [8, 128], strides = [1, 1]} : vector<8x384xf32> to vector<8x128xf32>
    %121 = vector.extract_strided_slice %116 {offsets = [0, 256], sizes = [8, 128], strides = [1, 1]} : vector<8x384xf32> to vector<8x128xf32>
    %122 = arith.mulf %120, %100 : vector<8x128xf32>
    %123 = arith.mulf %119, %118 : vector<8x128xf32>
    %124 = arith.addf %122, %123 : vector<8x128xf32>
    %125 = math.tanh %124 : vector<8x128xf32>
    %126 = arith.mulf %121, %125 : vector<8x128xf32>
    %127 = vector.extract_strided_slice %126 {offsets = [0, 0], sizes = [8, 64], strides = [1, 1]} : vector<8x128xf32> to vector<8x64xf32>
    %c32_40 = arith.constant 32 : index
    %c0_41 = arith.constant 0 : index
    %128 = vector.load %arg13[%c32_40, %c0_41] : memref<64x128xf32, #tpu.memory_space<vmem>>, vector<8x64xf32>
    tpu.vector_store %arg13[%c32_40, %c0_41], %127 {strides = array<i32>} : memref<64x128xf32, #tpu.memory_space<vmem>>, vector<8x64xf32>,
    %129 = vector.extract_strided_slice %126 {offsets = [0, 64], sizes = [8, 64], strides = [1, 1]} : vector<8x128xf32> to vector<8x64xf32>
    %c24_42 = arith.constant 24 : index
    %c64_43 = arith.constant 64 : index
    %130 = vector.load %arg13[%c24_42, %c64_43] : memref<64x128xf32, #tpu.memory_space<vmem>>, vector<8x64xf32>
    tpu.vector_store %arg13[%c24_42, %c64_43], %129 {strides = array<i32>} : memref<64x128xf32, #tpu.memory_space<vmem>>, vector<8x64xf32>,
    %c40_44 = arith.constant 40 : index
    %c0_45 = arith.constant 0 : index
    %131 = vector.load %arg14[%c40_44, %c0_45] : memref<64x512xf32, #tpu.memory_space<vmem>>, vector<8x512xf32>
    %132 = arith.truncf %126 : vector<8x128xf32> to vector<8x128xbf16>
    %cst_46 = arith.constant dense<0.000000e+00> : vector<8x512xf32>
    %133 = tpu.matmul %132, %8, %cst_46 {dimension_numbers = #tpu.dot_dimension_numbers<[1], [0], [0], [1], [0, 0, 1, 1], [], []>} : vector<8x128xbf16>, vector<128x512xbf16>, vector<8x512xf32> -> vector<8x512xf32>
    %134 = arith.addf %131, %133 : vector<8x512xf32>
    %135 = vector.extract_strided_slice %134 {offsets = [0, 0], sizes = [8, 384], strides = [1, 1]} : vector<8x512xf32> to vector<8x384xf32>
    %136 = arith.negf %135 : vector<8x384xf32>
    %137 = math.exp %136 : vector<8x384xf32>
    %cst_47 = arith.constant 1.000000e+00 : f32
    %138 = vector.broadcast %cst_47 : f32 to vector<8x384xf32>
    %139 = arith.addf %138, %137 : vector<8x384xf32>
    %140 = arith.divf %138, %139 : vector<8x384xf32>
    %141 = vector.extract_strided_slice %134 {offsets = [0, 384], sizes = [8, 128], strides = [1, 1]} : vector<8x512xf32> to vector<8x128xf32>
    %142 = math.tanh %141 : vector<8x128xf32>
    %143 = vector.extract_strided_slice %140 {offsets = [0, 0], sizes = [8, 128], strides = [1, 1]} : vector<8x384xf32> to vector<8x128xf32>
    %144 = vector.extract_strided_slice %140 {offsets = [0, 128], sizes = [8, 128], strides = [1, 1]} : vector<8x384xf32> to vector<8x128xf32>
    %145 = vector.extract_strided_slice %140 {offsets = [0, 256], sizes = [8, 128], strides = [1, 1]} : vector<8x384xf32> to vector<8x128xf32>
    %146 = arith.mulf %144, %124 : vector<8x128xf32>
    %147 = arith.mulf %143, %142 : vector<8x128xf32>
    %148 = arith.addf %146, %147 : vector<8x128xf32>
    %149 = math.tanh %148 : vector<8x128xf32>
    %150 = arith.mulf %145, %149 : vector<8x128xf32>
    %151 = vector.extract_strided_slice %150 {offsets = [0, 0], sizes = [8, 64], strides = [1, 1]} : vector<8x128xf32> to vector<8x64xf32>
    %c40_48 = arith.constant 40 : index
    %c0_49 = arith.constant 0 : index
    %152 = vector.load %arg13[%c40_48, %c0_49] : memref<64x128xf32, #tpu.memory_space<vmem>>, vector<8x64xf32>
    tpu.vector_store %arg13[%c40_48, %c0_49], %151 {strides = array<i32>} : memref<64x128xf32, #tpu.memory_space<vmem>>, vector<8x64xf32>,
    %153 = vector.extract_strided_slice %150 {offsets = [0, 64], sizes = [8, 64], strides = [1, 1]} : vector<8x128xf32> to vector<8x64xf32>
    %c16_50 = arith.constant 16 : index
    %c64_51 = arith.constant 64 : index
    %154 = vector.load %arg13[%c16_50, %c64_51] : memref<64x128xf32, #tpu.memory_space<vmem>>, vector<8x64xf32>
    tpu.vector_store %arg13[%c16_50, %c64_51], %153 {strides = array<i32>} : memref<64x128xf32, #tpu.memory_space<vmem>>, vector<8x64xf32>,
    %c48_52 = arith.constant 48 : index
    %c0_53 = arith.constant 0 : index
    %155 = vector.load %arg14[%c48_52, %c0_53] : memref<64x512xf32, #tpu.memory_space<vmem>>, vector<8x512xf32>
    %156 = arith.truncf %150 : vector<8x128xf32> to vector<8x128xbf16>
    %cst_54 = arith.constant dense<0.000000e+00> : vector<8x512xf32>
    %157 = tpu.matmul %156, %8, %cst_54 {dimension_numbers = #tpu.dot_dimension_numbers<[1], [0], [0], [1], [0, 0, 1, 1], [], []>} : vector<8x128xbf16>, vector<128x512xbf16>, vector<8x512xf32> -> vector<8x512xf32>
    %158 = arith.addf %155, %157 : vector<8x512xf32>
    %159 = vector.extract_strided_slice %158 {offsets = [0, 0], sizes = [8, 384], strides = [1, 1]} : vector<8x512xf32> to vector<8x384xf32>
    %160 = arith.negf %159 : vector<8x384xf32>
    %161 = math.exp %160 : vector<8x384xf32>
    %cst_55 = arith.constant 1.000000e+00 : f32
    %162 = vector.broadcast %cst_55 : f32 to vector<8x384xf32>
    %163 = arith.addf %162, %161 : vector<8x384xf32>
    %164 = arith.divf %162, %163 : vector<8x384xf32>
    %165 = vector.extract_strided_slice %158 {offsets = [0, 384], sizes = [8, 128], strides = [1, 1]} : vector<8x512xf32> to vector<8x128xf32>
    %166 = math.tanh %165 : vector<8x128xf32>
    %167 = vector.extract_strided_slice %164 {offsets = [0, 0], sizes = [8, 128], strides = [1, 1]} : vector<8x384xf32> to vector<8x128xf32>
    %168 = vector.extract_strided_slice %164 {offsets = [0, 128], sizes = [8, 128], strides = [1, 1]} : vector<8x384xf32> to vector<8x128xf32>
    %169 = vector.extract_strided_slice %164 {offsets = [0, 256], sizes = [8, 128], strides = [1, 1]} : vector<8x384xf32> to vector<8x128xf32>
    %170 = arith.mulf %168, %148 : vector<8x128xf32>
    %171 = arith.mulf %167, %166 : vector<8x128xf32>
    %172 = arith.addf %170, %171 : vector<8x128xf32>
    %173 = math.tanh %172 : vector<8x128xf32>
    %174 = arith.mulf %169, %173 : vector<8x128xf32>
    %175 = vector.extract_strided_slice %174 {offsets = [0, 0], sizes = [8, 64], strides = [1, 1]} : vector<8x128xf32> to vector<8x64xf32>
    %c48_56 = arith.constant 48 : index
    %c0_57 = arith.constant 0 : index
    %176 = vector.load %arg13[%c48_56, %c0_57] : memref<64x128xf32, #tpu.memory_space<vmem>>, vector<8x64xf32>
    tpu.vector_store %arg13[%c48_56, %c0_57], %175 {strides = array<i32>} : memref<64x128xf32, #tpu.memory_space<vmem>>, vector<8x64xf32>,
    %177 = vector.extract_strided_slice %174 {offsets = [0, 64], sizes = [8, 64], strides = [1, 1]} : vector<8x128xf32> to vector<8x64xf32>
    %c8_58 = arith.constant 8 : index
    %c64_59 = arith.constant 64 : index
    %178 = vector.load %arg13[%c8_58, %c64_59] : memref<64x128xf32, #tpu.memory_space<vmem>>, vector<8x64xf32>
    tpu.vector_store %arg13[%c8_58, %c64_59], %177 {strides = array<i32>} : memref<64x128xf32, #tpu.memory_space<vmem>>, vector<8x64xf32>,
    %c56_60 = arith.constant 56 : index
    %c0_61 = arith.constant 0 : index
    %179 = vector.load %arg14[%c56_60, %c0_61] : memref<64x512xf32, #tpu.memory_space<vmem>>, vector<8x512xf32>
    %180 = arith.truncf %174 : vector<8x128xf32> to vector<8x128xbf16>
    %cst_62 = arith.constant dense<0.000000e+00> : vector<8x512xf32>
    %181 = tpu.matmul %180, %8, %cst_62 {dimension_numbers = #tpu.dot_dimension_numbers<[1], [0], [0], [1], [0, 0, 1, 1], [], []>} : vector<8x128xbf16>, vector<128x512xbf16>, vector<8x512xf32> -> vector<8x512xf32>
    %182 = arith.addf %179, %181 : vector<8x512xf32>
    %183 = vector.extract_strided_slice %182 {offsets = [0, 0], sizes = [8, 384], strides = [1, 1]} : vector<8x512xf32> to vector<8x384xf32>
    %184 = arith.negf %183 : vector<8x384xf32>
    %185 = math.exp %184 : vector<8x384xf32>
    %cst_63 = arith.constant 1.000000e+00 : f32
    %186 = vector.broadcast %cst_63 : f32 to vector<8x384xf32>
    %187 = arith.addf %186, %185 : vector<8x384xf32>
    %188 = arith.divf %186, %187 : vector<8x384xf32>
    %189 = vector.extract_strided_slice %182 {offsets = [0, 384], sizes = [8, 128], strides = [1, 1]} : vector<8x512xf32> to vector<8x128xf32>
    %190 = math.tanh %189 : vector<8x128xf32>
    %191 = vector.extract_strided_slice %188 {offsets = [0, 0], sizes = [8, 128], strides = [1, 1]} : vector<8x384xf32> to vector<8x128xf32>
    %192 = vector.extract_strided_slice %188 {offsets = [0, 128], sizes = [8, 128], strides = [1, 1]} : vector<8x384xf32> to vector<8x128xf32>
    %193 = vector.extract_strided_slice %188 {offsets = [0, 256], sizes = [8, 128], strides = [1, 1]} : vector<8x384xf32> to vector<8x128xf32>
    %194 = arith.mulf %192, %172 : vector<8x128xf32>
    %195 = arith.mulf %191, %190 : vector<8x128xf32>
    %196 = arith.addf %194, %195 : vector<8x128xf32>
    %197 = math.tanh %196 : vector<8x128xf32>
    %198 = arith.mulf %193, %197 : vector<8x128xf32>
    %199 = vector.extract_strided_slice %198 {offsets = [0, 0], sizes = [8, 64], strides = [1, 1]} : vector<8x128xf32> to vector<8x64xf32>
    %c56_64 = arith.constant 56 : index
    %c0_65 = arith.constant 0 : index
    %200 = vector.load %arg13[%c56_64, %c0_65] : memref<64x128xf32, #tpu.memory_space<vmem>>, vector<8x64xf32>
    tpu.vector_store %arg13[%c56_64, %c0_65], %199 {strides = array<i32>} : memref<64x128xf32, #tpu.memory_space<vmem>>, vector<8x64xf32>,
    %201 = vector.extract_strided_slice %198 {offsets = [0, 64], sizes = [8, 64], strides = [1, 1]} : vector<8x128xf32> to vector<8x64xf32>
    %c0_66 = arith.constant 0 : index
    %c64_67 = arith.constant 64 : index
    %202 = vector.load %arg13[%c0_66, %c64_67] : memref<64x128xf32, #tpu.memory_space<vmem>>, vector<8x64xf32>
    tpu.vector_store %arg13[%c0_66, %c64_67], %201 {strides = array<i32>} : memref<64x128xf32, #tpu.memory_space<vmem>>, vector<8x64xf32>,
    %c0_68 = arith.constant 0 : index
    %c0_69 = arith.constant 0 : index
    %203 = vector.load %arg13[%c0_68, %c0_69] : memref<64x128xf32, #tpu.memory_space<vmem>>, vector<64x128xf32>
    %204 = arith.truncf %203 : vector<64x128xf32> to vector<64x128xbf16>
    %c0_70 = arith.constant 0 : index
    %c0_71 = arith.constant 0 : index
    %205 = vector.load %arg5[%c0_70, %c0_71] : memref<128x256xbf16, #tpu.memory_space<vmem>>, vector<128x256xbf16>
    %cst_72 = arith.constant dense<0.000000e+00> : vector<64x256xf32>
    %206 = tpu.matmul %204, %205, %cst_72 {dimension_numbers = #tpu.dot_dimension_numbers<[1], [0], [0], [1], [0, 0, 1, 1], [], []>} : vector<64x128xbf16>, vector<128x256xbf16>, vector<64x256xf32> -> vector<64x256xf32>
    %c0_73 = arith.constant 0 : index
    %c0_74 = arith.constant 0 : index
    %207 = vector.load %arg7[%c0_73, %c0_74] : memref<1x256xf32, #tpu.memory_space<vmem>>, vector<1x256xf32>
    %208 = vector.broadcast %207 : vector<1x256xf32> to vector<64x256xf32>
    %209 = arith.addf %206, %208 : vector<64x256xf32>
    %c0_75 = arith.constant 0 : index
    %c0_76 = arith.constant 0 : index
    %210 = vector.load %arg15[%c0_75, %c0_76] : memref<64x256xf32, #tpu.memory_space<vmem>>, vector<64x256xf32>
    tpu.vector_store %arg15[%c0_75, %c0_76], %209 {strides = array<i32>} : memref<64x256xf32, #tpu.memory_space<vmem>>, vector<64x256xf32>,
    %c56_77 = arith.constant 56 : index
    %c0_78 = arith.constant 0 : index
    %211 = vector.load %arg13[%c56_77, %c0_78] : memref<64x128xf32, #tpu.memory_space<vmem>>, vector<8x128xf32>
    %212 = arith.truncf %211 : vector<8x128xf32> to vector<8x128xbf16>
    %c0_79 = arith.constant 0 : index
    %c0_80 = arith.constant 0 : index
    %213 = vector.load %arg8[%c0_79, %c0_80] : memref<128x256xbf16, #tpu.memory_space<vmem>>, vector<128x256xbf16>
    %cst_81 = arith.constant dense<0.000000e+00> : vector<8x256xf32>
    %214 = tpu.matmul %212, %213, %cst_81 {dimension_numbers = #tpu.dot_dimension_numbers<[1], [0], [0], [1], [0, 0, 1, 1], [], []>} : vector<8x128xbf16>, vector<128x256xbf16>, vector<8x256xf32> -> vector<8x256xf32>
    %c0_82 = arith.constant 0 : index
    %c0_83 = arith.constant 0 : index
    %215 = vector.load %arg9[%c0_82, %c0_83] : memref<1x256xf32, #tpu.memory_space<vmem>>, vector<1x256xf32>
    %216 = vector.broadcast %215 : vector<1x256xf32> to vector<8x256xf32>
    %217 = arith.addf %214, %216 : vector<8x256xf32>
    %cst_84 = arith.constant 0.000000e+00 : f32
    %218 = vector.broadcast %cst_84 : f32 to vector<8x64xf32>
    %219 = vector.extract_strided_slice %217 {offsets = [0, 0], sizes = [8, 192], strides = [1, 1]} : vector<8x256xf32> to vector<8x192xf32>
    %220 = arith.negf %219 : vector<8x192xf32>
    %221 = math.exp %220 : vector<8x192xf32>
    %cst_85 = arith.constant 1.000000e+00 : f32
    %222 = vector.broadcast %cst_85 : f32 to vector<8x192xf32>
    %223 = arith.addf %222, %221 : vector<8x192xf32>
    %224 = arith.divf %222, %223 : vector<8x192xf32>
    %225 = vector.extract_strided_slice %217 {offsets = [0, 192], sizes = [8, 64], strides = [1, 1]} : vector<8x256xf32> to vector<8x64xf32>
    %226 = math.tanh %225 : vector<8x64xf32>
    %227 = vector.extract_strided_slice %224 {offsets = [0, 0], sizes = [8, 64], strides = [1, 1]} : vector<8x192xf32> to vector<8x64xf32>
    %228 = vector.extract_strided_slice %224 {offsets = [0, 64], sizes = [8, 64], strides = [1, 1]} : vector<8x192xf32> to vector<8x64xf32>
    %229 = vector.extract_strided_slice %224 {offsets = [0, 128], sizes = [8, 64], strides = [1, 1]} : vector<8x192xf32> to vector<8x64xf32>
    %230 = arith.mulf %228, %218 : vector<8x64xf32>
    %231 = arith.mulf %227, %226 : vector<8x64xf32>
    %232 = arith.addf %230, %231 : vector<8x64xf32>
    %233 = math.tanh %232 : vector<8x64xf32>
    %234 = arith.mulf %229, %233 : vector<8x64xf32>
    %c0_86 = arith.constant 0 : index
    %c0_87 = arith.constant 0 : index
    %235 = vector.load %arg10[%c0_86, %c0_87] : memref<128x128xf32, #tpu.memory_space<vmem>>, vector<128x128xf32>
    %236 = vector.extract_strided_slice %235 {offsets = [64, 0], sizes = [64, 128], strides = [1, 1]} : vector<128x128xf32> to vector<64x128xf32>
    %cst_88 = arith.constant dense<0.000000e+00> : vector<8x128xf32>
    %237 = tpu.matmul %234, %236, %cst_88 {dimension_numbers = #tpu.dot_dimension_numbers<[1], [0], [0], [1], [0, 0, 1, 1], [], []>} : vector<8x64xf32>, vector<64x128xf32>, vector<8x128xf32> -> vector<8x128xf32>
    %c0_89 = arith.constant 0 : index
    %c0_90 = arith.constant 0 : index
    %238 = vector.load %arg11[%c0_89, %c0_90] : memref<1x128xf32, #tpu.memory_space<vmem>>, vector<1x128xf32>
    %239 = vector.broadcast %238 : vector<1x128xf32> to vector<8x128xf32>
    %240 = arith.addf %237, %239 : vector<8x128xf32>
    %c0_91 = arith.constant 0 : index
    %c0_92 = arith.constant 0 : index
    %241 = vector.load %arg6[%c0_91, %c0_92] : memref<64x256xbf16, #tpu.memory_space<vmem>>, vector<64x256xbf16>
    %cst_93 = arith.constant 0.000000e+00 : f32
    %242 = vector.broadcast %cst_93 : f32 to vector<8x64xf32>
    %cst_94 = arith.constant 0.000000e+00 : f32
    %243 = vector.broadcast %cst_94 : f32 to vector<8x64xf32>
    %c0_95 = arith.constant 0 : index
    %c0_96 = arith.constant 0 : index
    %244 = vector.load %arg15[%c0_95, %c0_96] : memref<64x256xf32, #tpu.memory_space<vmem>>, vector<8x256xf32>
    %245 = arith.truncf %242 : vector<8x64xf32> to vector<8x64xbf16>
    %cst_97 = arith.constant dense<0.000000e+00> : vector<8x256xf32>
    %246 = tpu.matmul %245, %241, %cst_97 {dimension_numbers = #tpu.dot_dimension_numbers<[1], [0], [0], [1], [0, 0, 1, 1], [], []>} : vector<8x64xbf16>, vector<64x256xbf16>, vector<8x256xf32> -> vector<8x256xf32>
    %247 = arith.addf %244, %246 : vector<8x256xf32>
    %248 = vector.extract_strided_slice %247 {offsets = [0, 0], sizes = [8, 192], strides = [1, 1]} : vector<8x256xf32> to vector<8x192xf32>
    %249 = arith.negf %248 : vector<8x192xf32>
    %250 = math.exp %249 : vector<8x192xf32>
    %cst_98 = arith.constant 1.000000e+00 : f32
    %251 = vector.broadcast %cst_98 : f32 to vector<8x192xf32>
    %252 = arith.addf %251, %250 : vector<8x192xf32>
    %253 = arith.divf %251, %252 : vector<8x192xf32>
    %254 = vector.extract_strided_slice %247 {offsets = [0, 192], sizes = [8, 64], strides = [1, 1]} : vector<8x256xf32> to vector<8x64xf32>
    %255 = math.tanh %254 : vector<8x64xf32>
    %256 = vector.extract_strided_slice %253 {offsets = [0, 0], sizes = [8, 64], strides = [1, 1]} : vector<8x192xf32> to vector<8x64xf32>
    %257 = vector.extract_strided_slice %253 {offsets = [0, 64], sizes = [8, 64], strides = [1, 1]} : vector<8x192xf32> to vector<8x64xf32>
    %258 = vector.extract_strided_slice %253 {offsets = [0, 128], sizes = [8, 64], strides = [1, 1]} : vector<8x192xf32> to vector<8x64xf32>
    %259 = arith.mulf %257, %243 : vector<8x64xf32>
    %260 = arith.mulf %256, %255 : vector<8x64xf32>
    %261 = arith.addf %259, %260 : vector<8x64xf32>
    %262 = math.tanh %261 : vector<8x64xf32>
    %263 = arith.mulf %258, %262 : vector<8x64xf32>
    %c8_99 = arith.constant 8 : index
    %c0_100 = arith.constant 0 : index
    %264 = vector.load %arg15[%c8_99, %c0_100] : memref<64x256xf32, #tpu.memory_space<vmem>>, vector<8x256xf32>
    %265 = arith.truncf %263 : vector<8x64xf32> to vector<8x64xbf16>
    %cst_101 = arith.constant dense<0.000000e+00> : vector<8x256xf32>
    %266 = tpu.matmul %265, %241, %cst_101 {dimension_numbers = #tpu.dot_dimension_numbers<[1], [0], [0], [1], [0, 0, 1, 1], [], []>} : vector<8x64xbf16>, vector<64x256xbf16>, vector<8x256xf32> -> vector<8x256xf32>
    %267 = arith.addf %264, %266 : vector<8x256xf32>
    %268 = vector.extract_strided_slice %267 {offsets = [0, 0], sizes = [8, 192], strides = [1, 1]} : vector<8x256xf32> to vector<8x192xf32>
    %269 = arith.negf %268 : vector<8x192xf32>
    %270 = math.exp %269 : vector<8x192xf32>
    %cst_102 = arith.constant 1.000000e+00 : f32
    %271 = vector.broadcast %cst_102 : f32 to vector<8x192xf32>
    %272 = arith.addf %271, %270 : vector<8x192xf32>
    %273 = arith.divf %271, %272 : vector<8x192xf32>
    %274 = vector.extract_strided_slice %267 {offsets = [0, 192], sizes = [8, 64], strides = [1, 1]} : vector<8x256xf32> to vector<8x64xf32>
    %275 = math.tanh %274 : vector<8x64xf32>
    %276 = vector.extract_strided_slice %273 {offsets = [0, 0], sizes = [8, 64], strides = [1, 1]} : vector<8x192xf32> to vector<8x64xf32>
    %277 = vector.extract_strided_slice %273 {offsets = [0, 64], sizes = [8, 64], strides = [1, 1]} : vector<8x192xf32> to vector<8x64xf32>
    %278 = vector.extract_strided_slice %273 {offsets = [0, 128], sizes = [8, 64], strides = [1, 1]} : vector<8x192xf32> to vector<8x64xf32>
    %279 = arith.mulf %277, %261 : vector<8x64xf32>
    %280 = arith.mulf %276, %275 : vector<8x64xf32>
    %281 = arith.addf %279, %280 : vector<8x64xf32>
    %282 = math.tanh %281 : vector<8x64xf32>
    %283 = arith.mulf %278, %282 : vector<8x64xf32>
    %c16_103 = arith.constant 16 : index
    %c0_104 = arith.constant 0 : index
    %284 = vector.load %arg15[%c16_103, %c0_104] : memref<64x256xf32, #tpu.memory_space<vmem>>, vector<8x256xf32>
    %285 = arith.truncf %283 : vector<8x64xf32> to vector<8x64xbf16>
    %cst_105 = arith.constant dense<0.000000e+00> : vector<8x256xf32>
    %286 = tpu.matmul %285, %241, %cst_105 {dimension_numbers = #tpu.dot_dimension_numbers<[1], [0], [0], [1], [0, 0, 1, 1], [], []>} : vector<8x64xbf16>, vector<64x256xbf16>, vector<8x256xf32> -> vector<8x256xf32>
    %287 = arith.addf %284, %286 : vector<8x256xf32>
    %288 = vector.extract_strided_slice %287 {offsets = [0, 0], sizes = [8, 192], strides = [1, 1]} : vector<8x256xf32> to vector<8x192xf32>
    %289 = arith.negf %288 : vector<8x192xf32>
    %290 = math.exp %289 : vector<8x192xf32>
    %cst_106 = arith.constant 1.000000e+00 : f32
    %291 = vector.broadcast %cst_106 : f32 to vector<8x192xf32>
    %292 = arith.addf %291, %290 : vector<8x192xf32>
    %293 = arith.divf %291, %292 : vector<8x192xf32>
    %294 = vector.extract_strided_slice %287 {offsets = [0, 192], sizes = [8, 64], strides = [1, 1]} : vector<8x256xf32> to vector<8x64xf32>
    %295 = math.tanh %294 : vector<8x64xf32>
    %296 = vector.extract_strided_slice %293 {offsets = [0, 0], sizes = [8, 64], strides = [1, 1]} : vector<8x192xf32> to vector<8x64xf32>
    %297 = vector.extract_strided_slice %293 {offsets = [0, 64], sizes = [8, 64], strides = [1, 1]} : vector<8x192xf32> to vector<8x64xf32>
    %298 = vector.extract_strided_slice %293 {offsets = [0, 128], sizes = [8, 64], strides = [1, 1]} : vector<8x192xf32> to vector<8x64xf32>
    %299 = arith.mulf %297, %281 : vector<8x64xf32>
    %300 = arith.mulf %296, %295 : vector<8x64xf32>
    %301 = arith.addf %299, %300 : vector<8x64xf32>
    %302 = math.tanh %301 : vector<8x64xf32>
    %303 = arith.mulf %298, %302 : vector<8x64xf32>
    %c24_107 = arith.constant 24 : index
    %c0_108 = arith.constant 0 : index
    %304 = vector.load %arg15[%c24_107, %c0_108] : memref<64x256xf32, #tpu.memory_space<vmem>>, vector<8x256xf32>
    %305 = arith.truncf %303 : vector<8x64xf32> to vector<8x64xbf16>
    %cst_109 = arith.constant dense<0.000000e+00> : vector<8x256xf32>
    %306 = tpu.matmul %305, %241, %cst_109 {dimension_numbers = #tpu.dot_dimension_numbers<[1], [0], [0], [1], [0, 0, 1, 1], [], []>} : vector<8x64xbf16>, vector<64x256xbf16>, vector<8x256xf32> -> vector<8x256xf32>
    %307 = arith.addf %304, %306 : vector<8x256xf32>
    %308 = vector.extract_strided_slice %307 {offsets = [0, 0], sizes = [8, 192], strides = [1, 1]} : vector<8x256xf32> to vector<8x192xf32>
    %309 = arith.negf %308 : vector<8x192xf32>
    %310 = math.exp %309 : vector<8x192xf32>
    %cst_110 = arith.constant 1.000000e+00 : f32
    %311 = vector.broadcast %cst_110 : f32 to vector<8x192xf32>
    %312 = arith.addf %311, %310 : vector<8x192xf32>
    %313 = arith.divf %311, %312 : vector<8x192xf32>
    %314 = vector.extract_strided_slice %307 {offsets = [0, 192], sizes = [8, 64], strides = [1, 1]} : vector<8x256xf32> to vector<8x64xf32>
    %315 = math.tanh %314 : vector<8x64xf32>
    %316 = vector.extract_strided_slice %313 {offsets = [0, 0], sizes = [8, 64], strides = [1, 1]} : vector<8x192xf32> to vector<8x64xf32>
    %317 = vector.extract_strided_slice %313 {offsets = [0, 64], sizes = [8, 64], strides = [1, 1]} : vector<8x192xf32> to vector<8x64xf32>
    %318 = vector.extract_strided_slice %313 {offsets = [0, 128], sizes = [8, 64], strides = [1, 1]} : vector<8x192xf32> to vector<8x64xf32>
    %319 = arith.mulf %317, %301 : vector<8x64xf32>
    %320 = arith.mulf %316, %315 : vector<8x64xf32>
    %321 = arith.addf %319, %320 : vector<8x64xf32>
    %322 = math.tanh %321 : vector<8x64xf32>
    %323 = arith.mulf %318, %322 : vector<8x64xf32>
    %c32_111 = arith.constant 32 : index
    %c0_112 = arith.constant 0 : index
    %324 = vector.load %arg15[%c32_111, %c0_112] : memref<64x256xf32, #tpu.memory_space<vmem>>, vector<8x256xf32>
    %325 = arith.truncf %323 : vector<8x64xf32> to vector<8x64xbf16>
    %cst_113 = arith.constant dense<0.000000e+00> : vector<8x256xf32>
    %326 = tpu.matmul %325, %241, %cst_113 {dimension_numbers = #tpu.dot_dimension_numbers<[1], [0], [0], [1], [0, 0, 1, 1], [], []>} : vector<8x64xbf16>, vector<64x256xbf16>, vector<8x256xf32> -> vector<8x256xf32>
    %327 = arith.addf %324, %326 : vector<8x256xf32>
    %328 = vector.extract_strided_slice %327 {offsets = [0, 0], sizes = [8, 192], strides = [1, 1]} : vector<8x256xf32> to vector<8x192xf32>
    %329 = arith.negf %328 : vector<8x192xf32>
    %330 = math.exp %329 : vector<8x192xf32>
    %cst_114 = arith.constant 1.000000e+00 : f32
    %331 = vector.broadcast %cst_114 : f32 to vector<8x192xf32>
    %332 = arith.addf %331, %330 : vector<8x192xf32>
    %333 = arith.divf %331, %332 : vector<8x192xf32>
    %334 = vector.extract_strided_slice %327 {offsets = [0, 192], sizes = [8, 64], strides = [1, 1]} : vector<8x256xf32> to vector<8x64xf32>
    %335 = math.tanh %334 : vector<8x64xf32>
    %336 = vector.extract_strided_slice %333 {offsets = [0, 0], sizes = [8, 64], strides = [1, 1]} : vector<8x192xf32> to vector<8x64xf32>
    %337 = vector.extract_strided_slice %333 {offsets = [0, 64], sizes = [8, 64], strides = [1, 1]} : vector<8x192xf32> to vector<8x64xf32>
    %338 = vector.extract_strided_slice %333 {offsets = [0, 128], sizes = [8, 64], strides = [1, 1]} : vector<8x192xf32> to vector<8x64xf32>
    %339 = arith.mulf %337, %321 : vector<8x64xf32>
    %340 = arith.mulf %336, %335 : vector<8x64xf32>
    %341 = arith.addf %339, %340 : vector<8x64xf32>
    %342 = math.tanh %341 : vector<8x64xf32>
    %343 = arith.mulf %338, %342 : vector<8x64xf32>
    %c40_115 = arith.constant 40 : index
    %c0_116 = arith.constant 0 : index
    %344 = vector.load %arg15[%c40_115, %c0_116] : memref<64x256xf32, #tpu.memory_space<vmem>>, vector<8x256xf32>
    %345 = arith.truncf %343 : vector<8x64xf32> to vector<8x64xbf16>
    %cst_117 = arith.constant dense<0.000000e+00> : vector<8x256xf32>
    %346 = tpu.matmul %345, %241, %cst_117 {dimension_numbers = #tpu.dot_dimension_numbers<[1], [0], [0], [1], [0, 0, 1, 1], [], []>} : vector<8x64xbf16>, vector<64x256xbf16>, vector<8x256xf32> -> vector<8x256xf32>
    %347 = arith.addf %344, %346 : vector<8x256xf32>
    %348 = vector.extract_strided_slice %347 {offsets = [0, 0], sizes = [8, 192], strides = [1, 1]} : vector<8x256xf32> to vector<8x192xf32>
    %349 = arith.negf %348 : vector<8x192xf32>
    %350 = math.exp %349 : vector<8x192xf32>
    %cst_118 = arith.constant 1.000000e+00 : f32
    %351 = vector.broadcast %cst_118 : f32 to vector<8x192xf32>
    %352 = arith.addf %351, %350 : vector<8x192xf32>
    %353 = arith.divf %351, %352 : vector<8x192xf32>
    %354 = vector.extract_strided_slice %347 {offsets = [0, 192], sizes = [8, 64], strides = [1, 1]} : vector<8x256xf32> to vector<8x64xf32>
    %355 = math.tanh %354 : vector<8x64xf32>
    %356 = vector.extract_strided_slice %353 {offsets = [0, 0], sizes = [8, 64], strides = [1, 1]} : vector<8x192xf32> to vector<8x64xf32>
    %357 = vector.extract_strided_slice %353 {offsets = [0, 64], sizes = [8, 64], strides = [1, 1]} : vector<8x192xf32> to vector<8x64xf32>
    %358 = vector.extract_strided_slice %353 {offsets = [0, 128], sizes = [8, 64], strides = [1, 1]} : vector<8x192xf32> to vector<8x64xf32>
    %359 = arith.mulf %357, %341 : vector<8x64xf32>
    %360 = arith.mulf %356, %355 : vector<8x64xf32>
    %361 = arith.addf %359, %360 : vector<8x64xf32>
    %362 = math.tanh %361 : vector<8x64xf32>
    %363 = arith.mulf %358, %362 : vector<8x64xf32>
    %c48_119 = arith.constant 48 : index
    %c0_120 = arith.constant 0 : index
    %364 = vector.load %arg15[%c48_119, %c0_120] : memref<64x256xf32, #tpu.memory_space<vmem>>, vector<8x256xf32>
    %365 = arith.truncf %363 : vector<8x64xf32> to vector<8x64xbf16>
    %cst_121 = arith.constant dense<0.000000e+00> : vector<8x256xf32>
    %366 = tpu.matmul %365, %241, %cst_121 {dimension_numbers = #tpu.dot_dimension_numbers<[1], [0], [0], [1], [0, 0, 1, 1], [], []>} : vector<8x64xbf16>, vector<64x256xbf16>, vector<8x256xf32> -> vector<8x256xf32>
    %367 = arith.addf %364, %366 : vector<8x256xf32>
    %368 = vector.extract_strided_slice %367 {offsets = [0, 0], sizes = [8, 192], strides = [1, 1]} : vector<8x256xf32> to vector<8x192xf32>
    %369 = arith.negf %368 : vector<8x192xf32>
    %370 = math.exp %369 : vector<8x192xf32>
    %cst_122 = arith.constant 1.000000e+00 : f32
    %371 = vector.broadcast %cst_122 : f32 to vector<8x192xf32>
    %372 = arith.addf %371, %370 : vector<8x192xf32>
    %373 = arith.divf %371, %372 : vector<8x192xf32>
    %374 = vector.extract_strided_slice %367 {offsets = [0, 192], sizes = [8, 64], strides = [1, 1]} : vector<8x256xf32> to vector<8x64xf32>
    %375 = math.tanh %374 : vector<8x64xf32>
    %376 = vector.extract_strided_slice %373 {offsets = [0, 0], sizes = [8, 64], strides = [1, 1]} : vector<8x192xf32> to vector<8x64xf32>
    %377 = vector.extract_strided_slice %373 {offsets = [0, 64], sizes = [8, 64], strides = [1, 1]} : vector<8x192xf32> to vector<8x64xf32>
    %378 = vector.extract_strided_slice %373 {offsets = [0, 128], sizes = [8, 64], strides = [1, 1]} : vector<8x192xf32> to vector<8x64xf32>
    %379 = arith.mulf %377, %361 : vector<8x64xf32>
    %380 = arith.mulf %376, %375 : vector<8x64xf32>
    %381 = arith.addf %379, %380 : vector<8x64xf32>
    %382 = math.tanh %381 : vector<8x64xf32>
    %383 = arith.mulf %378, %382 : vector<8x64xf32>
    %c56_123 = arith.constant 56 : index
    %c0_124 = arith.constant 0 : index
    %384 = vector.load %arg15[%c56_123, %c0_124] : memref<64x256xf32, #tpu.memory_space<vmem>>, vector<8x256xf32>
    %385 = arith.truncf %383 : vector<8x64xf32> to vector<8x64xbf16>
    %cst_125 = arith.constant dense<0.000000e+00> : vector<8x256xf32>
    %386 = tpu.matmul %385, %241, %cst_125 {dimension_numbers = #tpu.dot_dimension_numbers<[1], [0], [0], [1], [0, 0, 1, 1], [], []>} : vector<8x64xbf16>, vector<64x256xbf16>, vector<8x256xf32> -> vector<8x256xf32>
    %387 = arith.addf %384, %386 : vector<8x256xf32>
    %388 = vector.extract_strided_slice %387 {offsets = [0, 0], sizes = [8, 192], strides = [1, 1]} : vector<8x256xf32> to vector<8x192xf32>
    %389 = arith.negf %388 : vector<8x192xf32>
    %390 = math.exp %389 : vector<8x192xf32>
    %cst_126 = arith.constant 1.000000e+00 : f32
    %391 = vector.broadcast %cst_126 : f32 to vector<8x192xf32>
    %392 = arith.addf %391, %390 : vector<8x192xf32>
    %393 = arith.divf %391, %392 : vector<8x192xf32>
    %394 = vector.extract_strided_slice %387 {offsets = [0, 192], sizes = [8, 64], strides = [1, 1]} : vector<8x256xf32> to vector<8x64xf32>
    %395 = math.tanh %394 : vector<8x64xf32>
    %396 = vector.extract_strided_slice %393 {offsets = [0, 0], sizes = [8, 64], strides = [1, 1]} : vector<8x192xf32> to vector<8x64xf32>
    %397 = vector.extract_strided_slice %393 {offsets = [0, 64], sizes = [8, 64], strides = [1, 1]} : vector<8x192xf32> to vector<8x64xf32>
    %398 = vector.extract_strided_slice %393 {offsets = [0, 128], sizes = [8, 64], strides = [1, 1]} : vector<8x192xf32> to vector<8x64xf32>
    %399 = arith.mulf %397, %381 : vector<8x64xf32>
    %400 = arith.mulf %396, %395 : vector<8x64xf32>
    %401 = arith.addf %399, %400 : vector<8x64xf32>
    %402 = math.tanh %401 : vector<8x64xf32>
    %403 = arith.mulf %398, %402 : vector<8x64xf32>
    %404 = vector.extract_strided_slice %235 {offsets = [0, 0], sizes = [64, 128], strides = [1, 1]} : vector<128x128xf32> to vector<64x128xf32>
    %cst_127 = arith.constant dense<0.000000e+00> : vector<8x128xf32>
    %405 = tpu.matmul %403, %404, %cst_127 {dimension_numbers = #tpu.dot_dimension_numbers<[1], [0], [0], [1], [0, 0, 1, 1], [], []>} : vector<8x64xf32>, vector<64x128xf32>, vector<8x128xf32> -> vector<8x128xf32>
    %406 = arith.addf %240, %405 : vector<8x128xf32>
    %c0_128 = arith.constant 0 : index
    %c0_129 = arith.constant 0 : index
    %407 = vector.load %arg12[%c0_128, %c0_129] : memref<8x128xf32, #tpu.memory_space<vmem>>, vector<8x128xf32>
    tpu.vector_store %arg12[%c0_128, %c0_129], %406 {strides = array<i32>} : memref<8x128xf32, #tpu.memory_space<vmem>>, vector<8x128xf32>,
    return
  }
  func.func @transform_0(%arg0: i32) -> (i32, i32, i32) {
    %c0_i32 = arith.constant 0 : i32
    %c0_i32_0 = arith.constant 0 : i32
    %c0_i32_1 = arith.constant 0 : i32
    return %c0_i32, %arg0, %c0_i32_0 : i32, i32, i32
  }
  func.func @transform_1(%arg0: i32) -> (i32, i32) {
    %c0_i32 = arith.constant 0 : i32
    %c0_i32_0 = arith.constant 0 : i32
    %c0_i32_1 = arith.constant 0 : i32
    return %c0_i32, %c0_i32_0 : i32, i32
  }
  func.func @transform_2(%arg0: i32) -> (i32, i32) {
    %c0_i32 = arith.constant 0 : i32
    %c0_i32_0 = arith.constant 0 : i32
    %c0_i32_1 = arith.constant 0 : i32
    return %c0_i32, %c0_i32_0 : i32, i32
  }
  func.func @transform_3(%arg0: i32) -> (i32, i32) {
    %c0_i32 = arith.constant 0 : i32
    %c0_i32_0 = arith.constant 0 : i32
    %c0_i32_1 = arith.constant 0 : i32
    return %c0_i32, %c0_i32_0 : i32, i32
  }
  func.func @transform_4(%arg0: i32) -> (i32, i32) {
    %c0_i32 = arith.constant 0 : i32
    %c0_i32_0 = arith.constant 0 : i32
    %c0_i32_1 = arith.constant 0 : i32
    return %c0_i32, %c0_i32_0 : i32, i32
  }
  func.func @transform_5(%arg0: i32) -> (i32, i32) {
    %c0_i32 = arith.constant 0 : i32
    %c0_i32_0 = arith.constant 0 : i32
    %c0_i32_1 = arith.constant 0 : i32
    return %c0_i32, %c0_i32_0 : i32, i32
  }
  func.func @transform_6(%arg0: i32) -> (i32, i32) {
    %c0_i32 = arith.constant 0 : i32
    %c0_i32_0 = arith.constant 0 : i32
    %c0_i32_1 = arith.constant 0 : i32
    return %c0_i32, %c0_i32_0 : i32, i32
  }
  func.func @transform_7(%arg0: i32) -> (i32, i32) {
    %c0_i32 = arith.constant 0 : i32
    %c0_i32_0 = arith.constant 0 : i32
    %c0_i32_1 = arith.constant 0 : i32
    return %c0_i32, %c0_i32_0 : i32, i32
  }
  func.func @transform_8(%arg0: i32) -> (i32, i32) {
    %c0_i32 = arith.constant 0 : i32
    %c0_i32_0 = arith.constant 0 : i32
    %c0_i32_1 = arith.constant 0 : i32
    return %c0_i32, %c0_i32_0 : i32, i32
  }
  func.func @transform_9(%arg0: i32) -> (i32, i32) {
    %c0_i32 = arith.constant 0 : i32
    %c0_i32_0 = arith.constant 0 : i32
    %c0_i32_1 = arith.constant 0 : i32
    return %c0_i32, %c0_i32_0 : i32, i32
  }
  func.func @transform_10(%arg0: i32) -> (i32, i32) {
    %c0_i32 = arith.constant 0 : i32
    %c0_i32_0 = arith.constant 0 : i32
    %c0_i32_1 = arith.constant 0 : i32
    return %c0_i32, %c0_i32_0 : i32, i32
  }
  func.func @transform_11(%arg0: i32) -> (i32, i32) {
    %c0_i32 = arith.constant 0 : i32
    %c0_i32_0 = arith.constant 0 : i32
    return %arg0, %c0_i32 : i32, i32
  }
}

</mosaic_0001>

<llo_original>
// kernel: tpu_custom_call.1
$region0: #{tpu_custom_call.1}
  #allocation0 [shape = 'u32[]', space=smem, size = 0x4, offset = 0x4, fixed_abs, tag = 'smem constant byte address 0x4 - core index']
  #allocation1 [shape = 'u32[144,128]{1,0:T(1,128)}', space=vmem, size = 0x12000, scoped, tag = 'internal scratch']
  #allocation2 [shape = 'f32[64,128]{1,0:T(8,128)}', space=vmem, size = 0x8000, scoped, tag = 'scratch operand']
  #allocation3 [shape = 'f32[64,512]{1,0:T(8,128)}', space=vmem, size = 0x20000, scoped, tag = 'scratch operand']
  #allocation4 [shape = 'f32[64,256]{1,0:T(8,128)}', space=vmem, size = 0x10000, scoped, tag = 'scratch operand']
  %s0 = inlined_call_operand.hbm [shape: f32[8,8,32], index: 0, kind: input, shape index: {}]
  %s1 = inlined_call_operand.hbm [shape: f32[32,512], index: 1, kind: input, shape index: {}]
  %s2 = inlined_call_operand.hbm [shape: bf16[128,512], index: 2, kind: input, shape index: {}]
  %s3 = inlined_call_operand.vmem [shape: f32[1,512], index: 3, kind: input, shape index: {}]
  %s4 = inlined_call_operand.hbm [shape: bf16[128,256], index: 4, kind: input, shape index: {}]
  %s5 = inlined_call_operand.hbm [shape: bf16[64,256], index: 5, kind: input, shape index: {}]
  %s6 = inlined_call_operand.vmem [shape: f32[1,256], index: 6, kind: input, shape index: {}]
  %s7 = inlined_call_operand.hbm [shape: bf16[128,256], index: 7, kind: input, shape index: {}]
  %s8 = inlined_call_operand.vmem [shape: f32[1,256], index: 8, kind: input, shape index: {}]
  %s9 = inlined_call_operand.hbm [shape: f32[128,128], index: 9, kind: input, shape index: {}]
  %s10 = inlined_call_operand.vmem [shape: f32[1,128], index: 10, kind: input, shape index: {}]
  %s11 = inlined_call_operand.hbm [shape: f32[8,128], index: 11, kind: output, shape index: {}]
  %s12 = sld [smem:[#allocation0]]
  $region82: #{tpu_custom_call.1} parent=0
    _
  %s14 = ssub.s32 1, %s12
  %s15 = scalar_select 0, %s14, %s12
  $region1: #{tpu_custom_call.1} parent=0
    #allocation5 [shape = 'u8[32768]{0}', space=vmem, size = 0x8000, scoped, tag = 'input window, operand 0, single buffered']
    #allocation6 [shape = 's32[1]{0}', space=sflag, size = 0x4, scoped, tag = 'scoped memory for tpu_custom_call.1']
    #allocation7 [shape = 's32[1]{0}', space=sflag, size = 0x4, scoped, tag = 'scoped memory for tpu_custom_call.1']
    #allocation8 [shape = 'u8[65536]{0}', space=vmem, size = 0x10000, scoped, tag = 'input window, operand 1, single buffered']
    #allocation9 [shape = 's32[1]{0}', space=sflag, size = 0x4, scoped, tag = 'scoped memory for tpu_custom_call.1']
    #allocation10 [shape = 'u8[131072]{0}', space=vmem, size = 0x20000, scoped, tag = 'input window, operand 2, single buffered']
    #allocation11 [shape = 'u8[65536]{0}', space=vmem, size = 0x10000, scoped, tag = 'input window, operand 4, single buffered']
    #allocation12 [shape = 's32[1]{0}', space=sflag, size = 0x4, scoped, tag = 'scoped memory for tpu_custom_call.1']
    #allocation13 [shape = 'u8[32768]{0}', space=vmem, size = 0x8000, scoped, tag = 'input window, operand 5, single buffered']
    #allocation14 [shape = 'u8[65536]{0}', space=vmem, size = 0x10000, scoped, tag = 'input window, operand 7, single buffered']
    #allocation15 [shape = 's32[1]{0}', space=sflag, size = 0x4, scoped, tag = 'scoped memory for tpu_custom_call.1']
    #allocation16 [shape = 'u8[65536]{0}', space=vmem, size = 0x10000, scoped, tag = 'input window, operand 9, single buffered']
    #allocation17 [shape = 'u8[4096]{0}', space=vmem, size = 0x1000, scoped, tag = 'output window, operand 0, single buffered']
    %16 = vsyncpa [#allocation6], 0
    %17 = vsyncpa [#allocation9], 0
    %18 = vsyncpa [#allocation12], 0
    %19 = vsyncpa [#allocation15], 0
    %20 = vsyncpa [#allocation7], 0
    // Predicated region
    $region2: #{tpu_custom_call.1} parent=1 // pred_check
      _
    $region3: #{tpu_custom_call.1} parent=1 // pred_check_branch
      %22 = sbr.rel (0) target = $region5
    $region4: #{tpu_custom_call.1} parent=1 // pred_region
      %s24 = ssub.s32 1024, 1024
      %25 = vsyncadd [#allocation6], %s24
      %s26 = sshll.u32 [#allocation5], 4
      %s27 = int_to_ptr.vmem [resolvable:$true] %s26
      %32 = dma.hbm_to_vmem [thread:$0]  %s0, 1024, %s27, [#allocation6], 128, 128, 8
    $region5: #{tpu_custom_call.1} parent=1 // pred_fallthru
      _
    // Predicated region
    $region6: #{tpu_custom_call.1} parent=1 // pred_check
      _
    $region7: #{tpu_custom_call.1} parent=1 // pred_check_branch
      %34 = sbr.rel (0) target = $region9
    $region8: #{tpu_custom_call.1} parent=1 // pred_region
      %s36 = ssub.s32 2048, 2048
      %37 = vsyncadd [#allocation9], %s36
      %s38 = sshll.u32 [#allocation8], 4
      %s39 = int_to_ptr.vmem [resolvable:$true] %s38
      %44 = dma.hbm_to_vmem [thread:$0]  %s1, 2048, %s39, [#allocation9], 512, 512, 32
    $region9: #{tpu_custom_call.1} parent=1 // pred_fallthru
      _
    // Predicated region
    $region10: #{tpu_custom_call.1} parent=1 // pred_check
      _
    $region11: #{tpu_custom_call.1} parent=1 // pred_check_branch
      %46 = sbr.rel (0) target = $region13
    $region12: #{tpu_custom_call.1} parent=1 // pred_region
      %s48 = ssub.s32 4096, 4096
      %49 = vsyncadd [#allocation9], %s48
      %s50 = sshll.u32 [#allocation10], 4
      %s51 = int_to_ptr.vmem [resolvable:$true] %s50
      %56 = dma.hbm_to_vmem [thread:$0]  %s2, 4096, %s51, [#allocation9], 256, 256, 16
    $region13: #{tpu_custom_call.1} parent=1 // pred_fallthru
      _
    // Predicated region
    $region14: #{tpu_custom_call.1} parent=1 // pred_check
      _
    $region15: #{tpu_custom_call.1} parent=1 // pred_check_branch
      %58 = sbr.rel (0) target = $region17
    $region16: #{tpu_custom_call.1} parent=1 // pred_region
      _
    $region17: #{tpu_custom_call.1} parent=1 // pred_fallthru
      _
    // Predicated region
    $region18: #{tpu_custom_call.1} parent=1 // pred_check
      _
    $region19: #{tpu_custom_call.1} parent=1 // pred_check_branch
      %60 = sbr.rel (0) target = $region21
    $region20: #{tpu_custom_call.1} parent=1 // pred_region
      %s62 = ssub.s32 2048, 2048
      %63 = vsyncadd [#allocation12], %s62
      %s64 = sshll.u32 [#allocation11], 4
      %s65 = int_to_ptr.vmem [resolvable:$true] %s64
      %70 = dma.hbm_to_vmem [thread:$0]  %s4, 2048, %s65, [#allocation12], 128, 128, 8
    $region21: #{tpu_custom_call.1} parent=1 // pred_fallthru
      _
    // Predicated region
    $region22: #{tpu_custom_call.1} parent=1 // pred_check
      _
    $region23: #{tpu_custom_call.1} parent=1 // pred_check_branch
      %72 = sbr.rel (0) target = $region25
    $region24: #{tpu_custom_call.1} parent=1 // pred_region
      %s74 = ssub.s32 1024, 1024
      %75 = vsyncadd [#allocation12], %s74
      %s76 = sshll.u32 [#allocation13], 4
      %s77 = int_to_ptr.vmem [resolvable:$true] %s76
      %82 = dma.hbm_to_vmem [thread:$0]  %s5, 1024, %s77, [#allocation12], 128, 128, 8
    $region25: #{tpu_custom_call.1} parent=1 // pred_fallthru
      _
    // Predicated region
    $region26: #{tpu_custom_call.1} parent=1 // pred_check
      _
    $region27: #{tpu_custom_call.1} parent=1 // pred_check_branch
      %84 = sbr.rel (0) target = $region29
    $region28: #{tpu_custom_call.1} parent=1 // pred_region
      _
    $region29: #{tpu_custom_call.1} parent=1 // pred_fallthru
      _
    // Predicated region
    $region30: #{tpu_custom_call.1} parent=1 // pred_check
      _
    $region31: #{tpu_custom_call.1} parent=1 // pred_check_branch
      %86 = sbr.rel (0) target = $region33
    $region32: #{tpu_custom_call.1} parent=1 // pred_region
      %s88 = ssub.s32 2048, 2048
      %89 = vsyncadd [#allocation15], %s88
      %s90 = sshll.u32 [#allocation14], 4
      %s91 = int_to_ptr.vmem [resolvable:$true] %s90
      %96 = dma.hbm_to_vmem [thread:$0]  %s7, 2048, %s91, [#allocation15], 128, 128, 8
    $region33: #{tpu_custom_call.1} parent=1 // pred_fallthru
      _
    // Predicated region
    $region34: #{tpu_custom_call.1} parent=1 // pred_check
      _
    $region35: #{tpu_custom_call.1} parent=1 // pred_check_branch
      %98 = sbr.rel (0) target = $region37
    $region36: #{tpu_custom_call.1} parent=1 // pred_region
      _
    $region37: #{tpu_custom_call.1} parent=1 // pred_fallthru
      _
    // Predicated region
    $region38: #{tpu_custom_call.1} parent=1 // pred_check
      _
    $region39: #{tpu_custom_call.1} parent=1 // pred_check_branch
      %100 = sbr.rel (0) target = $region41
    $region40: #{tpu_custom_call.1} parent=1 // pred_region
      %s102 = ssub.s32 2048, 2048
      %103 = vsyncadd [#allocation15], %s102
      %s104 = sshll.u32 [#allocation16], 4
      %s105 = int_to_ptr.vmem [resolvable:$true] %s104
      %110 = dma.hbm_to_vmem [thread:$0]  %s9, 2048, %s105, [#allocation15], 128, 128, 8
    $region41: #{tpu_custom_call.1} parent=1 // pred_fallthru
      _
    // Predicated region
    $region42: #{tpu_custom_call.1} parent=1 // pred_check
      _
    $region43: #{tpu_custom_call.1} parent=1 // pred_check_branch
      %112 = sbr.rel (0) target = $region45
    $region44: #{tpu_custom_call.1} parent=1 // pred_region
      _
    $region45: #{tpu_custom_call.1} parent=1 // pred_fallthru
      _
    // Predicated region
    $region46: #{tpu_custom_call.1} parent=1 // pred_check
      _
    $region47: #{tpu_custom_call.1} parent=1 // pred_check_branch
      %114 = sbr.rel (0) target = $region49
    $region48: #{tpu_custom_call.1} parent=1 // pred_region
      %115 = dma.done [#allocation6], 1024
    $region49: #{tpu_custom_call.1} parent=1 // pred_fallthru
      _
    // Predicated region
    $region50: #{tpu_custom_call.1} parent=1 // pred_check
      _
    $region51: #{tpu_custom_call.1} parent=1 // pred_check_branch
      %117 = sbr.rel (0) target = $region53
    $region52: #{tpu_custom_call.1} parent=1 // pred_region
      %118 = dma.done [#allocation9], 2048
    $region53: #{tpu_custom_call.1} parent=1 // pred_fallthru
      _
    // Predicated region
    $region54: #{tpu_custom_call.1} parent=1 // pred_check
      _
    $region55: #{tpu_custom_call.1} parent=1 // pred_check_branch
      %120 = sbr.rel (0) target = $region57
    $region56: #{tpu_custom_call.1} parent=1 // pred_region
      %121 = dma.done [#allocation9], 4096
    $region57: #{tpu_custom_call.1} parent=1 // pred_fallthru
      _
    // Predicated region
    $region58: #{tpu_custom_call.1} parent=1 // pred_check
      _
    $region59: #{tpu_custom_call.1} parent=1 // pred_check_branch
      %123 = sbr.rel (0) target = $region61
    $region60: #{tpu_custom_call.1} parent=1 // pred_region
      %124 = dma.done [#allocation12], 2048
    $region61: #{tpu_custom_call.1} parent=1 // pred_fallthru
      _
    // Predicated region
    $region62: #{tpu_custom_call.1} parent=1 // pred_check
      _
    $region63: #{tpu_custom_call.1} parent=1 // pred_check_branch
      %126 = sbr.rel (0) target = $region65
    $region64: #{tpu_custom_call.1} parent=1 // pred_region
      %127 = dma.done [#allocation12], 1024
    $region65: #{tpu_custom_call.1} parent=1 // pred_fallthru
      _
    // Predicated region
    $region66: #{tpu_custom_call.1} parent=1 // pred_check
      _
    $region67: #{tpu_custom_call.1} parent=1 // pred_check_branch
      %129 = sbr.rel (0) target = $region69
    $region68: #{tpu_custom_call.1} parent=1 // pred_region
      %130 = dma.done [#allocation15], 2048
    $region69: #{tpu_custom_call.1} parent=1 // pred_fallthru
      _
    // Predicated region
    $region70: #{tpu_custom_call.1} parent=1 // pred_check
      _
    $region71: #{tpu_custom_call.1} parent=1 // pred_check_branch
      %132 = sbr.rel (0) target = $region73
    $region72: #{tpu_custom_call.1} parent=1 // pred_region
      %133 = dma.done [#allocation15], 2048
    $region73: #{tpu_custom_call.1} parent=1 // pred_fallthru
      _
    %v135 = vld [vmem:[#allocation5] sm:$0xff]
    %v136 = vld [vmem:[#allocation5 + $0x8] sm:$0xff]
    %v137 = vld [vmem:[#allocation5 + $0x10] sm:$0xff]
    %v138 = vld [vmem:[#allocation5 + $0x18] sm:$0xff]
    %v139 = vld [vmem:[#allocation5 + $0x20] sm:$0xff]
    %v140 = vld [vmem:[#allocation5 + $0x28] sm:$0xff]
    %v141 = vld [vmem:[#allocation5 + $0x30] sm:$0xff]
    %v142 = vld [vmem:[#allocation5 + $0x38] sm:$0xff]
    %v143 = vld [vmem:[#allocation8] sm:$0xff]
    %v144 = vld [vmem:[#allocation8 + $0x8] sm:$0xff]
    %v145 = vld [vmem:[#allocation8 + $0x10] sm:$0xff]
    %v146 = vld [vmem:[#allocation8 + $0x18] sm:$0xff]
    %v147 = vld [vmem:[#allocation8 + $0x20] sm:$0xff]
    %v148 = vld [vmem:[#allocation8 + $0x28] sm:$0xff]
    %v149 = vld [vmem:[#allocation8 + $0x30] sm:$0xff]
    %v150 = vld [vmem:[#allocation8 + $0x38] sm:$0xff]
    %v151 = vld [vmem:[#allocation8 + $0x40] sm:$0xff]
    %v152 = vld [vmem:[#allocation8 + $0x48] sm:$0xff]
    %v153 = vld [vmem:[#allocation8 + $0x50] sm:$0xff]
    %v154 = vld [vmem:[#allocation8 + $0x58] sm:$0xff]
    %v155 = vld [vmem:[#allocation8 + $0x60] sm:$0xff]
    %v156 = vld [vmem:[#allocation8 + $0x68] sm:$0xff]
    %v157 = vld [vmem:[#allocation8 + $0x70] sm:$0xff]
    %v158 = vld [vmem:[#allocation8 + $0x78] sm:$0xff]
    %v159 = vld [vmem:[%s3] sm:$0xf]
    %v161 = vlaneseq
    %v162 = vshrl.u32 %v161, 7
    %v163 = vsub.s32 0, %v162
    %v164 = vrot.slane %v159, %v163
    %v165 = vlaneseq
    %v166 = vshrl.u32 %v165, 7
    %v167 = vsub.s32 1, %v166
    %v168 = vrot.slane %v159, %v167
    %v169 = vlaneseq
    %v170 = vshrl.u32 %v169, 7
    %v171 = vsub.s32 2, %v170
    %v172 = vrot.slane %v159, %v171
    %v173 = vlaneseq
    %v174 = vshrl.u32 %v173, 7
    %v175 = vsub.s32 3, %v174
    %v176 = vrot.slane %v159, %v175
    %vm181 = vcmask 261120
    %v183 = vsel %vm181, %v135, 0
    %v186 = vsel %vm181, %v136, 0
    %v189 = vsel %vm181, %v137, 0
    %v192 = vsel %vm181, %v138, 0
    %v195 = vsel %vm181, %v139, 0
    %v198 = vsel %vm181, %v140, 0
    %v201 = vsel %vm181, %v141, 0
    %v204 = vsel %vm181, %v142, 0
    %206 = vmatprep.subr.mxu0 %v144
    %207 = vmatpush1.msra.mxu0 %v143
    %208 = vmatprep.subr.mxu0 %v148
    %209 = vmatpush1.msra.mxu0 %v147
    %210 = vmatprep.subr.mxu0 %v152
    %211 = vmatpush1.msra.mxu0 %v151
    %212 = vmatprep.subr.mxu0 %v156
    %213 = vmatpush1.msra.mxu0 %v155
    %214 = vmatprep.subr.mxu0 0.0
    %215 = vmatpush1.msra.mxu0 0.0
    %216 = vmatprep.subr.mxu0 0.0
    %217 = vmatpush1.msra.mxu0 0.0
    %218 = vmatprep.subr.mxu0 0.0
    %219 = vmatpush1.msra.mxu0 0.0
    %220 = vmatprep.subr.mxu0 0.0
    %221 = vmatpush1.msra.mxu0 0.0
    %222 = vmatprep.subr.mxu0 0.0
    %223 = vmatpush1.msra.mxu0 0.0
    %224 = vmatprep.subr.mxu0 0.0
    %225 = vmatpush1.msra.mxu0 0.0
    %226 = vmatprep.subr.mxu0 0.0
    %227 = vmatpush1.msra.mxu0 0.0
    %228 = vmatprep.subr.mxu0 0.0
    %229 = vmatpush1.msra.mxu0 0.0
    %230 = vmatprep.subr.mxu0 0.0
    %231 = vmatpush1.msra.mxu0 0.0
    %232 = vmatprep.subr.mxu0 0.0
    %233 = vmatpush1.msra.mxu0 0.0
    %234 = vmatprep.subr.mxu0 0.0
    %235 = vmatpush1.msra.mxu0 0.0
    %236 = vmatprep.subr.mxu0 0.0
    %237 = vmatpush1.msra.mxu0 0.0
    %238 = vmatprep.subr.mxu0 0.0
    %239 = vmatpush1.msra.mxu0 0.0
    %240 = vmatprep.subr.mxu0 0.0
    %241 = vmatpush1.msra.mxu0 0.0
    %242 = vmatprep.subr.mxu0 0.0
    %243 = vmatpush1.msra.mxu0 0.0
    %244 = vmatprep.subr.mxu0 0.0
    %245 = vmatpush1.msra.mxu0 0.0
    %246 = vmatprep.subr.mxu0 0.0
    %247 = vmatpush1.msra.mxu0 0.0
    %248 = vmatprep.subr.mxu0 0.0
    %249 = vmatpush1.msra.mxu0 0.0
    %250 = vmatprep.subr.mxu0 0.0
    %251 = vmatpush1.msra.mxu0 0.0
    %252 = vmatprep.subr.mxu0 0.0
    %253 = vmatpush1.msra.mxu0 0.0
    %254 = vmatprep.subr.mxu0 0.0
    %255 = vmatpush1.msra.mxu0 0.0
    %256 = vmatprep.subr.mxu0 0.0
    %257 = vmatpush1.msra.mxu0 0.0
    %258 = vmatprep.subr.mxu0 0.0
    %259 = vmatpush1.msra.mxu0 0.0
    %260 = vmatprep.subr.mxu0 0.0
    %261 = vmatpush1.msra.mxu0 0.0
    %262 = vmatprep.subr.mxu0 0.0
    %263 = vmatpush1.msra.mxu0 0.0
    %264 = vmatprep.subr.mxu0 0.0
    %265 = vmatpush1.msra.mxu0 0.0
    %266 = vmatprep.subr.mxu0 0.0
    %267 = vmatpush1.msra.mxu0 0.0
    %268 = vmatprep.subr.mxu0 0.0
    %269 = vmatpush1.msra.mxu0 0.0
    %270 = vmatprep.mubr.f32.mxu0 0.0
    %271 = vmatmul.mubr.f32.gmra.mrb[0].mxu0 %v183
    %v272 = vpop.f32.mrb[0].mxu0
    %v273 = vadd.f32 %v164, %v272
    %v274 = vpop.f32.mrb[0].mxu0
    %v275 = vadd.f32 %v168, %v274
    %276 = vmatprep.mubr.f32.mxu0 0.0
    %277 = vmatmul.mubr.f32.gmra.mrb[0].mxu0 %v186
    %v278 = vpop.f32.mrb[0].mxu0
    %v279 = vadd.f32 %v164, %v278
    %v280 = vpop.f32.mrb[0].mxu0
    %v281 = vadd.f32 %v168, %v280
    %282 = vmatprep.mubr.f32.mxu0 0.0
    %283 = vmatmul.mubr.f32.gmra.mrb[0].mxu0 %v189
    %v284 = vpop.f32.mrb[0].mxu0
    %v285 = vadd.f32 %v164, %v284
    %v286 = vpop.f32.mrb[0].mxu0
    %v287 = vadd.f32 %v168, %v286
    %288 = vmatprep.mubr.f32.mxu0 0.0
    %289 = vmatmul.mubr.f32.gmra.mrb[0].mxu0 %v192
    %v290 = vpop.f32.mrb[0].mxu0
    %v291 = vadd.f32 %v164, %v290
    %v292 = vpop.f32.mrb[0].mxu0
    %v293 = vadd.f32 %v168, %v292
    %294 = vmatprep.mubr.f32.mxu0 0.0
    %295 = vmatmul.mubr.f32.gmra.mrb[0].mxu0 %v195
    %v296 = vpop.f32.mrb[0].mxu0
    %v297 = vadd.f32 %v164, %v296
    %v298 = vpop.f32.mrb[0].mxu0
    %v299 = vadd.f32 %v168, %v298
    %300 = vmatprep.mubr.f32.mxu0 0.0
    %301 = vmatmul.mubr.f32.gmra.mrb[0].mxu0 %v198
    %v302 = vpop.f32.mrb[0].mxu0
    %v303 = vadd.f32 %v164, %v302
    %v304 = vpop.f32.mrb[0].mxu0
    %v305 = vadd.f32 %v168, %v304
    %306 = vmatprep.mubr.f32.mxu0 0.0
    %307 = vmatmul.mubr.f32.gmra.mrb[0].mxu0 %v201
    %v308 = vpop.f32.mrb[0].mxu0
    %v309 = vadd.f32 %v164, %v308
    %v310 = vpop.f32.mrb[0].mxu0
    %v311 = vadd.f32 %v168, %v310
    %312 = vmatprep.mubr.f32.mxu0 0.0
    %313 = vmatmul.mubr.f32.gmra.mrb[0].mxu0 %v204
    %v314 = vpop.f32.mrb[0].mxu0
    %v315 = vadd.f32 %v164, %v314
    %v316 = vpop.f32.mrb[0].mxu0
    %v317 = vadd.f32 %v168, %v316
    %318 = vdwg.mxu0
    %319 = vmatprep.subr.mxu0 %v146
    %320 = vmatpush1.msra.mxu0 %v145
    %321 = vmatprep.subr.mxu0 %v150
    %322 = vmatpush1.msra.mxu0 %v149
    %323 = vmatprep.subr.mxu0 %v154
    %324 = vmatpush1.msra.mxu0 %v153
    %325 = vmatprep.subr.mxu0 %v158
    %326 = vmatpush1.msra.mxu0 %v157
    %327 = vmatprep.subr.mxu0 0.0
    %328 = vmatpush1.msra.mxu0 0.0
    %329 = vmatprep.subr.mxu0 0.0
    %330 = vmatpush1.msra.mxu0 0.0
    %331 = vmatprep.subr.mxu0 0.0
    %332 = vmatpush1.msra.mxu0 0.0
    %333 = vmatprep.subr.mxu0 0.0
    %334 = vmatpush1.msra.mxu0 0.0
    %335 = vmatprep.subr.mxu0 0.0
    %336 = vmatpush1.msra.mxu0 0.0
    %337 = vmatprep.subr.mxu0 0.0
    %338 = vmatpush1.msra.mxu0 0.0
    %339 = vmatprep.subr.mxu0 0.0
    %340 = vmatpush1.msra.mxu0 0.0
    %341 = vmatprep.subr.mxu0 0.0
    %342 = vmatpush1.msra.mxu0 0.0
    %343 = vmatprep.subr.mxu0 0.0
    %344 = vmatpush1.msra.mxu0 0.0
    %345 = vmatprep.subr.mxu0 0.0
    %346 = vmatpush1.msra.mxu0 0.0
    %347 = vmatprep.subr.mxu0 0.0
    %348 = vmatpush1.msra.mxu0 0.0
    %349 = vmatprep.subr.mxu0 0.0
    %350 = vmatpush1.msra.mxu0 0.0
    %351 = vmatprep.subr.mxu0 0.0
    %352 = vmatpush1.msra.mxu0 0.0
    %353 = vmatprep.subr.mxu0 0.0
    %354 = vmatpush1.msra.mxu0 0.0
    %355 = vmatprep.subr.mxu0 0.0
    %356 = vmatpush1.msra.mxu0 0.0
    %357 = vmatprep.subr.mxu0 0.0
    %358 = vmatpush1.msra.mxu0 0.0
    %359 = vmatprep.subr.mxu0 0.0
    %360 = vmatpush1.msra.mxu0 0.0
    %361 = vmatprep.subr.mxu0 0.0
    %362 = vmatpush1.msra.mxu0 0.0
    %363 = vmatprep.subr.mxu0 0.0
    %364 = vmatpush1.msra.mxu0 0.0
    %365 = vmatprep.subr.mxu0 0.0
    %366 = vmatpush1.msra.mxu0 0.0
    %367 = vmatprep.subr.mxu0 0.0
    %368 = vmatpush1.msra.mxu0 0.0
    %369 = vmatprep.subr.mxu0 0.0
    %370 = vmatpush1.msra.mxu0 0.0
    %371 = vmatprep.subr.mxu0 0.0
    %372 = vmatpush1.msra.mxu0 0.0
    %373 = vmatprep.subr.mxu0 0.0
    %374 = vmatpush1.msra.mxu0 0.0
    %375 = vmatprep.subr.mxu0 0.0
    %376 = vmatpush1.msra.mxu0 0.0
    %377 = vmatprep.subr.mxu0 0.0
    %378 = vmatpush1.msra.mxu0 0.0
    %379 = vmatprep.subr.mxu0 0.0
    %380 = vmatpush1.msra.mxu0 0.0
    %381 = vmatprep.subr.mxu0 0.0
    %382 = vmatpush1.msra.mxu0 0.0
    %383 = vmatprep.mubr.f32.mxu0 0.0
    %384 = vmatmul.mubr.f32.gmra.mrb[0].mxu0 %v183
    %v385 = vpop.f32.mrb[0].mxu0
    %v386 = vadd.f32 %v172, %v385
    %v387 = vpop.f32.mrb[0].mxu0
    %v388 = vadd.f32 %v176, %v387
    %389 = vmatprep.mubr.f32.mxu0 0.0
    %390 = vmatmul.mubr.f32.gmra.mrb[0].mxu0 %v186
    %v391 = vpop.f32.mrb[0].mxu0
    %v392 = vadd.f32 %v172, %v391
    %v393 = vpop.f32.mrb[0].mxu0
    %v394 = vadd.f32 %v176, %v393
    %395 = vmatprep.mubr.f32.mxu0 0.0
    %396 = vmatmul.mubr.f32.gmra.mrb[0].mxu0 %v189
    %v397 = vpop.f32.mrb[0].mxu0
    %v398 = vadd.f32 %v172, %v397
    %v399 = vpop.f32.mrb[0].mxu0
    %v400 = vadd.f32 %v176, %v399
    %401 = vmatprep.mubr.f32.mxu0 0.0
    %402 = vmatmul.mubr.f32.gmra.mrb[0].mxu0 %v192
    %v403 = vpop.f32.mrb[0].mxu0
    %v404 = vadd.f32 %v172, %v403
    %v405 = vpop.f32.mrb[0].mxu0
    %v406 = vadd.f32 %v176, %v405
    %407 = vmatprep.mubr.f32.mxu0 0.0
    %408 = vmatmul.mubr.f32.gmra.mrb[0].mxu0 %v195
    %v409 = vpop.f32.mrb[0].mxu0
    %v410 = vadd.f32 %v172, %v409
    %v411 = vpop.f32.mrb[0].mxu0
    %v412 = vadd.f32 %v176, %v411
    %413 = vmatprep.mubr.f32.mxu0 0.0
    %414 = vmatmul.mubr.f32.gmra.mrb[0].mxu0 %v198
    %v415 = vpop.f32.mrb[0].mxu0
    %v416 = vadd.f32 %v172, %v415
    %v417 = vpop.f32.mrb[0].mxu0
    %v418 = vadd.f32 %v176, %v417
    %419 = vmatprep.mubr.f32.mxu0 0.0
    %420 = vmatmul.mubr.f32.gmra.mrb[0].mxu0 %v201
    %v421 = vpop.f32.mrb[0].mxu0
    %v422 = vadd.f32 %v172, %v421
    %v423 = vpop.f32.mrb[0].mxu0
    %v424 = vadd.f32 %v176, %v423
    %425 = vmatprep.mubr.f32.mxu0 0.0
    %426 = vmatmul.mubr.f32.gmra.mrb[0].mxu0 %v204
    %v427 = vpop.f32.mrb[0].mxu0
    %v428 = vadd.f32 %v172, %v427
    %v429 = vpop.f32.mrb[0].mxu0
    %v430 = vadd.f32 %v176, %v429
    %431 = vdwg.mxu0
    %432 = vst [vmem:[#allocation3] sm:$0xff] %v273
    %433 = vst [vmem:[#allocation3 + $0x8] sm:$0xff] %v275
    %434 = vst [vmem:[#allocation3 + $0x10] sm:$0xff] %v386
    %435 = vst [vmem:[#allocation3 + $0x18] sm:$0xff] %v388
    %436 = vst [vmem:[#allocation3 + $0x20] sm:$0xff] %v279
    %437 = vst [vmem:[#allocation3 + $0x28] sm:$0xff] %v281
    %438 = vst [vmem:[#allocation3 + $0x30] sm:$0xff] %v392
    %439 = vst [vmem:[#allocation3 + $0x38] sm:$0xff] %v394
    %440 = vst [vmem:[#allocation3 + $0x40] sm:$0xff] %v285
    %441 = vst [vmem:[#allocation3 + $0x48] sm:$0xff] %v287
    %442 = vst [vmem:[#allocation3 + $0x50] sm:$0xff] %v398
    %443 = vst [vmem:[#allocation3 + $0x58] sm:$0xff] %v400
    %444 = vst [vmem:[#allocation3 + $0x60] sm:$0xff] %v291
    %445 = vst [vmem:[#allocation3 + $0x68] sm:$0xff] %v293
    %446 = vst [vmem:[#allocation3 + $0x70] sm:$0xff] %v404
    %447 = vst [vmem:[#allocation3 + $0x78] sm:$0xff] %v406
    %448 = vst [vmem:[#allocation3 + $0x80] sm:$0xff] %v297
    %449 = vst [vmem:[#allocation3 + $0x88] sm:$0xff] %v299
    %450 = vst [vmem:[#allocation3 + $0x90] sm:$0xff] %v410
    %451 = vst [vmem:[#allocation3 + $0x98] sm:$0xff] %v412
    %452 = vst [vmem:[#allocation3 + $0xa0] sm:$0xff] %v303
    %453 = vst [vmem:[#allocation3 + $0xa8] sm:$0xff] %v305
    %454 = vst [vmem:[#allocation3 + $0xb0] sm:$0xff] %v416
    %455 = vst [vmem:[#allocation3 + $0xb8] sm:$0xff] %v418
    %456 = vst [vmem:[#allocation3 + $0xc0] sm:$0xff] %v309
    %457 = vst [vmem:[#allocation3 + $0xc8] sm:$0xff] %v311
    %458 = vst [vmem:[#allocation3 + $0xd0] sm:$0xff] %v422
    %459 = vst [vmem:[#allocation3 + $0xd8] sm:$0xff] %v424
    %460 = vst [vmem:[#allocation3 + $0xe0] sm:$0xff] %v315
    %461 = vst [vmem:[#allocation3 + $0xe8] sm:$0xff] %v317
    %462 = vst [vmem:[#allocation3 + $0xf0] sm:$0xff] %v428
    %463 = vst [vmem:[#allocation3 + $0xf8] sm:$0xff] %v430
    %v464 = vld [vmem:[#allocation10] sm:$0xff]
    %v465 = vld [vmem:[#allocation10 + $0x8] sm:$0xff]
    %v466 = vld [vmem:[#allocation10 + $0x10] sm:$0xff]
    %v467 = vld [vmem:[#allocation10 + $0x18] sm:$0xff]
    %v468 = vld [vmem:[#allocation10 + $0x20] sm:$0xff]
    %v469 = vld [vmem:[#allocation10 + $0x28] sm:$0xff]
    %v470 = vld [vmem:[#allocation10 + $0x30] sm:$0xff]
    %v471 = vld [vmem:[#allocation10 + $0x38] sm:$0xff]
    %v472 = vld [vmem:[#allocation10 + $0x40] sm:$0xff]
    %v473 = vld [vmem:[#allocation10 + $0x48] sm:$0xff]
    %v474 = vld [vmem:[#allocation10 + $0x50] sm:$0xff]
    %v475 = vld [vmem:[#allocation10 + $0x58] sm:$0xff]
    %v476 = vld [vmem:[#allocation10 + $0x60] sm:$0xff]
    %v477 = vld [vmem:[#allocation10 + $0x68] sm:$0xff]
    %v478 = vld [vmem:[#allocation10 + $0x70] sm:$0xff]
    %v479 = vld [vmem:[#allocation10 + $0x78] sm:$0xff]
    %v480 = vld [vmem:[#allocation10 + $0x80] sm:$0xff]
    %v481 = vld [vmem:[#allocation10 + $0x88] sm:$0xff]
    %v482 = vld [vmem:[#allocation10 + $0x90] sm:$0xff]
    %v483 = vld [vmem:[#allocation10 + $0x98] sm:$0xff]
    %v484 = vld [vmem:[#allocation10 + $0xa0] sm:$0xff]
    %v485 = vld [vmem:[#allocation10 + $0xa8] sm:$0xff]
    %v486 = vld [vmem:[#allocation10 + $0xb0] sm:$0xff]
    %v487 = vld [vmem:[#allocation10 + $0xb8] sm:$0xff]
    %v488 = vld [vmem:[#allocation10 + $0xc0] sm:$0xff]
    %v489 = vld [vmem:[#allocation10 + $0xc8] sm:$0xff]
    %v490 = vld [vmem:[#allocation10 + $0xd0] sm:$0xff]
    %v491 = vld [vmem:[#allocation10 + $0xd8] sm:$0xff]
    %v492 = vld [vmem:[#allocation10 + $0xe0] sm:$0xff]
    %v493 = vld [vmem:[#allocation10 + $0xe8] sm:$0xff]
    %v494 = vld [vmem:[#allocation10 + $0xf0] sm:$0xff]
    %v495 = vld [vmem:[#allocation10 + $0xf8] sm:$0xff]
    %v496 = vld [vmem:[#allocation3] sm:$0xff]
    %v497 = vld [vmem:[#allocation3 + $0x8] sm:$0xff]
    %v498 = vld [vmem:[#allocation3 + $0x10] sm:$0xff]
    %v499 = vld [vmem:[#allocation3 + $0x18] sm:$0xff]
    %v532 = vunpack.c.l.b16 %v464
    %v533 = vunpack.c.h.b16 %v464
    %v534 = vunpack.c.l.b16 %v465
    %v535 = vunpack.c.h.b16 %v465
    %v536 = vunpack.c.l.b16 %v466
    %v537 = vunpack.c.h.b16 %v466
    %v538 = vunpack.c.l.b16 %v467
    %v539 = vunpack.c.h.b16 %v467
    %v540 = vunpack.c.l.b16 %v468
    %v541 = vunpack.c.h.b16 %v468
    %v542 = vunpack.c.l.b16 %v469
    %v543 = vunpack.c.h.b16 %v469
    %v544 = vunpack.c.l.b16 %v470
    %v545 = vunpack.c.h.b16 %v470
    %v546 = vunpack.c.l.b16 %v471
    %v547 = vunpack.c.h.b16 %v471
    %v548 = vunpack.c.l.b16 %v472
    %v549 = vunpack.c.h.b16 %v472
    %v550 = vunpack.c.l.b16 %v473
    %v551 = vunpack.c.h.b16 %v473
    %v552 = vunpack.c.l.b16 %v474
    %v553 = vunpack.c.h.b16 %v474
    %v554 = vunpack.c.l.b16 %v475
    %v555 = vunpack.c.h.b16 %v475
    %v556 = vunpack.c.l.b16 %v476
    %v557 = vunpack.c.h.b16 %v476
    %v558 = vunpack.c.l.b16 %v477
    %v559 = vunpack.c.h.b16 %v477
    %v560 = vunpack.c.l.b16 %v478
    %v561 = vunpack.c.h.b16 %v478
    %v562 = vunpack.c.l.b16 %v479
    %v563 = vunpack.c.h.b16 %v479
    %v564 = vunpack.c.l.b16 %v480
    %v565 = vunpack.c.h.b16 %v480
    %v566 = vunpack.c.l.b16 %v481
    %v567 = vunpack.c.h.b16 %v481
    %v568 = vunpack.c.l.b16 %v482
    %v569 = vunpack.c.h.b16 %v482
    %v570 = vunpack.c.l.b16 %v483
    %v571 = vunpack.c.h.b16 %v483
    %v572 = vunpack.c.l.b16 %v484
    %v573 = vunpack.c.h.b16 %v484
    %v574 = vunpack.c.l.b16 %v485
    %v575 = vunpack.c.h.b16 %v485
    %v576 = vunpack.c.l.b16 %v486
    %v577 = vunpack.c.h.b16 %v486
    %v578 = vunpack.c.l.b16 %v487
    %v579 = vunpack.c.h.b16 %v487
    %v580 = vunpack.c.l.b16 %v488
    %v581 = vunpack.c.h.b16 %v488
    %v582 = vunpack.c.l.b16 %v489
    %v583 = vunpack.c.h.b16 %v489
    %v584 = vunpack.c.l.b16 %v490
    %v585 = vunpack.c.h.b16 %v490
    %v586 = vunpack.c.l.b16 %v491
    %v587 = vunpack.c.h.b16 %v491
    %v588 = vunpack.c.l.b16 %v492
    %v589 = vunpack.c.h.b16 %v492
    %v590 = vunpack.c.l.b16 %v493
    %v591 = vunpack.c.h.b16 %v493
    %v592 = vunpack.c.l.b16 %v494
    %v593 = vunpack.c.h.b16 %v494
    %v594 = vunpack.c.l.b16 %v495
    %v595 = vunpack.c.h.b16 %v495
    %v596 = vpack.c.b16 %v536, %v532
    %v597 = vpack.c.b16 %v537, %v533
    %v598 = vpack.c.b16 %v538, %v534
    %v599 = vpack.c.b16 %v539, %v535
    %v600 = vpack.c.b16 %v544, %v540
    %v601 = vpack.c.b16 %v545, %v541
    %v602 = vpack.c.b16 %v546, %v542
    %v603 = vpack.c.b16 %v547, %v543
    %v604 = vpack.c.b16 %v552, %v548
    %v605 = vpack.c.b16 %v553, %v549
    %v606 = vpack.c.b16 %v554, %v550
    %v607 = vpack.c.b16 %v555, %v551
    %v608 = vpack.c.b16 %v560, %v556
    %v609 = vpack.c.b16 %v561, %v557
    %v610 = vpack.c.b16 %v562, %v558
    %v611 = vpack.c.b16 %v563, %v559
    %v612 = vpack.c.b16 %v568, %v564
    %v613 = vpack.c.b16 %v569, %v565
    %v614 = vpack.c.b16 %v570, %v566
    %v615 = vpack.c.b16 %v571, %v567
    %v616 = vpack.c.b16 %v576, %v572
    %v617 = vpack.c.b16 %v577, %v573
    %v618 = vpack.c.b16 %v578, %v574
    %v619 = vpack.c.b16 %v579, %v575
    %v620 = vpack.c.b16 %v584, %v580
    %v621 = vpack.c.b16 %v585, %v581
    %v622 = vpack.c.b16 %v586, %v582
    %v623 = vpack.c.b16 %v587, %v583
    %v624 = vpack.c.b16 %v592, %v588
    %v625 = vpack.c.b16 %v593, %v589
    %v626 = vpack.c.b16 %v594, %v590
    %v627 = vpack.c.b16 %v595, %v591
    %660 = vmatprep.subr.bf16.mxu0 %v597
    %661 = vmatpush1.bf16.msra.mxu0 %v596
    %662 = vmatprep.subr.bf16.mxu0 %v601
    %663 = vmatpush1.bf16.msra.mxu0 %v600
    %664 = vmatprep.subr.bf16.mxu0 %v605
    %665 = vmatpush1.bf16.msra.mxu0 %v604
    %666 = vmatprep.subr.bf16.mxu0 %v609
    %667 = vmatpush1.bf16.msra.mxu0 %v608
    %668 = vmatprep.subr.bf16.mxu0 %v613
    %669 = vmatpush1.bf16.msra.mxu0 %v612
    %670 = vmatprep.subr.bf16.mxu0 %v617
    %671 = vmatpush1.bf16.msra.mxu0 %v616
    %672 = vmatprep.subr.bf16.mxu0 %v621
    %673 = vmatpush1.bf16.msra.mxu0 %v620
    %674 = vmatprep.subr.bf16.mxu0 %v625
    %675 = vmatpush1.bf16.msra.mxu0 %v624
    %676 = vmatprep.subr.bf16.mxu0 0
    %677 = vmatpush1.bf16.msra.mxu0 0
    %678 = vmatprep.subr.bf16.mxu0 0
    %679 = vmatpush1.bf16.msra.mxu0 0
    %680 = vmatprep.subr.bf16.mxu0 0
    %681 = vmatpush1.bf16.msra.mxu0 0
    %682 = vmatprep.subr.bf16.mxu0 0
    %683 = vmatpush1.bf16.msra.mxu0 0
    %684 = vmatprep.subr.bf16.mxu0 0
    %685 = vmatpush1.bf16.msra.mxu0 0
    %686 = vmatprep.subr.bf16.mxu0 0
    %687 = vmatpush1.bf16.msra.mxu0 0
    %688 = vmatprep.subr.bf16.mxu0 0
    %689 = vmatpush1.bf16.msra.mxu0 0
    %690 = vmatprep.subr.bf16.mxu0 0
    %691 = vmatpush1.bf16.msra.mxu0 0
    %692 = vmatprep.mubr.bf16.mxu0 0
    %693 = vmatmul.mubr.bf16.gmra.mrb[0].mxu0 0
    %v694 = vpop.f32.mrb[0].mxu0
    %v695 = vadd.f32 0.0, %v694
    %v696 = vpop.f32.mrb[0].mxu0
    %v697 = vadd.f32 0.0, %v696
    %v698 = vpop.f32.mrb[0].mxu0
    %v699 = vpop.f32.mrb[0].mxu0
    %700 = vdwg.mxu0
    %701 = vmatprep.subr.bf16.mxu0 %v599
    %702 = vmatpush1.bf16.msra.mxu0 %v598
    %703 = vmatprep.subr.bf16.mxu0 %v603
    %704 = vmatpush1.bf16.msra.mxu0 %v602
    %705 = vmatprep.subr.bf16.mxu0 %v607
    %706 = vmatpush1.bf16.msra.mxu0 %v606
    %707 = vmatprep.subr.bf16.mxu0 %v611
    %708 = vmatpush1.bf16.msra.mxu0 %v610
    %709 = vmatprep.subr.bf16.mxu0 %v615
    %710 = vmatpush1.bf16.msra.mxu0 %v614
    %711 = vmatprep.subr.bf16.mxu0 %v619
    %712 = vmatpush1.bf16.msra.mxu0 %v618
    %713 = vmatprep.subr.bf16.mxu0 %v623
    %714 = vmatpush1.bf16.msra.mxu0 %v622
    %715 = vmatprep.subr.bf16.mxu0 %v627
    %716 = vmatpush1.bf16.msra.mxu0 %v626
    %717 = vmatprep.subr.bf16.mxu0 0
    %718 = vmatpush1.bf16.msra.mxu0 0
    %719 = vmatprep.subr.bf16.mxu0 0
    %720 = vmatpush1.bf16.msra.mxu0 0
    %721 = vmatprep.subr.bf16.mxu0 0
    %722 = vmatpush1.bf16.msra.mxu0 0
    %723 = vmatprep.subr.bf16.mxu0 0
    %724 = vmatpush1.bf16.msra.mxu0 0
    %725 = vmatprep.subr.bf16.mxu0 0
    %726 = vmatpush1.bf16.msra.mxu0 0
    %727 = vmatprep.subr.bf16.mxu0 0
    %728 = vmatpush1.bf16.msra.mxu0 0
    %729 = vmatprep.subr.bf16.mxu0 0
    %730 = vmatpush1.bf16.msra.mxu0 0
    %731 = vmatprep.subr.bf16.mxu0 0
    %732 = vmatpush1.bf16.msra.mxu0 0
    %733 = vmatprep.mubr.bf16.mxu0 0
    %734 = vmatmul.mubr.bf16.gmra.mrb[0].mxu0 0
    %v735 = vpop.f32.mrb[0].mxu0
    %v736 = vadd.f32 0.0, %v735
    %v737 = vpop.f32.mrb[0].mxu0
    %v738 = vadd.f32 0.0, %v737
    %v739 = vpop.f32.mrb[0].mxu0
    %v740 = vpop.f32.mrb[0].mxu0
    %741 = vdwg.mxu0
    %v742 = vadd.f32 %v496, %v695
    %v743 = vadd.f32 %v497, %v697
    %v744 = vadd.f32 %v498, %v736
    %v745 = vadd.f32 %v499, %v738
    %v746 = vxor.u32 %v742, 2147483648
    %v747 = vxor.u32 %v743, 2147483648
    %v748 = vxor.u32 %v744, 2147483648
    %v749 = vmul.f32 %v746, 1.442695
    %v750 = vpow.pop %v749
    %v751 = vmul.f32 %v747, 1.442695
    %v752 = vpow.pop %v751
    %v753 = vmul.f32 %v748, 1.442695
    %v754 = vpow.pop %v753
    %v755 = vadd.f32 %v750, 1.0
    %v756 = vadd.f32 %v752, 1.0
    %v757 = vadd.f32 %v754, 1.0
    %v758 = vrcp.pop %v755
    %v759 = vmul.f32 1.0, %v758
    %v760 = vrcp.pop %v756
    %v761 = vmul.f32 1.0, %v760
    %v762 = vrcp.pop %v757
    %v763 = vmul.f32 1.0, %v762
    %v764 = vtanh.pop %v745
    %v765 = vmul.f32 %v761, 0.0
    %v766 = vmul.f32 %v759, %v764
    %v767 = vadd.f32 %v765, %v766
    %v768 = vtanh.pop %v767
    %v769 = vmul.f32 %v763, %v768
    %vm770 = vcmask 523264
    %771 = vst.msk [vmem:[#allocation2] sm:$0xff] %vm770, %v769
    %vm772 = vcmask 1048064
    %773 = vst.msk [vmem:[#allocation2 + $0x38] sm:$0xff] %vm772, %v769
    %v774 = vld [vmem:[#allocation3 + $0x20] sm:$0xff]
    %v775 = vld [vmem:[#allocation3 + $0x28] sm:$0xff]
    %v776 = vld [vmem:[#allocation3 + $0x30] sm:$0xff]
    %v777 = vld [vmem:[#allocation3 + $0x38] sm:$0xff]
    %v778 = vpack.c.bf16 %v769, %v769
    %779 = vmatprep.subr.bf16.mxu0 %v597
    %780 = vmatpush1.bf16.msra.mxu0 %v596
    %781 = vmatprep.subr.bf16.mxu0 %v601
    %782 = vmatpush1.bf16.msra.mxu0 %v600
    %783 = vmatprep.subr.bf16.mxu0 %v605
    %784 = vmatpush1.bf16.msra.mxu0 %v604
    %785 = vmatprep.subr.bf16.mxu0 %v609
    %786 = vmatpush1.bf16.msra.mxu0 %v608
    %787 = vmatprep.subr.bf16.mxu0 %v613
    %788 = vmatpush1.bf16.msra.mxu0 %v612
    %789 = vmatprep.subr.bf16.mxu0 %v617
    %790 = vmatpush1.bf16.msra.mxu0 %v616
    %791 = vmatprep.subr.bf16.mxu0 %v621
    %792 = vmatpush1.bf16.msra.mxu0 %v620
    %793 = vmatprep.subr.bf16.mxu0 %v625
    %794 = vmatpush1.bf16.msra.mxu0 %v624
    %795 = vmatprep.subr.bf16.mxu0 0
    %796 = vmatpush1.bf16.msra.mxu0 0
    %797 = vmatprep.subr.bf16.mxu0 0
    %798 = vmatpush1.bf16.msra.mxu0 0
    %799 = vmatprep.subr.bf16.mxu0 0
    %800 = vmatpush1.bf16.msra.mxu0 0
    %801 = vmatprep.subr.bf16.mxu0 0
    %802 = vmatpush1.bf16.msra.mxu0 0
    %803 = vmatprep.subr.bf16.mxu0 0
    %804 = vmatpush1.bf16.msra.mxu0 0
    %805 = vmatprep.subr.bf16.mxu0 0
    %806 = vmatpush1.bf16.msra.mxu0 0
    %807 = vmatprep.subr.bf16.mxu0 0
    %808 = vmatpush1.bf16.msra.mxu0 0
    %809 = vmatprep.subr.bf16.mxu0 0
    %810 = vmatpush1.bf16.msra.mxu0 0
    %811 = vmatprep.mubr.bf16.mxu0 0
    %812 = vmatmul.mubr.bf16.gmra.mrb[0].mxu0 %v778
    %v813 = vpop.f32.mrb[0].mxu0
    %v814 = vadd.f32 0.0, %v813
    %v815 = vpop.f32.mrb[0].mxu0
    %v816 = vadd.f32 0.0, %v815
    %v817 = vpop.f32.mrb[0].mxu0
    %v818 = vpop.f32.mrb[0].mxu0
    %819 = vdwg.mxu0
    %820 = vmatprep.subr.bf16.mxu0 %v599
    %821 = vmatpush1.bf16.msra.mxu0 %v598
    %822 = vmatprep.subr.bf16.mxu0 %v603
    %823 = vmatpush1.bf16.msra.mxu0 %v602
    %824 = vmatprep.subr.bf16.mxu0 %v607
    %825 = vmatpush1.bf16.msra.mxu0 %v606
    %826 = vmatprep.subr.bf16.mxu0 %v611
    %827 = vmatpush1.bf16.msra.mxu0 %v610
    %828 = vmatprep.subr.bf16.mxu0 %v615
    %829 = vmatpush1.bf16.msra.mxu0 %v614
    %830 = vmatprep.subr.bf16.mxu0 %v619
    %831 = vmatpush1.bf16.msra.mxu0 %v618
    %832 = vmatprep.subr.bf16.mxu0 %v623
    %833 = vmatpush1.bf16.msra.mxu0 %v622
    %834 = vmatprep.subr.bf16.mxu0 %v627
    %835 = vmatpush1.bf16.msra.mxu0 %v626
    %836 = vmatprep.subr.bf16.mxu0 0
    %837 = vmatpush1.bf16.msra.mxu0 0
    %838 = vmatprep.subr.bf16.mxu0 0
    %839 = vmatpush1.bf16.msra.mxu0 0
    %840 = vmatprep.subr.bf16.mxu0 0
    %841 = vmatpush1.bf16.msra.mxu0 0
    %842 = vmatprep.subr.bf16.mxu0 0
    %843 = vmatpush1.bf16.msra.mxu0 0
    %844 = vmatprep.subr.bf16.mxu0 0
    %845 = vmatpush1.bf16.msra.mxu0 0
    %846 = vmatprep.subr.bf16.mxu0 0
    %847 = vmatpush1.bf16.msra.mxu0 0
    %848 = vmatprep.subr.bf16.mxu0 0
    %849 = vmatpush1.bf16.msra.mxu0 0
    %850 = vmatprep.subr.bf16.mxu0 0
    %851 = vmatpush1.bf16.msra.mxu0 0
    %852 = vmatprep.mubr.bf16.mxu0 0
    %853 = vmatmul.mubr.bf16.gmra.mrb[0].mxu0 %v778
    %v854 = vpop.f32.mrb[0].mxu0
    %v855 = vadd.f32 0.0, %v854
    %v856 = vpop.f32.mrb[0].mxu0
    %v857 = vadd.f32 0.0, %v856
    %v858 = vpop.f32.mrb[0].mxu0
    %v859 = vpop.f32.mrb[0].mxu0
    %860 = vdwg.mxu0
    %v861 = vadd.f32 %v774, %v814
    %v862 = vadd.f32 %v775, %v816
    %v863 = vadd.f32 %v776, %v855
    %v864 = vadd.f32 %v777, %v857
    %v865 = vxor.u32 %v861, 2147483648
    %v866 = vxor.u32 %v862, 2147483648
    %v867 = vxor.u32 %v863, 2147483648
    %v868 = vmul.f32 %v865, 1.442695
    %v869 = vpow.pop %v868
    %v870 = vmul.f32 %v866, 1.442695
    %v871 = vpow.pop %v870
    %v872 = vmul.f32 %v867, 1.442695
    %v873 = vpow.pop %v872
    %v874 = vadd.f32 %v869, 1.0
    %v875 = vadd.f32 %v871, 1.0
    %v876 = vadd.f32 %v873, 1.0
    %v877 = vrcp.pop %v874
    %v878 = vmul.f32 1.0, %v877
    %v879 = vrcp.pop %v875
    %v880 = vmul.f32 1.0, %v879
    %v881 = vrcp.pop %v876
    %v882 = vmul.f32 1.0, %v881
    %v883 = vtanh.pop %v864
    %v884 = vmul.f32 %v880, %v767
    %v885 = vmul.f32 %v878, %v883
    %v886 = vadd.f32 %v884, %v885
    %v887 = vtanh.pop %v886
    %v888 = vmul.f32 %v882, %v887
    %889 = vst.msk [vmem:[#allocation2 + $0x8] sm:$0xff] %vm770, %v888
    %890 = vst.msk [vmem:[#allocation2 + $0x30] sm:$0xff] %vm772, %v888
    %v891 = vld [vmem:[#allocation3 + $0x40] sm:$0xff]
    %v892 = vld [vmem:[#allocation3 + $0x48] sm:$0xff]
    %v893 = vld [vmem:[#allocation3 + $0x50] sm:$0xff]
    %v894 = vld [vmem:[#allocation3 + $0x58] sm:$0xff]
    %v895 = vpack.c.bf16 %v888, %v888
    %896 = vmatprep.subr.bf16.mxu0 %v597
    %897 = vmatpush1.bf16.msra.mxu0 %v596
    %898 = vmatprep.subr.bf16.mxu0 %v601
    %899 = vmatpush1.bf16.msra.mxu0 %v600
    %900 = vmatprep.subr.bf16.mxu0 %v605
    %901 = vmatpush1.bf16.msra.mxu0 %v604
    %902 = vmatprep.subr.bf16.mxu0 %v609
    %903 = vmatpush1.bf16.msra.mxu0 %v608
    %904 = vmatprep.subr.bf16.mxu0 %v613
    %905 = vmatpush1.bf16.msra.mxu0 %v612
    %906 = vmatprep.subr.bf16.mxu0 %v617
    %907 = vmatpush1.bf16.msra.mxu0 %v616
    %908 = vmatprep.subr.bf16.mxu0 %v621
    %909 = vmatpush1.bf16.msra.mxu0 %v620
    %910 = vmatprep.subr.bf16.mxu0 %v625
    %911 = vmatpush1.bf16.msra.mxu0 %v624
    %912 = vmatprep.subr.bf16.mxu0 0
    %913 = vmatpush1.bf16.msra.mxu0 0
    %914 = vmatprep.subr.bf16.mxu0 0
    %915 = vmatpush1.bf16.msra.mxu0 0
    %916 = vmatprep.subr.bf16.mxu0 0
    %917 = vmatpush1.bf16.msra.mxu0 0
    %918 = vmatprep.subr.bf16.mxu0 0
    %919 = vmatpush1.bf16.msra.mxu0 0
    %920 = vmatprep.subr.bf16.mxu0 0
    %921 = vmatpush1.bf16.msra.mxu0 0
    %922 = vmatprep.subr.bf16.mxu0 0
    %923 = vmatpush1.bf16.msra.mxu0 0
    %924 = vmatprep.subr.bf16.mxu0 0
    %925 = vmatpush1.bf16.msra.mxu0 0
    %926 = vmatprep.subr.bf16.mxu0 0
    %927 = vmatpush1.bf16.msra.mxu0 0
    %928 = vmatprep.mubr.bf16.mxu0 0
    %929 = vmatmul.mubr.bf16.gmra.mrb[0].mxu0 %v895
    %v930 = vpop.f32.mrb[0].mxu0
    %v931 = vadd.f32 0.0, %v930
    %v932 = vpop.f32.mrb[0].mxu0
    %v933 = vadd.f32 0.0, %v932
    %v934 = vpop.f32.mrb[0].mxu0
    %v935 = vpop.f32.mrb[0].mxu0
    %936 = vdwg.mxu0
    %937 = vmatprep.subr.bf16.mxu0 %v599
    %938 = vmatpush1.bf16.msra.mxu0 %v598
    %939 = vmatprep.subr.bf16.mxu0 %v603
    %940 = vmatpush1.bf16.msra.mxu0 %v602
    %941 = vmatprep.subr.bf16.mxu0 %v607
    %942 = vmatpush1.bf16.msra.mxu0 %v606
    %943 = vmatprep.subr.bf16.mxu0 %v611
    %944 = vmatpush1.bf16.msra.mxu0 %v610
    %945 = vmatprep.subr.bf16.mxu0 %v615
    %946 = vmatpush1.bf16.msra.mxu0 %v614
    %947 = vmatprep.subr.bf16.mxu0 %v619
    %948 = vmatpush1.bf16.msra.mxu0 %v618
    %949 = vmatprep.subr.bf16.mxu0 %v623
    %950 = vmatpush1.bf16.msra.mxu0 %v622
    %951 = vmatprep.subr.bf16.mxu0 %v627
    %952 = vmatpush1.bf16.msra.mxu0 %v626
    %953 = vmatprep.subr.bf16.mxu0 0
    %954 = vmatpush1.bf16.msra.mxu0 0
    %955 = vmatprep.subr.bf16.mxu0 0
    %956 = vmatpush1.bf16.msra.mxu0 0
    %957 = vmatprep.subr.bf16.mxu0 0
    %958 = vmatpush1.bf16.msra.mxu0 0
    %959 = vmatprep.subr.bf16.mxu0 0
    %960 = vmatpush1.bf16.msra.mxu0 0
    %961 = vmatprep.subr.bf16.mxu0 0
    %962 = vmatpush1.bf16.msra.mxu0 0
    %963 = vmatprep.subr.bf16.mxu0 0
    %964 = vmatpush1.bf16.msra.mxu0 0
    %965 = vmatprep.subr.bf16.mxu0 0
    %966 = vmatpush1.bf16.msra.mxu0 0
    %967 = vmatprep.subr.bf16.mxu0 0
    %968 = vmatpush1.bf16.msra.mxu0 0
    %969 = vmatprep.mubr.bf16.mxu0 0
    %970 = vmatmul.mubr.bf16.gmra.mrb[0].mxu0 %v895
    %v971 = vpop.f32.mrb[0].mxu0
    %v972 = vadd.f32 0.0, %v971
    %v973 = vpop.f32.mrb[0].mxu0
    %v974 = vadd.f32 0.0, %v973
    %v975 = vpop.f32.mrb[0].mxu0
    %v976 = vpop.f32.mrb[0].mxu0
    %977 = vdwg.mxu0
    %v978 = vadd.f32 %v891, %v931
    %v979 = vadd.f32 %v892, %v933
    %v980 = vadd.f32 %v893, %v972
    %v981 = vadd.f32 %v894, %v974
    %v982 = vxor.u32 %v978, 2147483648
    %v983 = vxor.u32 %v979, 2147483648
    %v984 = vxor.u32 %v980, 2147483648
    %v985 = vmul.f32 %v982, 1.442695
    %v986 = vpow.pop %v985
    %v987 = vmul.f32 %v983, 1.442695
    %v988 = vpow.pop %v987
    %v989 = vmul.f32 %v984, 1.442695
    %v990 = vpow.pop %v989
    %v991 = vadd.f32 %v986, 1.0
    %v992 = vadd.f32 %v988, 1.0
    %v993 = vadd.f32 %v990, 1.0
    %v994 = vrcp.pop %v991
    %v995 = vmul.f32 1.0, %v994
    %v996 = vrcp.pop %v992
    %v997 = vmul.f32 1.0, %v996
    %v998 = vrcp.pop %v993
    %v999 = vmul.f32 1.0, %v998
    %v1000 = vtanh.pop %v981
    %v1001 = vmul.f32 %v997, %v886
    %v1002 = vmul.f32 %v995, %v1000
    %v1003 = vadd.f32 %v1001, %v1002
    %v1004 = vtanh.pop %v1003
    %v1005 = vmul.f32 %v999, %v1004
    %1006 = vst.msk [vmem:[#allocation2 + $0x10] sm:$0xff] %vm770, %v1005
    %1007 = vst.msk [vmem:[#allocation2 + $0x28] sm:$0xff] %vm772, %v1005
    %v1008 = vld [vmem:[#allocation3 + $0x60] sm:$0xff]
    %v1009 = vld [vmem:[#allocation3 + $0x68] sm:$0xff]
    %v1010 = vld [vmem:[#allocation3 + $0x70] sm:$0xff]
    %v1011 = vld [vmem:[#allocation3 + $0x78] sm:$0xff]
    %v1012 = vpack.c.bf16 %v1005, %v1005
    %1013 = vmatprep.subr.bf16.mxu0 %v597
    %1014 = vmatpush1.bf16.msra.mxu0 %v596
    %1015 = vmatprep.subr.bf16.mxu0 %v601
    %1016 = vmatpush1.bf16.msra.mxu0 %v600
    %1017 = vmatprep.subr.bf16.mxu0 %v605
    %1018 = vmatpush1.bf16.msra.mxu0 %v604
    %1019 = vmatprep.subr.bf16.mxu0 %v609
    %1020 = vmatpush1.bf16.msra.mxu0 %v608
    %1021 = vmatprep.subr.bf16.mxu0 %v613
    %1022 = vmatpush1.bf16.msra.mxu0 %v612
    %1023 = vmatprep.subr.bf16.mxu0 %v617
    %1024 = vmatpush1.bf16.msra.mxu0 %v616
    %1025 = vmatprep.subr.bf16.mxu0 %v621
    %1026 = vmatpush1.bf16.msra.mxu0 %v620
    %1027 = vmatprep.subr.bf16.mxu0 %v625
    %1028 = vmatpush1.bf16.msra.mxu0 %v624
    %1029 = vmatprep.subr.bf16.mxu0 0
    %1030 = vmatpush1.bf16.msra.mxu0 0
    %1031 = vmatprep.subr.bf16.mxu0 0
    %1032 = vmatpush1.bf16.msra.mxu0 0
    %1033 = vmatprep.subr.bf16.mxu0 0
    %1034 = vmatpush1.bf16.msra.mxu0 0
    %1035 = vmatprep.subr.bf16.mxu0 0
    %1036 = vmatpush1.bf16.msra.mxu0 0
    %1037 = vmatprep.subr.bf16.mxu0 0
    %1038 = vmatpush1.bf16.msra.mxu0 0
    %1039 = vmatprep.subr.bf16.mxu0 0
    %1040 = vmatpush1.bf16.msra.mxu0 0
    %1041 = vmatprep.subr.bf16.mxu0 0
    %1042 = vmatpush1.bf16.msra.mxu0 0
    %1043 = vmatprep.subr.bf16.mxu0 0
    %1044 = vmatpush1.bf16.msra.mxu0 0
    %1045 = vmatprep.mubr.bf16.mxu0 0
    %1046 = vmatmul.mubr.bf16.gmra.mrb[0].mxu0 %v1012
    %v1047 = vpop.f32.mrb[0].mxu0
    %v1048 = vadd.f32 0.0, %v1047
    %v1049 = vpop.f32.mrb[0].mxu0
    %v1050 = vadd.f32 0.0, %v1049
    %v1051 = vpop.f32.mrb[0].mxu0
    %v1052 = vpop.f32.mrb[0].mxu0
    %1053 = vdwg.mxu0
    %1054 = vmatprep.subr.bf16.mxu0 %v599
    %1055 = vmatpush1.bf16.msra.mxu0 %v598
    %1056 = vmatprep.subr.bf16.mxu0 %v603
    %1057 = vmatpush1.bf16.msra.mxu0 %v602
    %1058 = vmatprep.subr.bf16.mxu0 %v607
    %1059 = vmatpush1.bf16.msra.mxu0 %v606
    %1060 = vmatprep.subr.bf16.mxu0 %v611
    %1061 = vmatpush1.bf16.msra.mxu0 %v610
    %1062 = vmatprep.subr.bf16.mxu0 %v615
    %1063 = vmatpush1.bf16.msra.mxu0 %v614
    %1064 = vmatprep.subr.bf16.mxu0 %v619
    %1065 = vmatpush1.bf16.msra.mxu0 %v618
    %1066 = vmatprep.subr.bf16.mxu0 %v623
    %1067 = vmatpush1.bf16.msra.mxu0 %v622
    %1068 = vmatprep.subr.bf16.mxu0 %v627
    %1069 = vmatpush1.bf16.msra.mxu0 %v626
    %1070 = vmatprep.subr.bf16.mxu0 0
    %1071 = vmatpush1.bf16.msra.mxu0 0
    %1072 = vmatprep.subr.bf16.mxu0 0
    %1073 = vmatpush1.bf16.msra.mxu0 0
    %1074 = vmatprep.subr.bf16.mxu0 0
    %1075 = vmatpush1.bf16.msra.mxu0 0
    %1076 = vmatprep.subr.bf16.mxu0 0
    %1077 = vmatpush1.bf16.msra.mxu0 0
    %1078 = vmatprep.subr.bf16.mxu0 0
    %1079 = vmatpush1.bf16.msra.mxu0 0
    %1080 = vmatprep.subr.bf16.mxu0 0
    %1081 = vmatpush1.bf16.msra.mxu0 0
    %1082 = vmatprep.subr.bf16.mxu0 0
    %1083 = vmatpush1.bf16.msra.mxu0 0
    %1084 = vmatprep.subr.bf16.mxu0 0
    %1085 = vmatpush1.bf16.msra.mxu0 0
    %1086 = vmatprep.mubr.bf16.mxu0 0
    %1087 = vmatmul.mubr.bf16.gmra.mrb[0].mxu0 %v1012
    %v1088 = vpop.f32.mrb[0].mxu0
    %v1089 = vadd.f32 0.0, %v1088
    %v1090 = vpop.f32.mrb[0].mxu0
    %v1091 = vadd.f32 0.0, %v1090
    %v1092 = vpop.f32.mrb[0].mxu0
    %v1093 = vpop.f32.mrb[0].mxu0
    %1094 = vdwg.mxu0
    %v1095 = vadd.f32 %v1008, %v1048
    %v1096 = vadd.f32 %v1009, %v1050
    %v1097 = vadd.f32 %v1010, %v1089
    %v1098 = vadd.f32 %v1011, %v1091
    %v1099 = vxor.u32 %v1095, 2147483648
    %v1100 = vxor.u32 %v1096, 2147483648
    %v1101 = vxor.u32 %v1097, 2147483648
    %v1102 = vmul.f32 %v1099, 1.442695
    %v1103 = vpow.pop %v1102
    %v1104 = vmul.f32 %v1100, 1.442695
    %v1105 = vpow.pop %v1104
    %v1106 = vmul.f32 %v1101, 1.442695
    %v1107 = vpow.pop %v1106
    %v1108 = vadd.f32 %v1103, 1.0
    %v1109 = vadd.f32 %v1105, 1.0
    %v1110 = vadd.f32 %v1107, 1.0
    %v1111 = vrcp.pop %v1108
    %v1112 = vmul.f32 1.0, %v1111
    %v1113 = vrcp.pop %v1109
    %v1114 = vmul.f32 1.0, %v1113
    %v1115 = vrcp.pop %v1110
    %v1116 = vmul.f32 1.0, %v1115
    %v1117 = vtanh.pop %v1098
    %v1118 = vmul.f32 %v1114, %v1003
    %v1119 = vmul.f32 %v1112, %v1117
    %v1120 = vadd.f32 %v1118, %v1119
    %v1121 = vtanh.pop %v1120
    %v1122 = vmul.f32 %v1116, %v1121
    %1123 = vst.msk [vmem:[#allocation2 + $0x18] sm:$0xff] %vm770, %v1122
    %1124 = vst.msk [vmem:[#allocation2 + $0x20] sm:$0xff] %vm772, %v1122
    %v1125 = vld [vmem:[#allocation3 + $0x80] sm:$0xff]
    %v1126 = vld [vmem:[#allocation3 + $0x88] sm:$0xff]
    %v1127 = vld [vmem:[#allocation3 + $0x90] sm:$0xff]
    %v1128 = vld [vmem:[#allocation3 + $0x98] sm:$0xff]
    %v1129 = vpack.c.bf16 %v1122, %v1122
    %1130 = vmatprep.subr.bf16.mxu0 %v597
    %1131 = vmatpush1.bf16.msra.mxu0 %v596
    %1132 = vmatprep.subr.bf16.mxu0 %v601
    %1133 = vmatpush1.bf16.msra.mxu0 %v600
    %1134 = vmatprep.subr.bf16.mxu0 %v605
    %1135 = vmatpush1.bf16.msra.mxu0 %v604
    %1136 = vmatprep.subr.bf16.mxu0 %v609
    %1137 = vmatpush1.bf16.msra.mxu0 %v608
    %1138 = vmatprep.subr.bf16.mxu0 %v613
    %1139 = vmatpush1.bf16.msra.mxu0 %v612
    %1140 = vmatprep.subr.bf16.mxu0 %v617
    %1141 = vmatpush1.bf16.msra.mxu0 %v616
    %1142 = vmatprep.subr.bf16.mxu0 %v621
    %1143 = vmatpush1.bf16.msra.mxu0 %v620
    %1144 = vmatprep.subr.bf16.mxu0 %v625
    %1145 = vmatpush1.bf16.msra.mxu0 %v624
    %1146 = vmatprep.subr.bf16.mxu0 0
    %1147 = vmatpush1.bf16.msra.mxu0 0
    %1148 = vmatprep.subr.bf16.mxu0 0
    %1149 = vmatpush1.bf16.msra.mxu0 0
    %1150 = vmatprep.subr.bf16.mxu0 0
    %1151 = vmatpush1.bf16.msra.mxu0 0
    %1152 = vmatprep.subr.bf16.mxu0 0
    %1153 = vmatpush1.bf16.msra.mxu0 0
    %1154 = vmatprep.subr.bf16.mxu0 0
    %1155 = vmatpush1.bf16.msra.mxu0 0
    %1156 = vmatprep.subr.bf16.mxu0 0
    %1157 = vmatpush1.bf16.msra.mxu0 0
    %1158 = vmatprep.subr.bf16.mxu0 0
    %1159 = vmatpush1.bf16.msra.mxu0 0
    %1160 = vmatprep.subr.bf16.mxu0 0
    %1161 = vmatpush1.bf16.msra.mxu0 0
    %1162 = vmatprep.mubr.bf16.mxu0 0
    %1163 = vmatmul.mubr.bf16.gmra.mrb[0].mxu0 %v1129
    %v1164 = vpop.f32.mrb[0].mxu0
    %v1165 = vadd.f32 0.0, %v1164
    %v1166 = vpop.f32.mrb[0].mxu0
    %v1167 = vadd.f32 0.0, %v1166
    %v1168 = vpop.f32.mrb[0].mxu0
    %v1169 = vpop.f32.mrb[0].mxu0
    %1170 = vdwg.mxu0
    %1171 = vmatprep.subr.bf16.mxu0 %v599
    %1172 = vmatpush1.bf16.msra.mxu0 %v598
    %1173 = vmatprep.subr.bf16.mxu0 %v603
    %1174 = vmatpush1.bf16.msra.mxu0 %v602
    %1175 = vmatprep.subr.bf16.mxu0 %v607
    %1176 = vmatpush1.bf16.msra.mxu0 %v606
    %1177 = vmatprep.subr.bf16.mxu0 %v611
    %1178 = vmatpush1.bf16.msra.mxu0 %v610
    %1179 = vmatprep.subr.bf16.mxu0 %v615
    %1180 = vmatpush1.bf16.msra.mxu0 %v614
    %1181 = vmatprep.subr.bf16.mxu0 %v619
    %1182 = vmatpush1.bf16.msra.mxu0 %v618
    %1183 = vmatprep.subr.bf16.mxu0 %v623
    %1184 = vmatpush1.bf16.msra.mxu0 %v622
    %1185 = vmatprep.subr.bf16.mxu0 %v627
    %1186 = vmatpush1.bf16.msra.mxu0 %v626
    %1187 = vmatprep.subr.bf16.mxu0 0
    %1188 = vmatpush1.bf16.msra.mxu0 0
    %1189 = vmatprep.subr.bf16.mxu0 0
    %1190 = vmatpush1.bf16.msra.mxu0 0
    %1191 = vmatprep.subr.bf16.mxu0 0
    %1192 = vmatpush1.bf16.msra.mxu0 0
    %1193 = vmatprep.subr.bf16.mxu0 0
    %1194 = vmatpush1.bf16.msra.mxu0 0
    %1195 = vmatprep.subr.bf16.mxu0 0
    %1196 = vmatpush1.bf16.msra.mxu0 0
    %1197 = vmatprep.subr.bf16.mxu0 0
    %1198 = vmatpush1.bf16.msra.mxu0 0
    %1199 = vmatprep.subr.bf16.mxu0 0
    %1200 = vmatpush1.bf16.msra.mxu0 0
    %1201 = vmatprep.subr.bf16.mxu0 0
    %1202 = vmatpush1.bf16.msra.mxu0 0
    %1203 = vmatprep.mubr.bf16.mxu0 0
    %1204 = vmatmul.mubr.bf16.gmra.mrb[0].mxu0 %v1129
    %v1205 = vpop.f32.mrb[0].mxu0
    %v1206 = vadd.f32 0.0, %v1205
    %v1207 = vpop.f32.mrb[0].mxu0
    %v1208 = vadd.f32 0.0, %v1207
    %v1209 = vpop.f32.mrb[0].mxu0
    %v1210 = vpop.f32.mrb[0].mxu0
    %1211 = vdwg.mxu0
    %v1212 = vadd.f32 %v1125, %v1165
    %v1213 = vadd.f32 %v1126, %v1167
    %v1214 = vadd.f32 %v1127, %v1206
    %v1215 = vadd.f32 %v1128, %v1208
    %v1216 = vxor.u32 %v1212, 2147483648
    %v1217 = vxor.u32 %v1213, 2147483648
    %v1218 = vxor.u32 %v1214, 2147483648
    %v1219 = vmul.f32 %v1216, 1.442695
    %v1220 = vpow.pop %v1219
    %v1221 = vmul.f32 %v1217, 1.442695
    %v1222 = vpow.pop %v1221
    %v1223 = vmul.f32 %v1218, 1.442695
    %v1224 = vpow.pop %v1223
    %v1225 = vadd.f32 %v1220, 1.0
    %v1226 = vadd.f32 %v1222, 1.0
    %v1227 = vadd.f32 %v1224, 1.0
    %v1228 = vrcp.pop %v1225
    %v1229 = vmul.f32 1.0, %v1228
    %v1230 = vrcp.pop %v1226
    %v1231 = vmul.f32 1.0, %v1230
    %v1232 = vrcp.pop %v1227
    %v1233 = vmul.f32 1.0, %v1232
    %v1234 = vtanh.pop %v1215
    %v1235 = vmul.f32 %v1231, %v1120
    %v1236 = vmul.f32 %v1229, %v1234
    %v1237 = vadd.f32 %v1235, %v1236
    %v1238 = vtanh.pop %v1237
    %v1239 = vmul.f32 %v1233, %v1238
    %1240 = vst.msk [vmem:[#allocation2 + $0x20] sm:$0xff] %vm770, %v1239
    %1241 = vst.msk [vmem:[#allocation2 + $0x18] sm:$0xff] %vm772, %v1239
    %v1242 = vld [vmem:[#allocation3 + $0xa0] sm:$0xff]
    %v1243 = vld [vmem:[#allocation3 + $0xa8] sm:$0xff]
    %v1244 = vld [vmem:[#allocation3 + $0xb0] sm:$0xff]
    %v1245 = vld [vmem:[#allocation3 + $0xb8] sm:$0xff]
    %v1246 = vpack.c.bf16 %v1239, %v1239
    %1247 = vmatprep.subr.bf16.mxu0 %v597
    %1248 = vmatpush1.bf16.msra.mxu0 %v596
    %1249 = vmatprep.subr.bf16.mxu0 %v601
    %1250 = vmatpush1.bf16.msra.mxu0 %v600
    %1251 = vmatprep.subr.bf16.mxu0 %v605
    %1252 = vmatpush1.bf16.msra.mxu0 %v604
    %1253 = vmatprep.subr.bf16.mxu0 %v609
    %1254 = vmatpush1.bf16.msra.mxu0 %v608
    %1255 = vmatprep.subr.bf16.mxu0 %v613
    %1256 = vmatpush1.bf16.msra.mxu0 %v612
    %1257 = vmatprep.subr.bf16.mxu0 %v617
    %1258 = vmatpush1.bf16.msra.mxu0 %v616
    %1259 = vmatprep.subr.bf16.mxu0 %v621
    %1260 = vmatpush1.bf16.msra.mxu0 %v620
    %1261 = vmatprep.subr.bf16.mxu0 %v625
    %1262 = vmatpush1.bf16.msra.mxu0 %v624
    %1263 = vmatprep.subr.bf16.mxu0 0
    %1264 = vmatpush1.bf16.msra.mxu0 0
    %1265 = vmatprep.subr.bf16.mxu0 0
    %1266 = vmatpush1.bf16.msra.mxu0 0
    %1267 = vmatprep.subr.bf16.mxu0 0
    %1268 = vmatpush1.bf16.msra.mxu0 0
    %1269 = vmatprep.subr.bf16.mxu0 0
    %1270 = vmatpush1.bf16.msra.mxu0 0
    %1271 = vmatprep.subr.bf16.mxu0 0
    %1272 = vmatpush1.bf16.msra.mxu0 0
    %1273 = vmatprep.subr.bf16.mxu0 0
    %1274 = vmatpush1.bf16.msra.mxu0 0
    %1275 = vmatprep.subr.bf16.mxu0 0
    %1276 = vmatpush1.bf16.msra.mxu0 0
    %1277 = vmatprep.subr.bf16.mxu0 0
    %1278 = vmatpush1.bf16.msra.mxu0 0
    %1279 = vmatprep.mubr.bf16.mxu0 0
    %1280 = vmatmul.mubr.bf16.gmra.mrb[0].mxu0 %v1246
    %v1281 = vpop.f32.mrb[0].mxu0
    %v1282 = vadd.f32 0.0, %v1281
    %v1283 = vpop.f32.mrb[0].mxu0
    %v1284 = vadd.f32 0.0, %v1283
    %v1285 = vpop.f32.mrb[0].mxu0
    %v1286 = vpop.f32.mrb[0].mxu0
    %1287 = vdwg.mxu0
    %1288 = vmatprep.subr.bf16.mxu0 %v599
    %1289 = vmatpush1.bf16.msra.mxu0 %v598
    %1290 = vmatprep.subr.bf16.mxu0 %v603
    %1291 = vmatpush1.bf16.msra.mxu0 %v602
    %1292 = vmatprep.subr.bf16.mxu0 %v607
    %1293 = vmatpush1.bf16.msra.mxu0 %v606
    %1294 = vmatprep.subr.bf16.mxu0 %v611
    %1295 = vmatpush1.bf16.msra.mxu0 %v610
    %1296 = vmatprep.subr.bf16.mxu0 %v615
    %1297 = vmatpush1.bf16.msra.mxu0 %v614
    %1298 = vmatprep.subr.bf16.mxu0 %v619
    %1299 = vmatpush1.bf16.msra.mxu0 %v618
    %1300 = vmatprep.subr.bf16.mxu0 %v623
    %1301 = vmatpush1.bf16.msra.mxu0 %v622
    %1302 = vmatprep.subr.bf16.mxu0 %v627
    %1303 = vmatpush1.bf16.msra.mxu0 %v626
    %1304 = vmatprep.subr.bf16.mxu0 0
    %1305 = vmatpush1.bf16.msra.mxu0 0
    %1306 = vmatprep.subr.bf16.mxu0 0
    %1307 = vmatpush1.bf16.msra.mxu0 0
    %1308 = vmatprep.subr.bf16.mxu0 0
    %1309 = vmatpush1.bf16.msra.mxu0 0
    %1310 = vmatprep.subr.bf16.mxu0 0
    %1311 = vmatpush1.bf16.msra.mxu0 0
    %1312 = vmatprep.subr.bf16.mxu0 0
    %1313 = vmatpush1.bf16.msra.mxu0 0
    %1314 = vmatprep.subr.bf16.mxu0 0
    %1315 = vmatpush1.bf16.msra.mxu0 0
    %1316 = vmatprep.subr.bf16.mxu0 0
    %1317 = vmatpush1.bf16.msra.mxu0 0
    %1318 = vmatprep.subr.bf16.mxu0 0
    %1319 = vmatpush1.bf16.msra.mxu0 0
    %1320 = vmatprep.mubr.bf16.mxu0 0
    %1321 = vmatmul.mubr.bf16.gmra.mrb[0].mxu0 %v1246
    %v1322 = vpop.f32.mrb[0].mxu0
    %v1323 = vadd.f32 0.0, %v1322
    %v1324 = vpop.f32.mrb[0].mxu0
    %v1325 = vadd.f32 0.0, %v1324
    %v1326 = vpop.f32.mrb[0].mxu0
    %v1327 = vpop.f32.mrb[0].mxu0
    %1328 = vdwg.mxu0
    %v1329 = vadd.f32 %v1242, %v1282
    %v1330 = vadd.f32 %v1243, %v1284
    %v1331 = vadd.f32 %v1244, %v1323
    %v1332 = vadd.f32 %v1245, %v1325
    %v1333 = vxor.u32 %v1329, 2147483648
    %v1334 = vxor.u32 %v1330, 2147483648
    %v1335 = vxor.u32 %v1331, 2147483648
    %v1336 = vmul.f32 %v1333, 1.442695
    %v1337 = vpow.pop %v1336
    %v1338 = vmul.f32 %v1334, 1.442695
    %v1339 = vpow.pop %v1338
    %v1340 = vmul.f32 %v1335, 1.442695
    %v1341 = vpow.pop %v1340
    %v1342 = vadd.f32 %v1337, 1.0
    %v1343 = vadd.f32 %v1339, 1.0
    %v1344 = vadd.f32 %v1341, 1.0
    %v1345 = vrcp.pop %v1342
    %v1346 = vmul.f32 1.0, %v1345
    %v1347 = vrcp.pop %v1343
    %v1348 = vmul.f32 1.0, %v1347
    %v1349 = vrcp.pop %v1344
    %v1350 = vmul.f32 1.0, %v1349
    %v1351 = vtanh.pop %v1332
    %v1352 = vmul.f32 %v1348, %v1237
    %v1353 = vmul.f32 %v1346, %v1351
    %v1354 = vadd.f32 %v1352, %v1353
    %v1355 = vtanh.pop %v1354
    %v1356 = vmul.f32 %v1350, %v1355
    %1357 = vst.msk [vmem:[#allocation2 + $0x28] sm:$0xff] %vm770, %v1356
    %1358 = vst.msk [vmem:[#allocation2 + $0x10] sm:$0xff] %vm772, %v1356
    %v1359 = vld [vmem:[#allocation3 + $0xc0] sm:$0xff]
    %v1360 = vld [vmem:[#allocation3 + $0xc8] sm:$0xff]
    %v1361 = vld [vmem:[#allocation3 + $0xd0] sm:$0xff]
    %v1362 = vld [vmem:[#allocation3 + $0xd8] sm:$0xff]
    %v1363 = vpack.c.bf16 %v1356, %v1356
    %1364 = vmatprep.subr.bf16.mxu0 %v597
    %1365 = vmatpush1.bf16.msra.mxu0 %v596
    %1366 = vmatprep.subr.bf16.mxu0 %v601
    %1367 = vmatpush1.bf16.msra.mxu0 %v600
    %1368 = vmatprep.subr.bf16.mxu0 %v605
    %1369 = vmatpush1.bf16.msra.mxu0 %v604
    %1370 = vmatprep.subr.bf16.mxu0 %v609
    %1371 = vmatpush1.bf16.msra.mxu0 %v608
    %1372 = vmatprep.subr.bf16.mxu0 %v613
    %1373 = vmatpush1.bf16.msra.mxu0 %v612
    %1374 = vmatprep.subr.bf16.mxu0 %v617
    %1375 = vmatpush1.bf16.msra.mxu0 %v616
    %1376 = vmatprep.subr.bf16.mxu0 %v621
    %1377 = vmatpush1.bf16.msra.mxu0 %v620
    %1378 = vmatprep.subr.bf16.mxu0 %v625
    %1379 = vmatpush1.bf16.msra.mxu0 %v624
    %1380 = vmatprep.subr.bf16.mxu0 0
    %1381 = vmatpush1.bf16.msra.mxu0 0
    %1382 = vmatprep.subr.bf16.mxu0 0
    %1383 = vmatpush1.bf16.msra.mxu0 0
    %1384 = vmatprep.subr.bf16.mxu0 0
    %1385 = vmatpush1.bf16.msra.mxu0 0
    %1386 = vmatprep.subr.bf16.mxu0 0
    %1387 = vmatpush1.bf16.msra.mxu0 0
    %1388 = vmatprep.subr.bf16.mxu0 0
    %1389 = vmatpush1.bf16.msra.mxu0 0
    %1390 = vmatprep.subr.bf16.mxu0 0
    %1391 = vmatpush1.bf16.msra.mxu0 0
    %1392 = vmatprep.subr.bf16.mxu0 0
    %1393 = vmatpush1.bf16.msra.mxu0 0
    %1394 = vmatprep.subr.bf16.mxu0 0
    %1395 = vmatpush1.bf16.msra.mxu0 0
    %1396 = vmatprep.mubr.bf16.mxu0 0
    %1397 = vmatmul.mubr.bf16.gmra.mrb[0].mxu0 %v1363
    %v1398 = vpop.f32.mrb[0].mxu0
    %v1399 = vadd.f32 0.0, %v1398
    %v1400 = vpop.f32.mrb[0].mxu0
    %v1401 = vadd.f32 0.0, %v1400
    %v1402 = vpop.f32.mrb[0].mxu0
    %v1403 = vpop.f32.mrb[0].mxu0
    %1404 = vdwg.mxu0
    %1405 = vmatprep.subr.bf16.mxu0 %v599
    %1406 = vmatpush1.bf16.msra.mxu0 %v598
    %1407 = vmatprep.subr.bf16.mxu0 %v603
    %1408 = vmatpush1.bf16.msra.mxu0 %v602
    %1409 = vmatprep.subr.bf16.mxu0 %v607
    %1410 = vmatpush1.bf16.msra.mxu0 %v606
    %1411 = vmatprep.subr.bf16.mxu0 %v611
    %1412 = vmatpush1.bf16.msra.mxu0 %v610
    %1413 = vmatprep.subr.bf16.mxu0 %v615
    %1414 = vmatpush1.bf16.msra.mxu0 %v614
    %1415 = vmatprep.subr.bf16.mxu0 %v619
    %1416 = vmatpush1.bf16.msra.mxu0 %v618
    %1417 = vmatprep.subr.bf16.mxu0 %v623
    %1418 = vmatpush1.bf16.msra.mxu0 %v622
    %1419 = vmatprep.subr.bf16.mxu0 %v627
    %1420 = vmatpush1.bf16.msra.mxu0 %v626
    %1421 = vmatprep.subr.bf16.mxu0 0
    %1422 = vmatpush1.bf16.msra.mxu0 0
    %1423 = vmatprep.subr.bf16.mxu0 0
    %1424 = vmatpush1.bf16.msra.mxu0 0
    %1425 = vmatprep.subr.bf16.mxu0 0
    %1426 = vmatpush1.bf16.msra.mxu0 0
    %1427 = vmatprep.subr.bf16.mxu0 0
    %1428 = vmatpush1.bf16.msra.mxu0 0
    %1429 = vmatprep.subr.bf16.mxu0 0
    %1430 = vmatpush1.bf16.msra.mxu0 0
    %1431 = vmatprep.subr.bf16.mxu0 0
    %1432 = vmatpush1.bf16.msra.mxu0 0
    %1433 = vmatprep.subr.bf16.mxu0 0
    %1434 = vmatpush1.bf16.msra.mxu0 0
    %1435 = vmatprep.subr.bf16.mxu0 0
    %1436 = vmatpush1.bf16.msra.mxu0 0
    %1437 = vmatprep.mubr.bf16.mxu0 0
    %1438 = vmatmul.mubr.bf16.gmra.mrb[0].mxu0 %v1363
    %v1439 = vpop.f32.mrb[0].mxu0
    %v1440 = vadd.f32 0.0, %v1439
    %v1441 = vpop.f32.mrb[0].mxu0
    %v1442 = vadd.f32 0.0, %v1441
    %v1443 = vpop.f32.mrb[0].mxu0
    %v1444 = vpop.f32.mrb[0].mxu0
    %1445 = vdwg.mxu0
    %v1446 = vadd.f32 %v1359, %v1399
    %v1447 = vadd.f32 %v1360, %v1401
    %v1448 = vadd.f32 %v1361, %v1440
    %v1449 = vadd.f32 %v1362, %v1442
    %v1450 = vxor.u32 %v1446, 2147483648
    %v1451 = vxor.u32 %v1447, 2147483648
    %v1452 = vxor.u32 %v1448, 2147483648
    %v1453 = vmul.f32 %v1450, 1.442695
    %v1454 = vpow.pop %v1453
    %v1455 = vmul.f32 %v1451, 1.442695
    %v1456 = vpow.pop %v1455
    %v1457 = vmul.f32 %v1452, 1.442695
    %v1458 = vpow.pop %v1457
    %v1459 = vadd.f32 %v1454, 1.0
    %v1460 = vadd.f32 %v1456, 1.0
    %v1461 = vadd.f32 %v1458, 1.0
    %v1462 = vrcp.pop %v1459
    %v1463 = vmul.f32 1.0, %v1462
    %v1464 = vrcp.pop %v1460
    %v1465 = vmul.f32 1.0, %v1464
    %v1466 = vrcp.pop %v1461
    %v1467 = vmul.f32 1.0, %v1466
    %v1468 = vtanh.pop %v1449
    %v1469 = vmul.f32 %v1465, %v1354
    %v1470 = vmul.f32 %v1463, %v1468
    %v1471 = vadd.f32 %v1469, %v1470
    %v1472 = vtanh.pop %v1471
    %v1473 = vmul.f32 %v1467, %v1472
    %1474 = vst.msk [vmem:[#allocation2 + $0x30] sm:$0xff] %vm770, %v1473
    %1475 = vst.msk [vmem:[#allocation2 + $0x8] sm:$0xff] %vm772, %v1473
    %v1476 = vld [vmem:[#allocation3 + $0xe0] sm:$0xff]
    %v1477 = vld [vmem:[#allocation3 + $0xe8] sm:$0xff]
    %v1478 = vld [vmem:[#allocation3 + $0xf0] sm:$0xff]
    %v1479 = vld [vmem:[#allocation3 + $0xf8] sm:$0xff]
    %v1480 = vpack.c.bf16 %v1473, %v1473
    %1481 = vmatprep.subr.bf16.mxu0 %v597
    %1482 = vmatpush1.bf16.msra.mxu0 %v596
    %1483 = vmatprep.subr.bf16.mxu0 %v601
    %1484 = vmatpush1.bf16.msra.mxu0 %v600
    %1485 = vmatprep.subr.bf16.mxu0 %v605
    %1486 = vmatpush1.bf16.msra.mxu0 %v604
    %1487 = vmatprep.subr.bf16.mxu0 %v609
    %1488 = vmatpush1.bf16.msra.mxu0 %v608
    %1489 = vmatprep.subr.bf16.mxu0 %v613
    %1490 = vmatpush1.bf16.msra.mxu0 %v612
    %1491 = vmatprep.subr.bf16.mxu0 %v617
    %1492 = vmatpush1.bf16.msra.mxu0 %v616
    %1493 = vmatprep.subr.bf16.mxu0 %v621
    %1494 = vmatpush1.bf16.msra.mxu0 %v620
    %1495 = vmatprep.subr.bf16.mxu0 %v625
    %1496 = vmatpush1.bf16.msra.mxu0 %v624
    %1497 = vmatprep.subr.bf16.mxu0 0
    %1498 = vmatpush1.bf16.msra.mxu0 0
    %1499 = vmatprep.subr.bf16.mxu0 0
    %1500 = vmatpush1.bf16.msra.mxu0 0
    %1501 = vmatprep.subr.bf16.mxu0 0
    %1502 = vmatpush1.bf16.msra.mxu0 0
    %1503 = vmatprep.subr.bf16.mxu0 0
    %1504 = vmatpush1.bf16.msra.mxu0 0
    %1505 = vmatprep.subr.bf16.mxu0 0
    %1506 = vmatpush1.bf16.msra.mxu0 0
    %1507 = vmatprep.subr.bf16.mxu0 0
    %1508 = vmatpush1.bf16.msra.mxu0 0
    %1509 = vmatprep.subr.bf16.mxu0 0
    %1510 = vmatpush1.bf16.msra.mxu0 0
    %1511 = vmatprep.subr.bf16.mxu0 0
    %1512 = vmatpush1.bf16.msra.mxu0 0
    %1513 = vmatprep.mubr.bf16.mxu0 0
    %1514 = vmatmul.mubr.bf16.gmra.mrb[0].mxu0 %v1480
    %v1515 = vpop.f32.mrb[0].mxu0
    %v1516 = vadd.f32 0.0, %v1515
    %v1517 = vpop.f32.mrb[0].mxu0
    %v1518 = vadd.f32 0.0, %v1517
    %v1519 = vpop.f32.mrb[0].mxu0
    %v1520 = vpop.f32.mrb[0].mxu0
    %1521 = vdwg.mxu0
    %1522 = vmatprep.subr.bf16.mxu0 %v599
    %1523 = vmatpush1.bf16.msra.mxu0 %v598
    %1524 = vmatprep.subr.bf16.mxu0 %v603
    %1525 = vmatpush1.bf16.msra.mxu0 %v602
    %1526 = vmatprep.subr.bf16.mxu0 %v607
    %1527 = vmatpush1.bf16.msra.mxu0 %v606
    %1528 = vmatprep.subr.bf16.mxu0 %v611
    %1529 = vmatpush1.bf16.msra.mxu0 %v610
    %1530 = vmatprep.subr.bf16.mxu0 %v615
    %1531 = vmatpush1.bf16.msra.mxu0 %v614
    %1532 = vmatprep.subr.bf16.mxu0 %v619
    %1533 = vmatpush1.bf16.msra.mxu0 %v618
    %1534 = vmatprep.subr.bf16.mxu0 %v623
    %1535 = vmatpush1.bf16.msra.mxu0 %v622
    %1536 = vmatprep.subr.bf16.mxu0 %v627
    %1537 = vmatpush1.bf16.msra.mxu0 %v626
    %1538 = vmatprep.subr.bf16.mxu0 0
    %1539 = vmatpush1.bf16.msra.mxu0 0
    %1540 = vmatprep.subr.bf16.mxu0 0
    %1541 = vmatpush1.bf16.msra.mxu0 0
    %1542 = vmatprep.subr.bf16.mxu0 0
    %1543 = vmatpush1.bf16.msra.mxu0 0
    %1544 = vmatprep.subr.bf16.mxu0 0
    %1545 = vmatpush1.bf16.msra.mxu0 0
    %1546 = vmatprep.subr.bf16.mxu0 0
    %1547 = vmatpush1.bf16.msra.mxu0 0
    %1548 = vmatprep.subr.bf16.mxu0 0
    %1549 = vmatpush1.bf16.msra.mxu0 0
    %1550 = vmatprep.subr.bf16.mxu0 0
    %1551 = vmatpush1.bf16.msra.mxu0 0
    %1552 = vmatprep.subr.bf16.mxu0 0
    %1553 = vmatpush1.bf16.msra.mxu0 0
    %1554 = vmatprep.mubr.bf16.mxu0 0
    %1555 = vmatmul.mubr.bf16.gmra.mrb[0].mxu0 %v1480
    %v1556 = vpop.f32.mrb[0].mxu0
    %v1557 = vadd.f32 0.0, %v1556
    %v1558 = vpop.f32.mrb[0].mxu0
    %v1559 = vadd.f32 0.0, %v1558
    %v1560 = vpop.f32.mrb[0].mxu0
    %v1561 = vpop.f32.mrb[0].mxu0
    %1562 = vdwg.mxu0
    %v1563 = vadd.f32 %v1476, %v1516
    %v1564 = vadd.f32 %v1477, %v1518
    %v1565 = vadd.f32 %v1478, %v1557
    %v1566 = vadd.f32 %v1479, %v1559
    %v1567 = vxor.u32 %v1563, 2147483648
    %v1568 = vxor.u32 %v1564, 2147483648
    %v1569 = vxor.u32 %v1565, 2147483648
    %v1570 = vmul.f32 %v1567, 1.442695
    %v1571 = vpow.pop %v1570
    %v1572 = vmul.f32 %v1568, 1.442695
    %v1573 = vpow.pop %v1572
    %v1574 = vmul.f32 %v1569, 1.442695
    %v1575 = vpow.pop %v1574
    %v1576 = vadd.f32 %v1571, 1.0
    %v1577 = vadd.f32 %v1573, 1.0
    %v1578 = vadd.f32 %v1575, 1.0
    %v1579 = vrcp.pop %v1576
    %v1580 = vmul.f32 1.0, %v1579
    %v1581 = vrcp.pop %v1577
    %v1582 = vmul.f32 1.0, %v1581
    %v1583 = vrcp.pop %v1578
    %v1584 = vmul.f32 1.0, %v1583
    %v1585 = vtanh.pop %v1566
    %v1586 = vmul.f32 %v1582, %v1471
    %v1587 = vmul.f32 %v1580, %v1585
    %v1588 = vadd.f32 %v1586, %v1587
    %v1589 = vtanh.pop %v1588
    %v1590 = vmul.f32 %v1584, %v1589
    %1591 = vst.msk [vmem:[#allocation2 + $0x38] sm:$0xff] %vm770, %v1590
    %1592 = vst.msk [vmem:[#allocation2] sm:$0xff] %vm772, %v1590
    %v1593 = vld [vmem:[#allocation2] sm:$0xff]
    %v1594 = vld [vmem:[#allocation2 + $0x8] sm:$0xff]
    %v1595 = vld [vmem:[#allocation2 + $0x10] sm:$0xff]
    %v1596 = vld [vmem:[#allocation2 + $0x18] sm:$0xff]
    %v1597 = vld [vmem:[#allocation2 + $0x20] sm:$0xff]
    %v1598 = vld [vmem:[#allocation2 + $0x28] sm:$0xff]
    %v1599 = vld [vmem:[#allocation2 + $0x30] sm:$0xff]
    %v1600 = vld [vmem:[#allocation2 + $0x38] sm:$0xff]
    %v1601 = vpack.c.bf16 %v1594, %v1593
    %v1602 = vpack.c.bf16 %v1596, %v1595
    %v1603 = vpack.c.bf16 %v1598, %v1597
    %v1604 = vpack.c.bf16 %v1600, %v1599
    %v1605 = vld [vmem:[#allocation11] sm:$0xff]
    %v1606 = vld [vmem:[#allocation11 + $0x8] sm:$0xff]
    %v1607 = vld [vmem:[#allocation11 + $0x10] sm:$0xff]
    %v1608 = vld [vmem:[#allocation11 + $0x18] sm:$0xff]
    %v1609 = vld [vmem:[#allocation11 + $0x20] sm:$0xff]
    %v1610 = vld [vmem:[#allocation11 + $0x28] sm:$0xff]
    %v1611 = vld [vmem:[#allocation11 + $0x30] sm:$0xff]
    %v1612 = vld [vmem:[#allocation11 + $0x38] sm:$0xff]
    %v1613 = vld [vmem:[#allocation11 + $0x40] sm:$0xff]
    %v1614 = vld [vmem:[#allocation11 + $0x48] sm:$0xff]
    %v1615 = vld [vmem:[#allocation11 + $0x50] sm:$0xff]
    %v1616 = vld [vmem:[#allocation11 + $0x58] sm:$0xff]
    %v1617 = vld [vmem:[#allocation11 + $0x60] sm:$0xff]
    %v1618 = vld [vmem:[#allocation11 + $0x68] sm:$0xff]
    %v1619 = vld [vmem:[#allocation11 + $0x70] sm:$0xff]
    %v1620 = vld [vmem:[#allocation11 + $0x78] sm:$0xff]
    %v1621 = vld [vmem:[%s6] sm:$0x3]
    %v1623 = vlaneseq
    %v1624 = vshrl.u32 %v1623, 7
    %v1625 = vsub.s32 0, %v1624
    %v1626 = vrot.slane %v1621, %v1625
    %v1627 = vlaneseq
    %v1628 = vshrl.u32 %v1627, 7
    %v1629 = vsub.s32 1, %v1628
    %v1630 = vrot.slane %v1621, %v1629
    %v1649 = vunpack.c.l.b16 %v1605
    %v1650 = vunpack.c.h.b16 %v1605
    %v1651 = vunpack.c.l.b16 %v1606
    %v1652 = vunpack.c.h.b16 %v1606
    %v1653 = vunpack.c.l.b16 %v1607
    %v1654 = vunpack.c.h.b16 %v1607
    %v1655 = vunpack.c.l.b16 %v1608
    %v1656 = vunpack.c.h.b16 %v1608
    %v1657 = vunpack.c.l.b16 %v1609
    %v1658 = vunpack.c.h.b16 %v1609
    %v1659 = vunpack.c.l.b16 %v1610
    %v1660 = vunpack.c.h.b16 %v1610
    %v1661 = vunpack.c.l.b16 %v1611
    %v1662 = vunpack.c.h.b16 %v1611
    %v1663 = vunpack.c.l.b16 %v1612
    %v1664 = vunpack.c.h.b16 %v1612
    %v1665 = vunpack.c.l.b16 %v1613
    %v1666 = vunpack.c.h.b16 %v1613
    %v1667 = vunpack.c.l.b16 %v1614
    %v1668 = vunpack.c.h.b16 %v1614
    %v1669 = vunpack.c.l.b16 %v1615
    %v1670 = vunpack.c.h.b16 %v1615
    %v1671 = vunpack.c.l.b16 %v1616
    %v1672 = vunpack.c.h.b16 %v1616
    %v1673 = vunpack.c.l.b16 %v1617
    %v1674 = vunpack.c.h.b16 %v1617
    %v1675 = vunpack.c.l.b16 %v1618
    %v1676 = vunpack.c.h.b16 %v1618
    %v1677 = vunpack.c.l.b16 %v1619
    %v1678 = vunpack.c.h.b16 %v1619
    %v1679 = vunpack.c.l.b16 %v1620
    %v1680 = vunpack.c.h.b16 %v1620
    %v1681 = vpack.c.b16 %v1651, %v1649
    %v1682 = vpack.c.b16 %v1652, %v1650
    %v1683 = vpack.c.b16 %v1655, %v1653
    %v1684 = vpack.c.b16 %v1656, %v1654
    %v1685 = vpack.c.b16 %v1659, %v1657
    %v1686 = vpack.c.b16 %v1660, %v1658
    %v1687 = vpack.c.b16 %v1663, %v1661
    %v1688 = vpack.c.b16 %v1664, %v1662
    %v1689 = vpack.c.b16 %v1667, %v1665
    %v1690 = vpack.c.b16 %v1668, %v1666
    %v1691 = vpack.c.b16 %v1671, %v1669
    %v1692 = vpack.c.b16 %v1672, %v1670
    %v1693 = vpack.c.b16 %v1675, %v1673
    %v1694 = vpack.c.b16 %v1676, %v1674
    %v1695 = vpack.c.b16 %v1679, %v1677
    %v1696 = vpack.c.b16 %v1680, %v1678
    %1713 = vmatprep.subr.bf16.mxu0 %v1682
    %1714 = vmatpush1.bf16.msra.mxu0 %v1681
    %1715 = vmatprep.subr.bf16.mxu0 %v1684
    %1716 = vmatpush1.bf16.msra.mxu0 %v1683
    %1717 = vmatprep.subr.bf16.mxu0 %v1686
    %1718 = vmatpush1.bf16.msra.mxu0 %v1685
    %1719 = vmatprep.subr.bf16.mxu0 %v1688
    %1720 = vmatpush1.bf16.msra.mxu0 %v1687
    %1721 = vmatprep.subr.bf16.mxu0 %v1690
    %1722 = vmatpush1.bf16.msra.mxu0 %v1689
    %1723 = vmatprep.subr.bf16.mxu0 %v1692
    %1724 = vmatpush1.bf16.msra.mxu0 %v1691
    %1725 = vmatprep.subr.bf16.mxu0 %v1694
    %1726 = vmatpush1.bf16.msra.mxu0 %v1693
    %1727 = vmatprep.subr.bf16.mxu0 %v1696
    %1728 = vmatpush1.bf16.msra.mxu0 %v1695
    %1729 = vmatprep.subr.bf16.mxu0 0
    %1730 = vmatpush1.bf16.msra.mxu0 0
    %1731 = vmatprep.subr.bf16.mxu0 0
    %1732 = vmatpush1.bf16.msra.mxu0 0
    %1733 = vmatprep.subr.bf16.mxu0 0
    %1734 = vmatpush1.bf16.msra.mxu0 0
    %1735 = vmatprep.subr.bf16.mxu0 0
    %1736 = vmatpush1.bf16.msra.mxu0 0
    %1737 = vmatprep.subr.bf16.mxu0 0
    %1738 = vmatpush1.bf16.msra.mxu0 0
    %1739 = vmatprep.subr.bf16.mxu0 0
    %1740 = vmatpush1.bf16.msra.mxu0 0
    %1741 = vmatprep.subr.bf16.mxu0 0
    %1742 = vmatpush1.bf16.msra.mxu0 0
    %1743 = vmatprep.subr.bf16.mxu0 0
    %1744 = vmatpush1.bf16.msra.mxu0 0
    %1745 = vmatprep.mubr.bf16.mxu0 0
    %1746 = vmatmul.mubr.bf16.gmra.mrb[0].mxu0 %v1601
    %v1747 = vpop.f32.mrb[0].mxu0
    %v1748 = vadd.f32 %v1626, %v1747
    %v1749 = vpop.f32.mrb[0].mxu0
    %v1750 = vadd.f32 %v1630, %v1749
    %v1751 = vpop.f32.mrb[0].mxu0
    %v1752 = vadd.f32 %v1626, %v1751
    %v1753 = vpop.f32.mrb[0].mxu0
    %v1754 = vadd.f32 %v1630, %v1753
    %1755 = vmatprep.mubr.bf16.mxu0 0
    %1756 = vmatmul.mubr.bf16.gmra.mrb[0].mxu0 %v1602
    %v1757 = vpop.f32.mrb[0].mxu0
    %v1758 = vadd.f32 %v1626, %v1757
    %v1759 = vpop.f32.mrb[0].mxu0
    %v1760 = vadd.f32 %v1630, %v1759
    %v1761 = vpop.f32.mrb[0].mxu0
    %v1762 = vadd.f32 %v1626, %v1761
    %v1763 = vpop.f32.mrb[0].mxu0
    %v1764 = vadd.f32 %v1630, %v1763
    %1765 = vmatprep.mubr.bf16.mxu0 0
    %1766 = vmatmul.mubr.bf16.gmra.mrb[0].mxu0 %v1603
    %v1767 = vpop.f32.mrb[0].mxu0
    %v1768 = vadd.f32 %v1626, %v1767
    %v1769 = vpop.f32.mrb[0].mxu0
    %v1770 = vadd.f32 %v1630, %v1769
    %v1771 = vpop.f32.mrb[0].mxu0
    %v1772 = vadd.f32 %v1626, %v1771
    %v1773 = vpop.f32.mrb[0].mxu0
    %v1774 = vadd.f32 %v1630, %v1773
    %1775 = vmatprep.mubr.bf16.mxu0 0
    %1776 = vmatmul.mubr.bf16.gmra.mrb[0].mxu0 %v1604
    %v1777 = vpop.f32.mrb[0].mxu0
    %v1778 = vadd.f32 %v1626, %v1777
    %v1779 = vpop.f32.mrb[0].mxu0
    %v1780 = vadd.f32 %v1630, %v1779
    %v1781 = vpop.f32.mrb[0].mxu0
    %v1782 = vadd.f32 %v1626, %v1781
    %v1783 = vpop.f32.mrb[0].mxu0
    %v1784 = vadd.f32 %v1630, %v1783
    %1785 = vdwg.mxu0
    %1786 = vst [vmem:[#allocation4] sm:$0xff] %v1748
    %1787 = vst [vmem:[#allocation4 + $0x8] sm:$0xff] %v1750
    %1788 = vst [vmem:[#allocation4 + $0x10] sm:$0xff] %v1752
    %1789 = vst [vmem:[#allocation4 + $0x18] sm:$0xff] %v1754
    %1790 = vst [vmem:[#allocation4 + $0x20] sm:$0xff] %v1758
    %1791 = vst [vmem:[#allocation4 + $0x28] sm:$0xff] %v1760
    %1792 = vst [vmem:[#allocation4 + $0x30] sm:$0xff] %v1762
    %1793 = vst [vmem:[#allocation4 + $0x38] sm:$0xff] %v1764
    %1794 = vst [vmem:[#allocation4 + $0x40] sm:$0xff] %v1768
    %1795 = vst [vmem:[#allocation4 + $0x48] sm:$0xff] %v1770
    %1796 = vst [vmem:[#allocation4 + $0x50] sm:$0xff] %v1772
    %1797 = vst [vmem:[#allocation4 + $0x58] sm:$0xff] %v1774
    %1798 = vst [vmem:[#allocation4 + $0x60] sm:$0xff] %v1778
    %1799 = vst [vmem:[#allocation4 + $0x68] sm:$0xff] %v1780
    %1800 = vst [vmem:[#allocation4 + $0x70] sm:$0xff] %v1782
    %1801 = vst [vmem:[#allocation4 + $0x78] sm:$0xff] %v1784
    %v1802 = vld [vmem:[#allocation2 + $0x38] sm:$0xff]
    %v1803 = vpack.c.bf16 %v1802, %v1802
    %v1804 = vld [vmem:[#allocation14] sm:$0xff]
    %v1805 = vld [vmem:[#allocation14 + $0x8] sm:$0xff]
    %v1806 = vld [vmem:[#allocation14 + $0x10] sm:$0xff]
    %v1807 = vld [vmem:[#allocation14 + $0x18] sm:$0xff]
    %v1808 = vld [vmem:[#allocation14 + $0x20] sm:$0xff]
    %v1809 = vld [vmem:[#allocation14 + $0x28] sm:$0xff]
    %v1810 = vld [vmem:[#allocation14 + $0x30] sm:$0xff]
    %v1811 = vld [vmem:[#allocation14 + $0x38] sm:$0xff]
    %v1812 = vld [vmem:[#allocation14 + $0x40] sm:$0xff]
    %v1813 = vld [vmem:[#allocation14 + $0x48] sm:$0xff]
    %v1814 = vld [vmem:[#allocation14 + $0x50] sm:$0xff]
    %v1815 = vld [vmem:[#allocation14 + $0x58] sm:$0xff]
    %v1816 = vld [vmem:[#allocation14 + $0x60] sm:$0xff]
    %v1817 = vld [vmem:[#allocation14 + $0x68] sm:$0xff]
    %v1818 = vld [vmem:[#allocation14 + $0x70] sm:$0xff]
    %v1819 = vld [vmem:[#allocation14 + $0x78] sm:$0xff]
    %v1820 = vld [vmem:[%s8] sm:$0x3]
    %v1822 = vlaneseq
    %v1823 = vshrl.u32 %v1822, 7
    %v1824 = vsub.s32 0, %v1823
    %v1825 = vrot.slane %v1820, %v1824
    %v1826 = vlaneseq
    %v1827 = vshrl.u32 %v1826, 7
    %v1828 = vsub.s32 1, %v1827
    %v1829 = vrot.slane %v1820, %v1828
    %v1848 = vunpack.c.l.b16 %v1804
    %v1849 = vunpack.c.h.b16 %v1804
    %v1850 = vunpack.c.l.b16 %v1805
    %v1851 = vunpack.c.h.b16 %v1805
    %v1852 = vunpack.c.l.b16 %v1806
    %v1853 = vunpack.c.h.b16 %v1806
    %v1854 = vunpack.c.l.b16 %v1807
    %v1855 = vunpack.c.h.b16 %v1807
    %v1856 = vunpack.c.l.b16 %v1808
    %v1857 = vunpack.c.h.b16 %v1808
    %v1858 = vunpack.c.l.b16 %v1809
    %v1859 = vunpack.c.h.b16 %v1809
    %v1860 = vunpack.c.l.b16 %v1810
    %v1861 = vunpack.c.h.b16 %v1810
    %v1862 = vunpack.c.l.b16 %v1811
    %v1863 = vunpack.c.h.b16 %v1811
    %v1864 = vunpack.c.l.b16 %v1812
    %v1865 = vunpack.c.h.b16 %v1812
    %v1866 = vunpack.c.l.b16 %v1813
    %v1867 = vunpack.c.h.b16 %v1813
    %v1868 = vunpack.c.l.b16 %v1814
    %v1869 = vunpack.c.h.b16 %v1814
    %v1870 = vunpack.c.l.b16 %v1815
    %v1871 = vunpack.c.h.b16 %v1815
    %v1872 = vunpack.c.l.b16 %v1816
    %v1873 = vunpack.c.h.b16 %v1816
    %v1874 = vunpack.c.l.b16 %v1817
    %v1875 = vunpack.c.h.b16 %v1817
    %v1876 = vunpack.c.l.b16 %v1818
    %v1877 = vunpack.c.h.b16 %v1818
    %v1878 = vunpack.c.l.b16 %v1819
    %v1879 = vunpack.c.h.b16 %v1819
    %v1880 = vpack.c.b16 %v1850, %v1848
    %v1881 = vpack.c.b16 %v1851, %v1849
    %v1882 = vpack.c.b16 %v1854, %v1852
    %v1883 = vpack.c.b16 %v1855, %v1853
    %v1884 = vpack.c.b16 %v1858, %v1856
    %v1885 = vpack.c.b16 %v1859, %v1857
    %v1886 = vpack.c.b16 %v1862, %v1860
    %v1887 = vpack.c.b16 %v1863, %v1861
    %v1888 = vpack.c.b16 %v1866, %v1864
    %v1889 = vpack.c.b16 %v1867, %v1865
    %v1890 = vpack.c.b16 %v1870, %v1868
    %v1891 = vpack.c.b16 %v1871, %v1869
    %v1892 = vpack.c.b16 %v1874, %v1872
    %v1893 = vpack.c.b16 %v1875, %v1873
    %v1894 = vpack.c.b16 %v1878, %v1876
    %v1895 = vpack.c.b16 %v1879, %v1877
    %1912 = vmatprep.subr.bf16.mxu0 %v1881
    %1913 = vmatpush1.bf16.msra.mxu0 %v1880
    %1914 = vmatprep.subr.bf16.mxu0 %v1883
    %1915 = vmatpush1.bf16.msra.mxu0 %v1882
    %1916 = vmatprep.subr.bf16.mxu0 %v1885
    %1917 = vmatpush1.bf16.msra.mxu0 %v1884
    %1918 = vmatprep.subr.bf16.mxu0 %v1887
    %1919 = vmatpush1.bf16.msra.mxu0 %v1886
    %1920 = vmatprep.subr.bf16.mxu0 %v1889
    %1921 = vmatpush1.bf16.msra.mxu0 %v1888
    %1922 = vmatprep.subr.bf16.mxu0 %v1891
    %1923 = vmatpush1.bf16.msra.mxu0 %v1890
    %1924 = vmatprep.subr.bf16.mxu0 %v1893
    %1925 = vmatpush1.bf16.msra.mxu0 %v1892
    %1926 = vmatprep.subr.bf16.mxu0 %v1895
    %1927 = vmatpush1.bf16.msra.mxu0 %v1894
    %1928 = vmatprep.subr.bf16.mxu0 0
    %1929 = vmatpush1.bf16.msra.mxu0 0
    %1930 = vmatprep.subr.bf16.mxu0 0
    %1931 = vmatpush1.bf16.msra.mxu0 0
    %1932 = vmatprep.subr.bf16.mxu0 0
    %1933 = vmatpush1.bf16.msra.mxu0 0
    %1934 = vmatprep.subr.bf16.mxu0 0
    %1935 = vmatpush1.bf16.msra.mxu0 0
    %1936 = vmatprep.subr.bf16.mxu0 0
    %1937 = vmatpush1.bf16.msra.mxu0 0
    %1938 = vmatprep.subr.bf16.mxu0 0
    %1939 = vmatpush1.bf16.msra.mxu0 0
    %1940 = vmatprep.subr.bf16.mxu0 0
    %1941 = vmatpush1.bf16.msra.mxu0 0
    %1942 = vmatprep.subr.bf16.mxu0 0
    %1943 = vmatpush1.bf16.msra.mxu0 0
    %1944 = vmatprep.mubr.bf16.mxu0 0
    %1945 = vmatmul.mubr.bf16.gmra.mrb[0].mxu0 %v1803
    %v1946 = vpop.f32.mrb[0].mxu0
    %v1947 = vadd.f32 %v1825, %v1946
    %v1948 = vpop.f32.mrb[0].mxu0
    %v1949 = vadd.f32 %v1829, %v1948
    %v1950 = vpop.f32.mrb[0].mxu0
    %v1951 = vpop.f32.mrb[0].mxu0
    %1952 = vdwg.mxu0
    %v1953 = vxor.u32 %v1947, 2147483648
    %v1954 = vxor.u32 %v1949, 2147483648
    %v1955 = vmul.f32 %v1953, 1.442695
    %v1956 = vpow.pop %v1955
    %v1957 = vmul.f32 %v1954, 1.442695
    %v1958 = vpow.pop %v1957
    %v1959 = vadd.f32 %v1956, 1.0
    %v1960 = vadd.f32 %v1958, 1.0
    %v1961 = vrcp.pop %v1959
    %v1962 = vmul.f32 1.0, %v1961
    %v1963 = vrcp.pop %v1960
    %v1964 = vmul.f32 1.0, %v1963
    %v1965 = vtanh.pop %v1949
    %v1966 = vmul.f32 %v1962, 0.0
    %1968 = vrot.lane.b32.xlu0 %v1965, 64
    %v1969 = vpop.permute.xlu0 %1968
    %v1971 = vmul.f32 %v1962, %v1969
    %1973 = vrot.lane.b32.xlu0 %v1971, 64
    %v1974 = vpop.permute.xlu0 %1973
    %v1976 = vadd.f32 %v1966, %v1974
    %v1977 = vtanh.pop %v1976
    %1979 = vrot.lane.b32.xlu0 %v1977, 64
    %v1980 = vpop.permute.xlu0 %1979
    %v1982 = vmul.f32 %v1964, %v1980
    %v1983 = vld [vmem:[#allocation16] sm:$0xff]
    %v1984 = vld [vmem:[#allocation16 + $0x8] sm:$0xff]
    %v1985 = vld [vmem:[#allocation16 + $0x10] sm:$0xff]
    %v1986 = vld [vmem:[#allocation16 + $0x18] sm:$0xff]
    %v1987 = vld [vmem:[#allocation16 + $0x20] sm:$0xff]
    %v1988 = vld [vmem:[#allocation16 + $0x28] sm:$0xff]
    %v1989 = vld [vmem:[#allocation16 + $0x30] sm:$0xff]
    %v1990 = vld [vmem:[#allocation16 + $0x38] sm:$0xff]
    %v1991 = vld [vmem:[#allocation16 + $0x40] sm:$0xff]
    %v1992 = vld [vmem:[#allocation16 + $0x48] sm:$0xff]
    %v1993 = vld [vmem:[#allocation16 + $0x50] sm:$0xff]
    %v1994 = vld [vmem:[#allocation16 + $0x58] sm:$0xff]
    %v1995 = vld [vmem:[#allocation16 + $0x60] sm:$0xff]
    %v1996 = vld [vmem:[#allocation16 + $0x68] sm:$0xff]
    %v1997 = vld [vmem:[#allocation16 + $0x70] sm:$0xff]
    %v1998 = vld [vmem:[#allocation16 + $0x78] sm:$0xff]
    %v1999 = vld [vmem:[%s10] sm:$0x1]
    %v2001 = vlaneseq
    %v2002 = vshrl.u32 %v2001, 7
    %v2003 = vsub.s32 0, %v2002
    %v2004 = vrot.slane %v1999, %v2003
    %v2007 = vsel %vm770, %v1982, 0
    %2009 = vmatprep.subr.mxu0 0.0
    %2010 = vmatpush1.msra.mxu0 %v1991
    %2011 = vmatprep.subr.mxu0 0.0
    %2012 = vmatpush1.msra.mxu0 %v1992
    %2013 = vmatprep.subr.mxu0 0.0
    %2014 = vmatpush1.msra.mxu0 %v1993
    %2015 = vmatprep.subr.mxu0 0.0
    %2016 = vmatpush1.msra.mxu0 %v1994
    %2017 = vmatprep.subr.mxu0 0.0
    %2018 = vmatpush1.msra.mxu0 %v1995
    %2019 = vmatprep.subr.mxu0 0.0
    %2020 = vmatpush1.msra.mxu0 %v1996
    %2021 = vmatprep.subr.mxu0 0.0
    %2022 = vmatpush1.msra.mxu0 %v1997
    %2023 = vmatprep.subr.mxu0 0.0
    %2024 = vmatpush1.msra.mxu0 %v1998
    %2025 = vmatprep.subr.mxu0 0.0
    %2026 = vmatpush1.msra.mxu0 0.0
    %2027 = vmatprep.subr.mxu0 0.0
    %2028 = vmatpush1.msra.mxu0 0.0
    %2029 = vmatprep.subr.mxu0 0.0
    %2030 = vmatpush1.msra.mxu0 0.0
    %2031 = vmatprep.subr.mxu0 0.0
    %2032 = vmatpush1.msra.mxu0 0.0
    %2033 = vmatprep.subr.mxu0 0.0
    %2034 = vmatpush1.msra.mxu0 0.0
    %2035 = vmatprep.subr.mxu0 0.0
    %2036 = vmatpush1.msra.mxu0 0.0
    %2037 = vmatprep.subr.mxu0 0.0
    %2038 = vmatpush1.msra.mxu0 0.0
    %2039 = vmatprep.subr.mxu0 0.0
    %2040 = vmatpush1.msra.mxu0 0.0
    %2041 = vmatprep.subr.mxu0 0.0
    %2042 = vmatpush1.msra.mxu0 0.0
    %2043 = vmatprep.subr.mxu0 0.0
    %2044 = vmatpush1.msra.mxu0 0.0
    %2045 = vmatprep.subr.mxu0 0.0
    %2046 = vmatpush1.msra.mxu0 0.0
    %2047 = vmatprep.subr.mxu0 0.0
    %2048 = vmatpush1.msra.mxu0 0.0
    %2049 = vmatprep.subr.mxu0 0.0
    %2050 = vmatpush1.msra.mxu0 0.0
    %2051 = vmatprep.subr.mxu0 0.0
    %2052 = vmatpush1.msra.mxu0 0.0
    %2053 = vmatprep.subr.mxu0 0.0
    %2054 = vmatpush1.msra.mxu0 0.0
    %2055 = vmatprep.subr.mxu0 0.0
    %2056 = vmatpush1.msra.mxu0 0.0
    %2057 = vmatprep.subr.mxu0 0.0
    %2058 = vmatpush1.msra.mxu0 0.0
    %2059 = vmatprep.subr.mxu0 0.0
    %2060 = vmatpush1.msra.mxu0 0.0
    %2061 = vmatprep.subr.mxu0 0.0
    %2062 = vmatpush1.msra.mxu0 0.0
    %2063 = vmatprep.subr.mxu0 0.0
    %2064 = vmatpush1.msra.mxu0 0.0
    %2065 = vmatprep.subr.mxu0 0.0
    %2066 = vmatpush1.msra.mxu0 0.0
    %2067 = vmatprep.subr.mxu0 0.0
    %2068 = vmatpush1.msra.mxu0 0.0
    %2069 = vmatprep.subr.mxu0 0.0
    %2070 = vmatpush1.msra.mxu0 0.0
    %2071 = vmatprep.subr.mxu0 0.0
    %2072 = vmatpush1.msra.mxu0 0.0
    %2073 = vmatprep.mubr.f32.mxu0 0.0
    %2074 = vmatmul.mubr.f32.gmra.mrb[0].mxu0 %v2007
    %v2075 = vpop.f32.mrb[0].mxu0
    %v2076 = vadd.f32 %v2004, %v2075
    %v2077 = vpop.f32.mrb[0].mxu0
    %2078 = vdwg.mxu0
    %v2079 = vld [vmem:[#allocation13] sm:$0xff]
    %v2080 = vld [vmem:[#allocation13 + $0x8] sm:$0xff]
    %v2081 = vld [vmem:[#allocation13 + $0x10] sm:$0xff]
    %v2082 = vld [vmem:[#allocation13 + $0x18] sm:$0xff]
    %v2083 = vld [vmem:[#allocation13 + $0x20] sm:$0xff]
    %v2084 = vld [vmem:[#allocation13 + $0x28] sm:$0xff]
    %v2085 = vld [vmem:[#allocation13 + $0x30] sm:$0xff]
    %v2086 = vld [vmem:[#allocation13 + $0x38] sm:$0xff]
    %v2087 = vld [vmem:[#allocation4] sm:$0xff]
    %v2088 = vld [vmem:[#allocation4 + $0x8] sm:$0xff]
    %v2097 = vunpack.c.l.b16 %v2079
    %v2098 = vunpack.c.h.b16 %v2079
    %v2099 = vunpack.c.l.b16 %v2080
    %v2100 = vunpack.c.h.b16 %v2080
    %v2101 = vunpack.c.l.b16 %v2081
    %v2102 = vunpack.c.h.b16 %v2081
    %v2103 = vunpack.c.l.b16 %v2082
    %v2104 = vunpack.c.h.b16 %v2082
    %v2105 = vunpack.c.l.b16 %v2083
    %v2106 = vunpack.c.h.b16 %v2083
    %v2107 = vunpack.c.l.b16 %v2084
    %v2108 = vunpack.c.h.b16 %v2084
    %v2109 = vunpack.c.l.b16 %v2085
    %v2110 = vunpack.c.h.b16 %v2085
    %v2111 = vunpack.c.l.b16 %v2086
    %v2112 = vunpack.c.h.b16 %v2086
    %v2113 = vpack.c.b16 %v2099, %v2097
    %v2114 = vpack.c.b16 %v2100, %v2098
    %v2115 = vpack.c.b16 %v2103, %v2101
    %v2116 = vpack.c.b16 %v2104, %v2102
    %v2117 = vpack.c.b16 %v2107, %v2105
    %v2118 = vpack.c.b16 %v2108, %v2106
    %v2119 = vpack.c.b16 %v2111, %v2109
    %v2120 = vpack.c.b16 %v2112, %v2110
    %v2130 = vsel %vm770, 0, 0
    %2132 = vmatprep.subr.bf16.mxu0 %v2114
    %2133 = vmatpush1.bf16.msra.mxu0 %v2113
    %2134 = vmatprep.subr.bf16.mxu0 %v2116
    %2135 = vmatpush1.bf16.msra.mxu0 %v2115
    %2136 = vmatprep.subr.bf16.mxu0 %v2118
    %2137 = vmatpush1.bf16.msra.mxu0 %v2117
    %2138 = vmatprep.subr.bf16.mxu0 %v2120
    %2139 = vmatpush1.bf16.msra.mxu0 %v2119
    %2140 = vmatprep.subr.bf16.mxu0 0
    %2141 = vmatpush1.bf16.msra.mxu0 0
    %2142 = vmatprep.subr.bf16.mxu0 0
    %2143 = vmatpush1.bf16.msra.mxu0 0
    %2144 = vmatprep.subr.bf16.mxu0 0
    %2145 = vmatpush1.bf16.msra.mxu0 0
    %2146 = vmatprep.subr.bf16.mxu0 0
    %2147 = vmatpush1.bf16.msra.mxu0 0
    %2148 = vmatprep.subr.bf16.mxu0 0
    %2149 = vmatpush1.bf16.msra.mxu0 0
    %2150 = vmatprep.subr.bf16.mxu0 0
    %2151 = vmatpush1.bf16.msra.mxu0 0
    %2152 = vmatprep.subr.bf16.mxu0 0
    %2153 = vmatpush1.bf16.msra.mxu0 0
    %2154 = vmatprep.subr.bf16.mxu0 0
    %2155 = vmatpush1.bf16.msra.mxu0 0
    %2156 = vmatprep.subr.bf16.mxu0 0
    %2157 = vmatpush1.bf16.msra.mxu0 0
    %2158 = vmatprep.subr.bf16.mxu0 0
    %2159 = vmatpush1.bf16.msra.mxu0 0
    %2160 = vmatprep.subr.bf16.mxu0 0
    %2161 = vmatpush1.bf16.msra.mxu0 0
    %2162 = vmatprep.subr.bf16.mxu0 0
    %2163 = vmatpush1.bf16.msra.mxu0 0
    %2164 = vmatprep.mubr.bf16.mxu0 0
    %2165 = vmatmul.mubr.bf16.gmra.mrb[0].mxu0 %v2130
    %v2166 = vpop.f32.mrb[0].mxu0
    %v2167 = vadd.f32 0.0, %v2166
    %v2168 = vpop.f32.mrb[0].mxu0
    %v2169 = vadd.f32 0.0, %v2168
    %v2170 = vpop.f32.mrb[0].mxu0
    %v2171 = vpop.f32.mrb[0].mxu0
    %2172 = vdwg.mxu0
    %v2173 = vadd.f32 %v2087, %v2167
    %v2174 = vadd.f32 %v2088, %v2169
    %v2175 = vxor.u32 %v2173, 2147483648
    %v2176 = vxor.u32 %v2174, 2147483648
    %v2177 = vmul.f32 %v2175, 1.442695
    %v2178 = vpow.pop %v2177
    %v2179 = vmul.f32 %v2176, 1.442695
    %v2180 = vpow.pop %v2179
    %v2181 = vadd.f32 %v2178, 1.0
    %v2182 = vadd.f32 %v2180, 1.0
    %v2183 = vrcp.pop %v2181
    %v2184 = vmul.f32 1.0, %v2183
    %v2185 = vrcp.pop %v2182
    %v2186 = vmul.f32 1.0, %v2185
    %v2187 = vtanh.pop %v2174
    %v2188 = vmul.f32 %v2184, 0.0
    %2190 = vrot.lane.b32.xlu0 %v2187, 64
    %v2191 = vpop.permute.xlu0 %2190
    %v2193 = vmul.f32 %v2184, %v2191
    %2195 = vrot.lane.b32.xlu0 %v2193, 64
    %v2196 = vpop.permute.xlu0 %2195
    %v2198 = vadd.f32 %v2188, %v2196
    %v2199 = vtanh.pop %v2198
    %2201 = vrot.lane.b32.xlu0 %v2199, 64
    %v2202 = vpop.permute.xlu0 %2201
    %v2204 = vmul.f32 %v2186, %v2202
    %v2205 = vld [vmem:[#allocation4 + $0x10] sm:$0xff]
    %v2206 = vld [vmem:[#allocation4 + $0x18] sm:$0xff]
    %v2207 = vpack.c.bf16 %v2204, %v2204
    %v2209 = vsel %vm770, %v2207, 0
    %2211 = vmatprep.subr.bf16.mxu0 %v2114
    %2212 = vmatpush1.bf16.msra.mxu0 %v2113
    %2213 = vmatprep.subr.bf16.mxu0 %v2116
    %2214 = vmatpush1.bf16.msra.mxu0 %v2115
    %2215 = vmatprep.subr.bf16.mxu0 %v2118
    %2216 = vmatpush1.bf16.msra.mxu0 %v2117
    %2217 = vmatprep.subr.bf16.mxu0 %v2120
    %2218 = vmatpush1.bf16.msra.mxu0 %v2119
    %2219 = vmatprep.subr.bf16.mxu0 0
    %2220 = vmatpush1.bf16.msra.mxu0 0
    %2221 = vmatprep.subr.bf16.mxu0 0
    %2222 = vmatpush1.bf16.msra.mxu0 0
    %2223 = vmatprep.subr.bf16.mxu0 0
    %2224 = vmatpush1.bf16.msra.mxu0 0
    %2225 = vmatprep.subr.bf16.mxu0 0
    %2226 = vmatpush1.bf16.msra.mxu0 0
    %2227 = vmatprep.subr.bf16.mxu0 0
    %2228 = vmatpush1.bf16.msra.mxu0 0
    %2229 = vmatprep.subr.bf16.mxu0 0
    %2230 = vmatpush1.bf16.msra.mxu0 0
    %2231 = vmatprep.subr.bf16.mxu0 0
    %2232 = vmatpush1.bf16.msra.mxu0 0
    %2233 = vmatprep.subr.bf16.mxu0 0
    %2234 = vmatpush1.bf16.msra.mxu0 0
    %2235 = vmatprep.subr.bf16.mxu0 0
    %2236 = vmatpush1.bf16.msra.mxu0 0
    %2237 = vmatprep.subr.bf16.mxu0 0
    %2238 = vmatpush1.bf16.msra.mxu0 0
    %2239 = vmatprep.subr.bf16.mxu0 0
    %2240 = vmatpush1.bf16.msra.mxu0 0
    %2241 = vmatprep.subr.bf16.mxu0 0
    %2242 = vmatpush1.bf16.msra.mxu0 0
    %2243 = vmatprep.mubr.bf16.mxu0 0
    %2244 = vmatmul.mubr.bf16.gmra.mrb[0].mxu0 %v2209
    %v2245 = vpop.f32.mrb[0].mxu0
    %v2246 = vadd.f32 0.0, %v2245
    %v2247 = vpop.f32.mrb[0].mxu0
    %v2248 = vadd.f32 0.0, %v2247
    %v2249 = vpop.f32.mrb[0].mxu0
    %v2250 = vpop.f32.mrb[0].mxu0
    %2251 = vdwg.mxu0
    %v2252 = vadd.f32 %v2205, %v2246
    %v2253 = vadd.f32 %v2206, %v2248
    %v2254 = vxor.u32 %v2252, 2147483648
    %v2255 = vxor.u32 %v2253, 2147483648
    %v2256 = vmul.f32 %v2254, 1.442695
    %v2257 = vpow.pop %v2256
    %v2258 = vmul.f32 %v2255, 1.442695
    %v2259 = vpow.pop %v2258
    %v2260 = vadd.f32 %v2257, 1.0
    %v2261 = vadd.f32 %v2259, 1.0
    %v2262 = vrcp.pop %v2260
    %v2263 = vmul.f32 1.0, %v2262
    %v2264 = vrcp.pop %v2261
    %v2265 = vmul.f32 1.0, %v2264
    %v2266 = vtanh.pop %v2253
    %v2267 = vmul.f32 %v2263, %v2198
    %2269 = vrot.lane.b32.xlu0 %v2266, 64
    %v2270 = vpop.permute.xlu0 %2269
    %v2272 = vmul.f32 %v2263, %v2270
    %2274 = vrot.lane.b32.xlu0 %v2272, 64
    %v2275 = vpop.permute.xlu0 %2274
    %v2277 = vadd.f32 %v2267, %v2275
    %v2278 = vtanh.pop %v2277
    %2280 = vrot.lane.b32.xlu0 %v2278, 64
    %v2281 = vpop.permute.xlu0 %2280
    %v2283 = vmul.f32 %v2265, %v2281
    %v2284 = vld [vmem:[#allocation4 + $0x20] sm:$0xff]
    %v2285 = vld [vmem:[#allocation4 + $0x28] sm:$0xff]
    %v2286 = vpack.c.bf16 %v2283, %v2283
    %v2288 = vsel %vm770, %v2286, 0
    %2290 = vmatprep.subr.bf16.mxu0 %v2114
    %2291 = vmatpush1.bf16.msra.mxu0 %v2113
    %2292 = vmatprep.subr.bf16.mxu0 %v2116
    %2293 = vmatpush1.bf16.msra.mxu0 %v2115
    %2294 = vmatprep.subr.bf16.mxu0 %v2118
    %2295 = vmatpush1.bf16.msra.mxu0 %v2117
    %2296 = vmatprep.subr.bf16.mxu0 %v2120
    %2297 = vmatpush1.bf16.msra.mxu0 %v2119
    %2298 = vmatprep.subr.bf16.mxu0 0
    %2299 = vmatpush1.bf16.msra.mxu0 0
    %2300 = vmatprep.subr.bf16.mxu0 0
    %2301 = vmatpush1.bf16.msra.mxu0 0
    %2302 = vmatprep.subr.bf16.mxu0 0
    %2303 = vmatpush1.bf16.msra.mxu0 0
    %2304 = vmatprep.subr.bf16.mxu0 0
    %2305 = vmatpush1.bf16.msra.mxu0 0
    %2306 = vmatprep.subr.bf16.mxu0 0
    %2307 = vmatpush1.bf16.msra.mxu0 0
    %2308 = vmatprep.subr.bf16.mxu0 0
    %2309 = vmatpush1.bf16.msra.mxu0 0
    %2310 = vmatprep.subr.bf16.mxu0 0
    %2311 = vmatpush1.bf16.msra.mxu0 0
    %2312 = vmatprep.subr.bf16.mxu0 0
    %2313 = vmatpush1.bf16.msra.mxu0 0
    %2314 = vmatprep.subr.bf16.mxu0 0
    %2315 = vmatpush1.bf16.msra.mxu0 0
    %2316 = vmatprep.subr.bf16.mxu0 0
    %2317 = vmatpush1.bf16.msra.mxu0 0
    %2318 = vmatprep.subr.bf16.mxu0 0
    %2319 = vmatpush1.bf16.msra.mxu0 0
    %2320 = vmatprep.subr.bf16.mxu0 0
    %2321 = vmatpush1.bf16.msra.mxu0 0
    %2322 = vmatprep.mubr.bf16.mxu0 0
    %2323 = vmatmul.mubr.bf16.gmra.mrb[0].mxu0 %v2288
    %v2324 = vpop.f32.mrb[0].mxu0
    %v2325 = vadd.f32 0.0, %v2324
    %v2326 = vpop.f32.mrb[0].mxu0
    %v2327 = vadd.f32 0.0, %v2326
    %v2328 = vpop.f32.mrb[0].mxu0
    %v2329 = vpop.f32.mrb[0].mxu0
    %2330 = vdwg.mxu0
    %v2331 = vadd.f32 %v2284, %v2325
    %v2332 = vadd.f32 %v2285, %v2327
    %v2333 = vxor.u32 %v2331, 2147483648
    %v2334 = vxor.u32 %v2332, 2147483648
    %v2335 = vmul.f32 %v2333, 1.442695
    %v2336 = vpow.pop %v2335
    %v2337 = vmul.f32 %v2334, 1.442695
    %v2338 = vpow.pop %v2337
    %v2339 = vadd.f32 %v2336, 1.0
    %v2340 = vadd.f32 %v2338, 1.0
    %v2341 = vrcp.pop %v2339
    %v2342 = vmul.f32 1.0, %v2341
    %v2343 = vrcp.pop %v2340
    %v2344 = vmul.f32 1.0, %v2343
    %v2345 = vtanh.pop %v2332
    %v2346 = vmul.f32 %v2342, %v2277
    %2348 = vrot.lane.b32.xlu0 %v2345, 64
    %v2349 = vpop.permute.xlu0 %2348
    %v2351 = vmul.f32 %v2342, %v2349
    %2353 = vrot.lane.b32.xlu0 %v2351, 64
    %v2354 = vpop.permute.xlu0 %2353
    %v2356 = vadd.f32 %v2346, %v2354
    %v2357 = vtanh.pop %v2356
    %2359 = vrot.lane.b32.xlu0 %v2357, 64
    %v2360 = vpop.permute.xlu0 %2359
    %v2362 = vmul.f32 %v2344, %v2360
    %v2363 = vld [vmem:[#allocation4 + $0x30] sm:$0xff]
    %v2364 = vld [vmem:[#allocation4 + $0x38] sm:$0xff]
    %v2365 = vpack.c.bf16 %v2362, %v2362
    %v2367 = vsel %vm770, %v2365, 0
    %2369 = vmatprep.subr.bf16.mxu0 %v2114
    %2370 = vmatpush1.bf16.msra.mxu0 %v2113
    %2371 = vmatprep.subr.bf16.mxu0 %v2116
    %2372 = vmatpush1.bf16.msra.mxu0 %v2115
    %2373 = vmatprep.subr.bf16.mxu0 %v2118
    %2374 = vmatpush1.bf16.msra.mxu0 %v2117
    %2375 = vmatprep.subr.bf16.mxu0 %v2120
    %2376 = vmatpush1.bf16.msra.mxu0 %v2119
    %2377 = vmatprep.subr.bf16.mxu0 0
    %2378 = vmatpush1.bf16.msra.mxu0 0
    %2379 = vmatprep.subr.bf16.mxu0 0
    %2380 = vmatpush1.bf16.msra.mxu0 0
    %2381 = vmatprep.subr.bf16.mxu0 0
    %2382 = vmatpush1.bf16.msra.mxu0 0
    %2383 = vmatprep.subr.bf16.mxu0 0
    %2384 = vmatpush1.bf16.msra.mxu0 0
    %2385 = vmatprep.subr.bf16.mxu0 0
    %2386 = vmatpush1.bf16.msra.mxu0 0
    %2387 = vmatprep.subr.bf16.mxu0 0
    %2388 = vmatpush1.bf16.msra.mxu0 0
    %2389 = vmatprep.subr.bf16.mxu0 0
    %2390 = vmatpush1.bf16.msra.mxu0 0
    %2391 = vmatprep.subr.bf16.mxu0 0
    %2392 = vmatpush1.bf16.msra.mxu0 0
    %2393 = vmatprep.subr.bf16.mxu0 0
    %2394 = vmatpush1.bf16.msra.mxu0 0
    %2395 = vmatprep.subr.bf16.mxu0 0
    %2396 = vmatpush1.bf16.msra.mxu0 0
    %2397 = vmatprep.subr.bf16.mxu0 0
    %2398 = vmatpush1.bf16.msra.mxu0 0
    %2399 = vmatprep.subr.bf16.mxu0 0
    %2400 = vmatpush1.bf16.msra.mxu0 0
    %2401 = vmatprep.mubr.bf16.mxu0 0
    %2402 = vmatmul.mubr.bf16.gmra.mrb[0].mxu0 %v2367
    %v2403 = vpop.f32.mrb[0].mxu0
    %v2404 = vadd.f32 0.0, %v2403
    %v2405 = vpop.f32.mrb[0].mxu0
    %v2406 = vadd.f32 0.0, %v2405
    %v2407 = vpop.f32.mrb[0].mxu0
    %v2408 = vpop.f32.mrb[0].mxu0
    %2409 = vdwg.mxu0
    %v2410 = vadd.f32 %v2363, %v2404
    %v2411 = vadd.f32 %v2364, %v2406
    %v2412 = vxor.u32 %v2410, 2147483648
    %v2413 = vxor.u32 %v2411, 2147483648
    %v2414 = vmul.f32 %v2412, 1.442695
    %v2415 = vpow.pop %v2414
    %v2416 = vmul.f32 %v2413, 1.442695
    %v2417 = vpow.pop %v2416
    %v2418 = vadd.f32 %v2415, 1.0
    %v2419 = vadd.f32 %v2417, 1.0
    %v2420 = vrcp.pop %v2418
    %v2421 = vmul.f32 1.0, %v2420
    %v2422 = vrcp.pop %v2419
    %v2423 = vmul.f32 1.0, %v2422
    %v2424 = vtanh.pop %v2411
    %v2425 = vmul.f32 %v2421, %v2356
    %2427 = vrot.lane.b32.xlu0 %v2424, 64
    %v2428 = vpop.permute.xlu0 %2427
    %v2430 = vmul.f32 %v2421, %v2428
    %2432 = vrot.lane.b32.xlu0 %v2430, 64
    %v2433 = vpop.permute.xlu0 %2432
    %v2435 = vadd.f32 %v2425, %v2433
    %v2436 = vtanh.pop %v2435
    %2438 = vrot.lane.b32.xlu0 %v2436, 64
    %v2439 = vpop.permute.xlu0 %2438
    %v2441 = vmul.f32 %v2423, %v2439
    %v2442 = vld [vmem:[#allocation4 + $0x40] sm:$0xff]
    %v2443 = vld [vmem:[#allocation4 + $0x48] sm:$0xff]
    %v2444 = vpack.c.bf16 %v2441, %v2441
    %v2446 = vsel %vm770, %v2444, 0
    %2448 = vmatprep.subr.bf16.mxu0 %v2114
    %2449 = vmatpush1.bf16.msra.mxu0 %v2113
    %2450 = vmatprep.subr.bf16.mxu0 %v2116
    %2451 = vmatpush1.bf16.msra.mxu0 %v2115
    %2452 = vmatprep.subr.bf16.mxu0 %v2118
    %2453 = vmatpush1.bf16.msra.mxu0 %v2117
    %2454 = vmatprep.subr.bf16.mxu0 %v2120
    %2455 = vmatpush1.bf16.msra.mxu0 %v2119
    %2456 = vmatprep.subr.bf16.mxu0 0
    %2457 = vmatpush1.bf16.msra.mxu0 0
    %2458 = vmatprep.subr.bf16.mxu0 0
    %2459 = vmatpush1.bf16.msra.mxu0 0
    %2460 = vmatprep.subr.bf16.mxu0 0
    %2461 = vmatpush1.bf16.msra.mxu0 0
    %2462 = vmatprep.subr.bf16.mxu0 0
    %2463 = vmatpush1.bf16.msra.mxu0 0
    %2464 = vmatprep.subr.bf16.mxu0 0
    %2465 = vmatpush1.bf16.msra.mxu0 0
    %2466 = vmatprep.subr.bf16.mxu0 0
    %2467 = vmatpush1.bf16.msra.mxu0 0
    %2468 = vmatprep.subr.bf16.mxu0 0
    %2469 = vmatpush1.bf16.msra.mxu0 0
    %2470 = vmatprep.subr.bf16.mxu0 0
    %2471 = vmatpush1.bf16.msra.mxu0 0
    %2472 = vmatprep.subr.bf16.mxu0 0
    %2473 = vmatpush1.bf16.msra.mxu0 0
    %2474 = vmatprep.subr.bf16.mxu0 0
    %2475 = vmatpush1.bf16.msra.mxu0 0
    %2476 = vmatprep.subr.bf16.mxu0 0
    %2477 = vmatpush1.bf16.msra.mxu0 0
    %2478 = vmatprep.subr.bf16.mxu0 0
    %2479 = vmatpush1.bf16.msra.mxu0 0
    %2480 = vmatprep.mubr.bf16.mxu0 0
    %2481 = vmatmul.mubr.bf16.gmra.mrb[0].mxu0 %v2446
    %v2482 = vpop.f32.mrb[0].mxu0
    %v2483 = vadd.f32 0.0, %v2482
    %v2484 = vpop.f32.mrb[0].mxu0
    %v2485 = vadd.f32 0.0, %v2484
    %v2486 = vpop.f32.mrb[0].mxu0
    %v2487 = vpop.f32.mrb[0].mxu0
    %2488 = vdwg.mxu0
    %v2489 = vadd.f32 %v2442, %v2483
    %v2490 = vadd.f32 %v2443, %v2485
    %v2491 = vxor.u32 %v2489, 2147483648
    %v2492 = vxor.u32 %v2490, 2147483648
    %v2493 = vmul.f32 %v2491, 1.442695
    %v2494 = vpow.pop %v2493
    %v2495 = vmul.f32 %v2492, 1.442695
    %v2496 = vpow.pop %v2495
    %v2497 = vadd.f32 %v2494, 1.0
    %v2498 = vadd.f32 %v2496, 1.0
    %v2499 = vrcp.pop %v2497
    %v2500 = vmul.f32 1.0, %v2499
    %v2501 = vrcp.pop %v2498
    %v2502 = vmul.f32 1.0, %v2501
    %v2503 = vtanh.pop %v2490
    %v2504 = vmul.f32 %v2500, %v2435
    %2506 = vrot.lane.b32.xlu0 %v2503, 64
    %v2507 = vpop.permute.xlu0 %2506
    %v2509 = vmul.f32 %v2500, %v2507
    %2511 = vrot.lane.b32.xlu0 %v2509, 64
    %v2512 = vpop.permute.xlu0 %2511
    %v2514 = vadd.f32 %v2504, %v2512
    %v2515 = vtanh.pop %v2514
    %2517 = vrot.lane.b32.xlu0 %v2515, 64
    %v2518 = vpop.permute.xlu0 %2517
    %v2520 = vmul.f32 %v2502, %v2518
    %v2521 = vld [vmem:[#allocation4 + $0x50] sm:$0xff]
    %v2522 = vld [vmem:[#allocation4 + $0x58] sm:$0xff]
    %v2523 = vpack.c.bf16 %v2520, %v2520
    %v2525 = vsel %vm770, %v2523, 0
    %2527 = vmatprep.subr.bf16.mxu0 %v2114
    %2528 = vmatpush1.bf16.msra.mxu0 %v2113
    %2529 = vmatprep.subr.bf16.mxu0 %v2116
    %2530 = vmatpush1.bf16.msra.mxu0 %v2115
    %2531 = vmatprep.subr.bf16.mxu0 %v2118
    %2532 = vmatpush1.bf16.msra.mxu0 %v2117
    %2533 = vmatprep.subr.bf16.mxu0 %v2120
    %2534 = vmatpush1.bf16.msra.mxu0 %v2119
    %2535 = vmatprep.subr.bf16.mxu0 0
    %2536 = vmatpush1.bf16.msra.mxu0 0
    %2537 = vmatprep.subr.bf16.mxu0 0
    %2538 = vmatpush1.bf16.msra.mxu0 0
    %2539 = vmatprep.subr.bf16.mxu0 0
    %2540 = vmatpush1.bf16.msra.mxu0 0
    %2541 = vmatprep.subr.bf16.mxu0 0
    %2542 = vmatpush1.bf16.msra.mxu0 0
    %2543 = vmatprep.subr.bf16.mxu0 0
    %2544 = vmatpush1.bf16.msra.mxu0 0
    %2545 = vmatprep.subr.bf16.mxu0 0
    %2546 = vmatpush1.bf16.msra.mxu0 0
    %2547 = vmatprep.subr.bf16.mxu0 0
    %2548 = vmatpush1.bf16.msra.mxu0 0
    %2549 = vmatprep.subr.bf16.mxu0 0
    %2550 = vmatpush1.bf16.msra.mxu0 0
    %2551 = vmatprep.subr.bf16.mxu0 0
    %2552 = vmatpush1.bf16.msra.mxu0 0
    %2553 = vmatprep.subr.bf16.mxu0 0
    %2554 = vmatpush1.bf16.msra.mxu0 0
    %2555 = vmatprep.subr.bf16.mxu0 0
    %2556 = vmatpush1.bf16.msra.mxu0 0
    %2557 = vmatprep.subr.bf16.mxu0 0
    %2558 = vmatpush1.bf16.msra.mxu0 0
    %2559 = vmatprep.mubr.bf16.mxu0 0
    %2560 = vmatmul.mubr.bf16.gmra.mrb[0].mxu0 %v2525
    %v2561 = vpop.f32.mrb[0].mxu0
    %v2562 = vadd.f32 0.0, %v2561
    %v2563 = vpop.f32.mrb[0].mxu0
    %v2564 = vadd.f32 0.0, %v2563
    %v2565 = vpop.f32.mrb[0].mxu0
    %v2566 = vpop.f32.mrb[0].mxu0
    %2567 = vdwg.mxu0
    %v2568 = vadd.f32 %v2521, %v2562
    %v2569 = vadd.f32 %v2522, %v2564
    %v2570 = vxor.u32 %v2568, 2147483648
    %v2571 = vxor.u32 %v2569, 2147483648
    %v2572 = vmul.f32 %v2570, 1.442695
    %v2573 = vpow.pop %v2572
    %v2574 = vmul.f32 %v2571, 1.442695
    %v2575 = vpow.pop %v2574
    %v2576 = vadd.f32 %v2573, 1.0
    %v2577 = vadd.f32 %v2575, 1.0
    %v2578 = vrcp.pop %v2576
    %v2579 = vmul.f32 1.0, %v2578
    %v2580 = vrcp.pop %v2577
    %v2581 = vmul.f32 1.0, %v2580
    %v2582 = vtanh.pop %v2569
    %v2583 = vmul.f32 %v2579, %v2514
    %2585 = vrot.lane.b32.xlu0 %v2582, 64
    %v2586 = vpop.permute.xlu0 %2585
    %v2588 = vmul.f32 %v2579, %v2586
    %2590 = vrot.lane.b32.xlu0 %v2588, 64
    %v2591 = vpop.permute.xlu0 %2590
    %v2593 = vadd.f32 %v2583, %v2591
    %v2594 = vtanh.pop %v2593
    %2596 = vrot.lane.b32.xlu0 %v2594, 64
    %v2597 = vpop.permute.xlu0 %2596
    %v2599 = vmul.f32 %v2581, %v2597
    %v2600 = vld [vmem:[#allocation4 + $0x60] sm:$0xff]
    %v2601 = vld [vmem:[#allocation4 + $0x68] sm:$0xff]
    %v2602 = vpack.c.bf16 %v2599, %v2599
    %v2604 = vsel %vm770, %v2602, 0
    %2606 = vmatprep.subr.bf16.mxu0 %v2114
    %2607 = vmatpush1.bf16.msra.mxu0 %v2113
    %2608 = vmatprep.subr.bf16.mxu0 %v2116
    %2609 = vmatpush1.bf16.msra.mxu0 %v2115
    %2610 = vmatprep.subr.bf16.mxu0 %v2118
    %2611 = vmatpush1.bf16.msra.mxu0 %v2117
    %2612 = vmatprep.subr.bf16.mxu0 %v2120
    %2613 = vmatpush1.bf16.msra.mxu0 %v2119
    %2614 = vmatprep.subr.bf16.mxu0 0
    %2615 = vmatpush1.bf16.msra.mxu0 0
    %2616 = vmatprep.subr.bf16.mxu0 0
    %2617 = vmatpush1.bf16.msra.mxu0 0
    %2618 = vmatprep.subr.bf16.mxu0 0
    %2619 = vmatpush1.bf16.msra.mxu0 0
    %2620 = vmatprep.subr.bf16.mxu0 0
    %2621 = vmatpush1.bf16.msra.mxu0 0
    %2622 = vmatprep.subr.bf16.mxu0 0
    %2623 = vmatpush1.bf16.msra.mxu0 0
    %2624 = vmatprep.subr.bf16.mxu0 0
    %2625 = vmatpush1.bf16.msra.mxu0 0
    %2626 = vmatprep.subr.bf16.mxu0 0
    %2627 = vmatpush1.bf16.msra.mxu0 0
    %2628 = vmatprep.subr.bf16.mxu0 0
    %2629 = vmatpush1.bf16.msra.mxu0 0
    %2630 = vmatprep.subr.bf16.mxu0 0
    %2631 = vmatpush1.bf16.msra.mxu0 0
    %2632 = vmatprep.subr.bf16.mxu0 0
    %2633 = vmatpush1.bf16.msra.mxu0 0
    %2634 = vmatprep.subr.bf16.mxu0 0
    %2635 = vmatpush1.bf16.msra.mxu0 0
    %2636 = vmatprep.subr.bf16.mxu0 0
    %2637 = vmatpush1.bf16.msra.mxu0 0
    %2638 = vmatprep.mubr.bf16.mxu0 0
    %2639 = vmatmul.mubr.bf16.gmra.mrb[0].mxu0 %v2604
    %v2640 = vpop.f32.mrb[0].mxu0
    %v2641 = vadd.f32 0.0, %v2640
    %v2642 = vpop.f32.mrb[0].mxu0
    %v2643 = vadd.f32 0.0, %v2642
    %v2644 = vpop.f32.mrb[0].mxu0
    %v2645 = vpop.f32.mrb[0].mxu0
    %2646 = vdwg.mxu0
    %v2647 = vadd.f32 %v2600, %v2641
    %v2648 = vadd.f32 %v2601, %v2643
    %v2649 = vxor.u32 %v2647, 2147483648
    %v2650 = vxor.u32 %v2648, 2147483648
    %v2651 = vmul.f32 %v2649, 1.442695
    %v2652 = vpow.pop %v2651
    %v2653 = vmul.f32 %v2650, 1.442695
    %v2654 = vpow.pop %v2653
    %v2655 = vadd.f32 %v2652, 1.0
    %v2656 = vadd.f32 %v2654, 1.0
    %v2657 = vrcp.pop %v2655
    %v2658 = vmul.f32 1.0, %v2657
    %v2659 = vrcp.pop %v2656
    %v2660 = vmul.f32 1.0, %v2659
    %v2661 = vtanh.pop %v2648
    %v2662 = vmul.f32 %v2658, %v2593
    %2664 = vrot.lane.b32.xlu0 %v2661, 64
    %v2665 = vpop.permute.xlu0 %2664
    %v2667 = vmul.f32 %v2658, %v2665
    %2669 = vrot.lane.b32.xlu0 %v2667, 64
    %v2670 = vpop.permute.xlu0 %2669
    %v2672 = vadd.f32 %v2662, %v2670
    %v2673 = vtanh.pop %v2672
    %2675 = vrot.lane.b32.xlu0 %v2673, 64
    %v2676 = vpop.permute.xlu0 %2675
    %v2678 = vmul.f32 %v2660, %v2676
    %v2679 = vld [vmem:[#allocation4 + $0x70] sm:$0xff]
    %v2680 = vld [vmem:[#allocation4 + $0x78] sm:$0xff]
    %v2681 = vpack.c.bf16 %v2678, %v2678
    %v2683 = vsel %vm770, %v2681, 0
    %2685 = vmatprep.subr.bf16.mxu0 %v2114
    %2686 = vmatpush1.bf16.msra.mxu0 %v2113
    %2687 = vmatprep.subr.bf16.mxu0 %v2116
    %2688 = vmatpush1.bf16.msra.mxu0 %v2115
    %2689 = vmatprep.subr.bf16.mxu0 %v2118
    %2690 = vmatpush1.bf16.msra.mxu0 %v2117
    %2691 = vmatprep.subr.bf16.mxu0 %v2120
    %2692 = vmatpush1.bf16.msra.mxu0 %v2119
    %2693 = vmatprep.subr.bf16.mxu0 0
    %2694 = vmatpush1.bf16.msra.mxu0 0
    %2695 = vmatprep.subr.bf16.mxu0 0
    %2696 = vmatpush1.bf16.msra.mxu0 0
    %2697 = vmatprep.subr.bf16.mxu0 0
    %2698 = vmatpush1.bf16.msra.mxu0 0
    %2699 = vmatprep.subr.bf16.mxu0 0
    %2700 = vmatpush1.bf16.msra.mxu0 0
    %2701 = vmatprep.subr.bf16.mxu0 0
    %2702 = vmatpush1.bf16.msra.mxu0 0
    %2703 = vmatprep.subr.bf16.mxu0 0
    %2704 = vmatpush1.bf16.msra.mxu0 0
    %2705 = vmatprep.subr.bf16.mxu0 0
    %2706 = vmatpush1.bf16.msra.mxu0 0
    %2707 = vmatprep.subr.bf16.mxu0 0
    %2708 = vmatpush1.bf16.msra.mxu0 0
    %2709 = vmatprep.subr.bf16.mxu0 0
    %2710 = vmatpush1.bf16.msra.mxu0 0
    %2711 = vmatprep.subr.bf16.mxu0 0
    %2712 = vmatpush1.bf16.msra.mxu0 0
    %2713 = vmatprep.subr.bf16.mxu0 0
    %2714 = vmatpush1.bf16.msra.mxu0 0
    %2715 = vmatprep.subr.bf16.mxu0 0
    %2716 = vmatpush1.bf16.msra.mxu0 0
    %2717 = vmatprep.mubr.bf16.mxu0 0
    %2718 = vmatmul.mubr.bf16.gmra.mrb[0].mxu0 %v2683
    %v2719 = vpop.f32.mrb[0].mxu0
    %v2720 = vadd.f32 0.0, %v2719
    %v2721 = vpop.f32.mrb[0].mxu0
    %v2722 = vadd.f32 0.0, %v2721
    %v2723 = vpop.f32.mrb[0].mxu0
    %v2724 = vpop.f32.mrb[0].mxu0
    %2725 = vdwg.mxu0
    %v2726 = vadd.f32 %v2679, %v2720
    %v2727 = vadd.f32 %v2680, %v2722
    %v2728 = vxor.u32 %v2726, 2147483648
    %v2729 = vxor.u32 %v2727, 2147483648
    %v2730 = vmul.f32 %v2728, 1.442695
    %v2731 = vpow.pop %v2730
    %v2732 = vmul.f32 %v2729, 1.442695
    %v2733 = vpow.pop %v2732
    %v2734 = vadd.f32 %v2731, 1.0
    %v2735 = vadd.f32 %v2733, 1.0
    %v2736 = vrcp.pop %v2734
    %v2737 = vmul.f32 1.0, %v2736
    %v2738 = vrcp.pop %v2735
    %v2739 = vmul.f32 1.0, %v2738
    %v2740 = vtanh.pop %v2727
    %v2741 = vmul.f32 %v2737, %v2672
    %2743 = vrot.lane.b32.xlu0 %v2740, 64
    %v2744 = vpop.permute.xlu0 %2743
    %v2746 = vmul.f32 %v2737, %v2744
    %2748 = vrot.lane.b32.xlu0 %v2746, 64
    %v2749 = vpop.permute.xlu0 %2748
    %v2751 = vadd.f32 %v2741, %v2749
    %v2752 = vtanh.pop %v2751
    %2754 = vrot.lane.b32.xlu0 %v2752, 64
    %v2755 = vpop.permute.xlu0 %2754
    %v2757 = vmul.f32 %v2739, %v2755
    %v2759 = vsel %vm770, %v2757, 0
    %2761 = vmatprep.subr.mxu0 0.0
    %2762 = vmatpush1.msra.mxu0 %v1983
    %2763 = vmatprep.subr.mxu0 0.0
    %2764 = vmatpush1.msra.mxu0 %v1984
    %2765 = vmatprep.subr.mxu0 0.0
    %2766 = vmatpush1.msra.mxu0 %v1985
    %2767 = vmatprep.subr.mxu0 0.0
    %2768 = vmatpush1.msra.mxu0 %v1986
    %2769 = vmatprep.subr.mxu0 0.0
    %2770 = vmatpush1.msra.mxu0 %v1987
    %2771 = vmatprep.subr.mxu0 0.0
    %2772 = vmatpush1.msra.mxu0 %v1988
    %2773 = vmatprep.subr.mxu0 0.0
    %2774 = vmatpush1.msra.mxu0 %v1989
    %2775 = vmatprep.subr.mxu0 0.0
    %2776 = vmatpush1.msra.mxu0 %v1990
    %2777 = vmatprep.subr.mxu0 0.0
    %2778 = vmatpush1.msra.mxu0 0.0
    %2779 = vmatprep.subr.mxu0 0.0
    %2780 = vmatpush1.msra.mxu0 0.0
    %2781 = vmatprep.subr.mxu0 0.0
    %2782 = vmatpush1.msra.mxu0 0.0
    %2783 = vmatprep.subr.mxu0 0.0
    %2784 = vmatpush1.msra.mxu0 0.0
    %2785 = vmatprep.subr.mxu0 0.0
    %2786 = vmatpush1.msra.mxu0 0.0
    %2787 = vmatprep.subr.mxu0 0.0
    %2788 = vmatpush1.msra.mxu0 0.0
    %2789 = vmatprep.subr.mxu0 0.0
    %2790 = vmatpush1.msra.mxu0 0.0
    %2791 = vmatprep.subr.mxu0 0.0
    %2792 = vmatpush1.msra.mxu0 0.0
    %2793 = vmatprep.subr.mxu0 0.0
    %2794 = vmatpush1.msra.mxu0 0.0
    %2795 = vmatprep.subr.mxu0 0.0
    %2796 = vmatpush1.msra.mxu0 0.0
    %2797 = vmatprep.subr.mxu0 0.0
    %2798 = vmatpush1.msra.mxu0 0.0
    %2799 = vmatprep.subr.mxu0 0.0
    %2800 = vmatpush1.msra.mxu0 0.0
    %2801 = vmatprep.subr.mxu0 0.0
    %2802 = vmatpush1.msra.mxu0 0.0
    %2803 = vmatprep.subr.mxu0 0.0
    %2804 = vmatpush1.msra.mxu0 0.0
    %2805 = vmatprep.subr.mxu0 0.0
    %2806 = vmatpush1.msra.mxu0 0.0
    %2807 = vmatprep.subr.mxu0 0.0
    %2808 = vmatpush1.msra.mxu0 0.0
    %2809 = vmatprep.subr.mxu0 0.0
    %2810 = vmatpush1.msra.mxu0 0.0
    %2811 = vmatprep.subr.mxu0 0.0
    %2812 = vmatpush1.msra.mxu0 0.0
    %2813 = vmatprep.subr.mxu0 0.0
    %2814 = vmatpush1.msra.mxu0 0.0
    %2815 = vmatprep.subr.mxu0 0.0
    %2816 = vmatpush1.msra.mxu0 0.0
    %2817 = vmatprep.subr.mxu0 0.0
    %2818 = vmatpush1.msra.mxu0 0.0
    %2819 = vmatprep.subr.mxu0 0.0
    %2820 = vmatpush1.msra.mxu0 0.0
    %2821 = vmatprep.subr.mxu0 0.0
    %2822 = vmatpush1.msra.mxu0 0.0
    %2823 = vmatprep.subr.mxu0 0.0
    %2824 = vmatpush1.msra.mxu0 0.0
    %2825 = vmatprep.mubr.f32.mxu0 0.0
    %2826 = vmatmul.mubr.f32.gmra.mrb[0].mxu0 %v2759
    %v2827 = vpop.f32.mrb[0].mxu0
    %v2828 = vadd.f32 0.0, %v2827
    %v2829 = vpop.f32.mrb[0].mxu0
    %2830 = vdwg.mxu0
    %v2831 = vadd.f32 %v2076, %v2828
    %2832 = vst [vmem:[#allocation17] sm:$0xff] %v2831
    // Predicated region
    $region74: #{tpu_custom_call.1} parent=1 // pred_check
      _
    $region75: #{tpu_custom_call.1} parent=1 // pred_check_branch
      %2834 = sbr.rel (0) target = $region77
    $region76: #{tpu_custom_call.1} parent=1 // pred_region
      %s2836 = ssub.s32 128, 128
      %2837 = vsyncadd [#allocation7], %s2836
      %s2839 = sshll.u32 [#allocation17], 4
      %s2840 = int_to_ptr.vmem [resolvable:$true] %s2839
      %2842 = dma.vmem_to_hbm [thread:$0]  %s2840, 128, %s11, [#allocation7]
    $region77: #{tpu_custom_call.1} parent=1 // pred_fallthru
      _
    // Predicated region
    $region78: #{tpu_custom_call.1} parent=1 // pred_check
      _
    $region79: #{tpu_custom_call.1} parent=1 // pred_check_branch
      %2844 = sbr.rel (0) target = $region81
    $region80: #{tpu_custom_call.1} parent=1 // pred_region
      %2845 = dma.done [#allocation7], 128
    $region81: #{tpu_custom_call.1} parent=1 // pred_fallthru
      _
    %2846 = vsyncpa [#allocation6], 1
    %2847 = vsyncpa [#allocation9], 1
    %2848 = vsyncpa [#allocation12], 1
    %2849 = vsyncpa [#allocation15], 1
    %2850 = vsyncpa [#allocation7], 1

</llo_original>
